<compile_context>
chip_gen: v7x
topology: tpu7x:2x2x1
jax: 0.10.0
libtpu: 0.0.40
codegen_flags: <defaults>
</compile_context>

<pallas_src>
import functools

import jax
import jax.numpy as jnp
from jax import lax
from jax.experimental import pallas as pl
from jax.experimental.pallas import tpu as pltpu


# ----------------------------- config (synthetic) -----------------------------
class EncoderConfig:
    dim_fts = [16, 16]        # sum = 32
    dim_embed = 32
    is_embed = True
    nonlinear = True
    norm = True
    dropout = 0.5             # nn.Dropout is the identity at inference


# --------------------------------- helpers ------------------------------------
def _round_up(x, m):
    return (x + m - 1) // m * m


def _choose_row_tile(b_rows, din, dout, target, vmem_budget=8 * 1024 * 1024):
    """Largest sublane-aligned (multiple-of-8) row tile <= target that keeps the
    double-buffered working set well inside scoped VMEM on v5e/v6e/v7x, while
    leaving >=16 grid steps when rows are plentiful (v7x dual-TC balance)."""
    tb = min(target, max(b_rows, 8))
    tb = max(8, _round_up(tb, 8))
    resident = din * dout * 2 + dout * 4                 # bf16 W + f32 bias (once)
    per_row = 2 * (din * 4) + 2 * (dout * 2)             # dbl-buffered f32 x + bf16 out
    while tb > 8 and resident + tb * per_row > vmem_budget:
        tb = max(8, _round_up(tb // 2, 8))               # stays a multiple of 8
    if b_rows >= 16 * 512:
        # plenty of rows: cap the tile so each v7x TC gets >= 8 pipeline steps,
        # but never drop below 512 rows (per-step overhead ~0.35 us).
        tb = min(tb, max(512, _round_up(pl.cdiv(b_rows, 16), 8)))
    return tb


def prepare_encoder_params(weight_t, bias, *, compute_dtype=jnp.bfloat16):
    """One-time per-model prep: bf16 weight (Din, Dout) and f32 bias (1, Dout)."""
    wq = weight_t.astype(compute_dtype)
    bq = bias.astype(jnp.float32).reshape(1, -1)
    return wq, bq


# ------------------------------- Pallas kernels --------------------------------
def _epilogue(y, nonlinear, norm):
    # All epilogue math stays in f32 (v5e has no bf16 VPU/EUP path).
    if nonlinear:
        y = jnp.maximum(y, 0.0)
    if norm:
        # l2norm: y / max(||y||, 1e-10)  <=>  y * rsqrt(max(||y||^2, 1e-20)).
        sq = jnp.sum(y * y, axis=-1, keepdims=True)
        y = y * lax.rsqrt(jnp.maximum(sq, 1e-20))
    return y


def _encoder_embed_kernel(x_ref, w_ref, b_ref, o_ref, *, nonlinear, norm,
                          compute_dtype):
    # x_ref: (TB, Din)   input dtype (f32), streamed per grid step
    # w_ref: (Din, Dout) compute dtype (bf16), VMEM-resident across the grid
    # b_ref: (1, Dout)   f32, VMEM-resident
    # o_ref: (TB, Dout)  output dtype (bf16); last dim == full array dim
    x = x_ref[...].astype(compute_dtype)                 # cast in-kernel (no HBM pass)
    y = jnp.dot(x, w_ref[...], preferred_element_type=jnp.float32)
    y = y + b_ref[...]
    y = _epilogue(y, nonlinear, norm)
    o_ref[...] = y.astype(o_ref.dtype)


def _encoder_passthrough_kernel(x_ref, o_ref, *, nonlinear, norm):
    # is_embed == False path: relu / l2norm directly on the features.
    y = x_ref[...].astype(jnp.float32)
    y = _epilogue(y, nonlinear, norm)
    o_ref[...] = y.astype(o_ref.dtype)


# --------------------------------- wrapper ------------------------------------
def encoder_forward(fts, weight_t=None, bias=None, *, is_embed=True,
                    nonlinear=True, norm=True,
                    compute_dtype=jnp.bfloat16,
                    out_dtype=jnp.bfloat16,
                    row_tile=1024):
    """fts: (batch, ..., Din) -> (batch, ..., Dout).

    weight_t is the linear weight pre-transposed to (Din, Dout) so the kernel
    computes x @ W + b directly on the MXU. weight_t/bias may be pre-prepared
    via prepare_encoder_params (bf16 W, (1, Dout) f32 bias) to hoist the casts.
    """
    lead_shape = fts.shape[:-1]
    din = fts.shape[-1]
    x2d = fts.reshape(-1, din)                      # flatten leading dims (a view)
    b_rows = x2d.shape[0]

    if is_embed:
        assert weight_t is not None and bias is not None
        assert weight_t.shape[0] == din
        dout = weight_t.shape[1]
    else:
        dout = din

    tb = _choose_row_tile(b_rows, din, dout, row_tile)
    grid = (pl.cdiv(b_rows, tb),)                   # ragged last block handled by Pallas

    compiler_params = pltpu.CompilerParams(
        dimension_semantics=("parallel",),          # shards row tiles across TCs on v7x;
    )                                               # no-op on v5e/v6e, harmless.

    if is_embed:
        wq = weight_t if weight_t.dtype == compute_dtype else weight_t.astype(compute_dtype)
        bq = bias.astype(jnp.float32).reshape(1, dout) if bias.ndim == 1 else bias

        kernel = functools.partial(_encoder_embed_kernel, nonlinear=nonlinear,
                                   norm=norm, compute_dtype=compute_dtype)
        out = pl.pallas_call(
            kernel,
            out_shape=jax.ShapeDtypeStruct((b_rows, dout), out_dtype),
            grid=grid,
            in_specs=[
                # x spec: add pipeline_mode=pl.Buffered(3) only if a profile
                # shows exposed DMA at large tb; default double-buffer is fine.
                pl.BlockSpec((tb, din), lambda i: (i, 0)),      # streamed rows
                pl.BlockSpec((din, dout), lambda i: (0, 0)),    # resident weight
                pl.BlockSpec((1, dout), lambda i: (0, 0)),      # resident bias
            ],
            out_specs=pl.BlockSpec((tb, dout), lambda i: (i, 0)),
            compiler_params=compiler_params,
        )(x2d, wq, bq)
    else:
        kernel = functools.partial(_encoder_passthrough_kernel,
                                   nonlinear=nonlinear, norm=norm)
        out = pl.pallas_call(
            kernel,
            out_shape=jax.ShapeDtypeStruct((b_rows, din), out_dtype),
            grid=grid,
            in_specs=[pl.BlockSpec((tb, din), lambda i: (i, 0))],
            out_specs=pl.BlockSpec((tb, din), lambda i: (i, 0)),
            compiler_params=compiler_params,
        )(x2d)

    # TODO(synk): training-mode dropout would use pltpu.prng_seed + prng_random_bits;
    # nn.Dropout is the identity at inference, so nothing to do here.
    return out.reshape(*lead_shape, dout)


# --------------------------------- reference -----------------------------------
def encoder_reference(fts, weight_t, bias, *, is_embed=True, nonlinear=True,
                      norm=True, compute_dtype=jnp.bfloat16):
    y = fts
    if is_embed:
        y = jnp.dot(y.astype(compute_dtype), weight_t.astype(compute_dtype),
                    preferred_element_type=jnp.float32) + bias.astype(jnp.float32)
    else:
        y = y.astype(jnp.float32)
    if nonlinear:
        y = jnp.maximum(y, 0.0)
    if norm:
        sq = jnp.sum(y * y, axis=-1, keepdims=True)
        y = y * lax.rsqrt(jnp.maximum(sq, 1e-20))
    return y


# ----------------------------------- main --------------------------------------
if __name__ == "__main__":
    cfg = EncoderConfig()
    din = sum(cfg.dim_fts)     # 32
    dout = cfg.dim_embed       # 32

    key = jax.random.PRNGKey(0)
    k_x, k_w, k_b = jax.random.split(key, 3)

    # (batch, seq, sum(dim_fts)); flattened rows = 1200 with the default
    # row_tile=1024 -> grid of 2 steps with a ragged 176-row last block, so the
    # unpadded-rows / masked-last-block path is exercised. Still tiny (~150 KB).
    fts = jax.random.normal(k_x, (4, 300, din), dtype=jnp.float32)
    weight_t = (jax.random.normal(k_w, (din, dout), dtype=jnp.float32)
                * (1.0 / jnp.sqrt(din)))
    bias = jax.random.normal(k_b, (dout,), dtype=jnp.float32) * 0.01

    # One-time parameter prep (hoisted out of the per-call path).
    wq, bq = prepare_encoder_params(weight_t, bias, compute_dtype=jnp.bfloat16)

    out = encoder_forward(fts, wq, bq,
                          is_embed=cfg.is_embed,
                          nonlinear=cfg.nonlinear,
                          norm=cfg.norm,
                          compute_dtype=jnp.bfloat16,
                          out_dtype=jnp.bfloat16)
    out = jax.block_until_ready(out)

    ref = encoder_reference(fts, weight_t, bias,
                            is_embed=cfg.is_embed,
                            nonlinear=cfg.nonlinear,
                            norm=cfg.norm,
                            compute_dtype=jnp.bfloat16)

    assert out.shape == (4, 300, dout), out.shape
    out_f32 = out.astype(jnp.float32)
    err = jnp.max(jnp.abs(out_f32 - ref))
    assert jnp.allclose(out_f32, ref, atol=2e-2, rtol=2e-2), f"max abs err {err}"

    print("KERNEL_OK")
</pallas_src>

<mosaic_0001>
module attributes {stable_mosaic.version = 11 : i64} {
  func.func @_encoder_embed_kernel(%arg0: i32, %arg1: memref<1024x32xf32, #tpu.memory_space<vmem>>, %arg2: memref<32x32xbf16, #tpu.memory_space<vmem>>, %arg3: memref<1x32xf32, #tpu.memory_space<vmem>>, %arg4: memref<1024x32xbf16, #tpu.memory_space<vmem>>) attributes {dimension_semantics = [#tpu.dimension_semantics<parallel>], iteration_bounds = array<i64: 2>, scalar_prefetch = 0 : i64, scratch_operands = 0 : i64, tpu.core_type = #tpu.core_type<tc>, window_params = [{transform_indices = @transform_0, window_bounds = array<i64: 1024, 32>}, {pipeline_mode = #tpu.pipeline_mode<synchronous>, transform_indices = @transform_1, window_bounds = array<i64: 32, 32>}, {pipeline_mode = #tpu.pipeline_mode<synchronous>, transform_indices = @transform_2, window_bounds = array<i64: 1, 32>}, {transform_indices = @transform_3, window_bounds = array<i64: 1024, 32>}]} {
    %c0 = arith.constant 0 : index
    %c0_0 = arith.constant 0 : index
    %0 = vector.load %arg1[%c0, %c0_0] : memref<1024x32xf32, #tpu.memory_space<vmem>>, vector<1024x32xf32>
    %1 = arith.truncf %0 : vector<1024x32xf32> to vector<1024x32xbf16>
    %c0_1 = arith.constant 0 : index
    %c0_2 = arith.constant 0 : index
    %2 = vector.load %arg2[%c0_1, %c0_2] : memref<32x32xbf16, #tpu.memory_space<vmem>>, vector<32x32xbf16>
    %cst = arith.constant dense<0.000000e+00> : vector<1024x32xf32>
    %3 = tpu.matmul %1, %2, %cst {dimension_numbers = #tpu.dot_dimension_numbers<[1], [0], [0], [1], [0, 0, 1, 1], [], []>} : vector<1024x32xbf16>, vector<32x32xbf16>, vector<1024x32xf32> -> vector<1024x32xf32>
    %c0_3 = arith.constant 0 : index
    %c0_4 = arith.constant 0 : index
    %4 = vector.load %arg3[%c0_3, %c0_4] : memref<1x32xf32, #tpu.memory_space<vmem>>, vector<1x32xf32>
    %5 = vector.broadcast %4 : vector<1x32xf32> to vector<1024x32xf32>
    %6 = arith.addf %3, %5 : vector<1024x32xf32>
    %cst_5 = arith.constant 0.000000e+00 : f32
    %7 = vector.broadcast %cst_5 : f32 to vector<1024x32xf32>
    %8 = arith.maximumf %6, %7 : vector<1024x32xf32>
    %9 = arith.mulf %8, %8 : vector<1024x32xf32>
    %cst_6 = arith.constant dense<0.000000e+00> : vector<1024xf32>
    %10 = vector.multi_reduction <add>, %9, %cst_6 [1] : vector<1024x32xf32> to vector<1024xf32>
    %11 = vector.shape_cast %10 : vector<1024xf32> to vector<1024x1xf32>
    %cst_7 = arith.constant 9.99999968E-21 : f32
    %12 = vector.broadcast %cst_7 : f32 to vector<1024x1xf32>
    %13 = arith.maximumf %11, %12 : vector<1024x1xf32>
    %14 = math.rsqrt %13 : vector<1024x1xf32>
    %15 = vector.broadcast %14 : vector<1024x1xf32> to vector<1024x32xf32>
    %16 = arith.mulf %8, %15 : vector<1024x32xf32>
    %17 = arith.truncf %16 : vector<1024x32xf32> to vector<1024x32xbf16>
    %c0_8 = arith.constant 0 : index
    %c0_9 = arith.constant 0 : index
    %18 = vector.load %arg4[%c0_8, %c0_9] : memref<1024x32xbf16, #tpu.memory_space<vmem>>, vector<1024x32xbf16>
    tpu.vector_store %arg4[%c0_8, %c0_9], %17 {strides = array<i32>} : memref<1024x32xbf16, #tpu.memory_space<vmem>>, vector<1024x32xbf16>,
    return
  }
  func.func @transform_0(%arg0: i32) -> (i32, i32) {
    %c0_i32 = arith.constant 0 : i32
    %c0_i32_0 = arith.constant 0 : i32
    return %arg0, %c0_i32 : i32, i32
  }
  func.func @transform_1(%arg0: i32) -> (i32, i32) {
    %c0_i32 = arith.constant 0 : i32
    %c0_i32_0 = arith.constant 0 : i32
    %c0_i32_1 = arith.constant 0 : i32
    return %c0_i32, %c0_i32_0 : i32, i32
  }
  func.func @transform_2(%arg0: i32) -> (i32, i32) {
    %c0_i32 = arith.constant 0 : i32
    %c0_i32_0 = arith.constant 0 : i32
    %c0_i32_1 = arith.constant 0 : i32
    return %c0_i32, %c0_i32_0 : i32, i32
  }
  func.func @transform_3(%arg0: i32) -> (i32, i32) {
    %c0_i32 = arith.constant 0 : i32
    %c0_i32_0 = arith.constant 0 : i32
    return %arg0, %c0_i32 : i32, i32
  }
}

</mosaic_0001>

<llo_original>
// kernel: tpu_custom_call.1
$region0: #{tpu_custom_call.1}
  #allocation0 [shape = 'u32[]', space=smem, size = 0x4, offset = 0x4, fixed_abs, tag = 'smem constant byte address 0x4 - core index']
  #allocation1 [shape = 'u32[144,128]{1,0:T(1,128)}', space=vmem, size = 0x12000, scoped, tag = 'internal scratch']
  %s0 = inlined_call_operand.vmem [shape: f32[1200,32], index: 0, kind: input, shape index: {}]
  %s1 = inlined_call_operand.vmem [shape: bf16[32,32], index: 1, kind: input, shape index: {}]
  %s2 = inlined_call_operand.vmem [shape: f32[1,32], index: 2, kind: input, shape index: {}]
  %s3 = inlined_call_operand.vmem [shape: bf16[1200,32], index: 3, kind: output, shape index: {}]
  %s4 = sld [smem:[#allocation0]]
  $region89: #{tpu_custom_call.1} parent=0
    _
  %s6 = ssub.s32 1, %s4
  %s7 = scalar_select 0, %s6, %s4
  $region1: #{tpu_custom_call.1} parent=0
    #allocation2 [shape = 'u8[524288]{0}', space=vmem, size = 0x80000, scoped, tag = 'output window, operand 0']
    loop: start=0, step=1, limit=4
    $region2: #{tpu_custom_call.1} parent=1 // loop_pre_header
      _
    $region3: #{tpu_custom_call.1} parent=1 // loop_header
      %s9 = sphi 0, %s13
      %p10 = scmp.ge.s32.totalorder %s9, 4
      %s19 = sphi 0, %s21
      %s22 = sphi 0, %s19
      %s23 = sphi 0, %s22
      %s39 = sphi 0, %s23
      %s43 = sphi 0, %s43
      %s45 = sphi 0, %s43
      %s46 = sphi 0, %s45
      %s60 = sphi 0, %s46
      %s64 = sphi 0, %s64
      %s66 = sphi 0, %s64
      %s67 = sphi 0, %s66
      %s81 = sphi 0, %s67
      %s87 = sphi 0, %s89
      %s90 = sphi 0, %s87
      %s91 = sphi 0, %s90
      %s107 = sphi 0, %s91
    $region4: #{tpu_custom_call.1} parent=1 // loop_header_branch
      %12 = sbr.rel (%p10) target = $region8
    $region5: #{tpu_custom_call.1} parent=1 // loop_body
      %s14 = ssub.s32 %s9, 1
      %s15 = ssub.s32 %s9, 2
      %s16 = sadd.s32 %s9, 1
      %s17 = ssub.s32 %s9, %s16
      %p18 = scmp.eq.s32.totalorder %s17, 0
      %s20 = sadd.s32 %s19, 1
      %s21 = scalar_select %p18, %s19, %s20
      %p24 = pneg %p18
      %p25 = scmp.eq.s32.totalorder %s9, 1
      %p26 = por %p24, %p25
      %p27 = scmp.ne.s32.totalorder %s19, %s22
      %p28 = scmp.eq.s32.totalorder %s9, 0
      %p29 = por %p27, %p28
      %p30 = scmp.ne.s32.totalorder %s19, %s22
      %p31 = scmp.eq.s32.totalorder %s14, 1
      %p32 = por %p30, %p31
      %p33 = scmp.ne.s32.totalorder %s22, %s23
      %p34 = scmp.eq.s32.totalorder %s14, 0
      %p35 = por %p33, %p34
      %p36 = scmp.ne.s32.totalorder %s22, %s23
      %p37 = scmp.eq.s32.totalorder %s15, 1
      %p38 = por %p36, %p37
      %p40 = scmp.ne.s32.totalorder %s23, %s39
      %p41 = scmp.eq.s32.totalorder %s15, 0
      %p42 = por %p40, %p41
      %s44 = sadd.s32 %s43, 1
      %p47 = scmp.eq.s32.totalorder %s9, 1
      %p48 = scmp.ne.s32.totalorder %s43, %s45
      %p49 = scmp.eq.s32.totalorder %s9, 0
      %p50 = por %p48, %p49
      %p51 = scmp.ne.s32.totalorder %s43, %s45
      %p52 = scmp.eq.s32.totalorder %s14, 1
      %p53 = por %p51, %p52
      %p54 = scmp.ne.s32.totalorder %s45, %s46
      %p55 = scmp.eq.s32.totalorder %s14, 0
      %p56 = por %p54, %p55
      %p57 = scmp.ne.s32.totalorder %s45, %s46
      %p58 = scmp.eq.s32.totalorder %s15, 1
      %p59 = por %p57, %p58
      %p61 = scmp.ne.s32.totalorder %s46, %s60
      %p62 = scmp.eq.s32.totalorder %s15, 0
      %p63 = por %p61, %p62
      %s65 = sadd.s32 %s64, 1
      %p68 = scmp.eq.s32.totalorder %s9, 1
      %p69 = scmp.ne.s32.totalorder %s64, %s66
      %p70 = scmp.eq.s32.totalorder %s9, 0
      %p71 = por %p69, %p70
      %p72 = scmp.ne.s32.totalorder %s64, %s66
      %p73 = scmp.eq.s32.totalorder %s14, 1
      %p74 = por %p72, %p73
      %p75 = scmp.ne.s32.totalorder %s66, %s67
      %p76 = scmp.eq.s32.totalorder %s14, 0
      %p77 = por %p75, %p76
      %p78 = scmp.ne.s32.totalorder %s66, %s67
      %p79 = scmp.eq.s32.totalorder %s15, 1
      %p80 = por %p78, %p79
      %p82 = scmp.ne.s32.totalorder %s67, %s81
      %p83 = scmp.eq.s32.totalorder %s15, 0
      %p84 = por %p82, %p83
      %s85 = ssub.s32 %s9, %s16
      %p86 = scmp.eq.s32.totalorder %s85, 0
      %s88 = sadd.s32 %s87, 1
      %s89 = scalar_select %p86, %s87, %s88
      %p92 = pneg %p86
      %p93 = scmp.eq.s32.totalorder %s9, 1
      %p94 = por %p92, %p93
      %p95 = scmp.ne.s32.totalorder %s87, %s90
      %p96 = scmp.eq.s32.totalorder %s9, 0
      %p97 = por %p95, %p96
      %p98 = scmp.ne.s32.totalorder %s87, %s90
      %p99 = scmp.eq.s32.totalorder %s14, 1
      %p100 = por %p98, %p99
      %p101 = scmp.ne.s32.totalorder %s90, %s91
      %p102 = scmp.eq.s32.totalorder %s14, 0
      %p103 = por %p101, %p102
      %p104 = scmp.ne.s32.totalorder %s90, %s91
      %p105 = scmp.eq.s32.totalorder %s15, 1
      %p106 = por %p104, %p105
      %p108 = scmp.ne.s32.totalorder %s91, %s107
      %p109 = scmp.eq.s32.totalorder %s15, 0
      %p110 = por %p108, %p109
      %p111 = scmp.le.s32.totalorder 1, %s9
      %p112 = scmp.lt.s32.totalorder %s9, 3
      %p113 = pnand %p111, %p112
      %p114 = pneg %p113
      // Predicated region
      $region9: #{tpu_custom_call.1} parent=5 // pred_check
        _
      $region10: #{tpu_custom_call.1} parent=5 // pred_check_branch
        %116 = sbr.rel (%p113) target = $region12
      $region11: #{tpu_custom_call.1} parent=5 // pred_region
        %s117 = ssub.s32 %s9, 1
        // Predicated region
        $region13: #{tpu_custom_call.1} parent=11 // pred_check
          %p118 = pneg %p56
        $region14: #{tpu_custom_call.1} parent=11 // pred_check_branch
          %120 = sbr.rel (%p118) target = $region16
        $region15: #{tpu_custom_call.1} parent=11 // pred_region
          _
        $region16: #{tpu_custom_call.1} parent=11 // pred_fallthru
          _
        // Predicated region
        $region17: #{tpu_custom_call.1} parent=11 // pred_check
          %p121 = pneg %p77
        $region18: #{tpu_custom_call.1} parent=11 // pred_check_branch
          %123 = sbr.rel (%p121) target = $region20
        $region19: #{tpu_custom_call.1} parent=11 // pred_region
          _
        $region20: #{tpu_custom_call.1} parent=11 // pred_fallthru
          _
      $region12: #{tpu_custom_call.1} parent=5 // pred_fallthru
        _
      %p124 = scmp.lt.s32.totalorder %s9, 2
      // Predicated region
      $region21: #{tpu_custom_call.1} parent=5 // pred_check
        %p125 = pneg %p124
      $region22: #{tpu_custom_call.1} parent=5 // pred_check_branch
        %127 = sbr.rel (%p125) target = $region24
      $region23: #{tpu_custom_call.1} parent=5 // pred_region
        // Predicated region
        $region25: #{tpu_custom_call.1} parent=23 // pred_check
          %p128 = pneg %p29
        $region26: #{tpu_custom_call.1} parent=23 // pred_check_branch
          %130 = sbr.rel (%p128) target = $region28
        $region27: #{tpu_custom_call.1} parent=23 // pred_region
          %s131 = smul.u32 128, %s9
          %s132 = ssub.s32 150, %s131
          %p133 = scmp.lt.s32.totalorder %s132, 128
          %s134 = scalar_select %p133, %s132, 128
          %s135 = smul.u32 128, %s134
          %p136 = scmp.lt.s32.totalorder %s131, 149
          %s137 = scalar_select %p136, %s131, 149
          %s138 = smul.addr %s137, 8
          %s139 = scalar_lea.vmem %s0, %s138
          %s140 = smul.u32 128, %s9
          %s141 = ssub.s32 150, %s140
          %p142 = scmp.lt.s32.totalorder %s141, 128
          %s143 = scalar_select %p142, %s141, 128
          %s144 = smul.u32 128, %s143
        $region28: #{tpu_custom_call.1} parent=23 // pred_fallthru
          _
      $region24: #{tpu_custom_call.1} parent=5 // pred_fallthru
        _
      %p145 = scmp.le.s32.totalorder 1, %s9
      %p146 = scmp.lt.s32.totalorder %s9, 3
      %p147 = pnand %p145, %p146
      %p148 = pneg %p147
      // Predicated region
      $region29: #{tpu_custom_call.1} parent=5 // pred_check
        _
      $region30: #{tpu_custom_call.1} parent=5 // pred_check_branch
        %150 = sbr.rel (%p147) target = $region32
      $region31: #{tpu_custom_call.1} parent=5 // pred_region
        %s151 = ssub.s32 %s9, 1
        %s152 = smul.u32 128, %s14
        %s153 = ssub.s32 150, %s152
        %p154 = scmp.lt.s32.totalorder %s153, 128
        %s155 = scalar_select %p154, %s153, 128
        %s156 = smul.u32 128, %s155
        %p157 = scmp.lt.s32.totalorder %s152, 149
        %s158 = scalar_select %p157, %s152, 149
        %s159 = smul.addr %s158, 8
        %s160 = scalar_lea.vmem %s0, %s159
        %p161 = pneg %p35
        %p162 = pneg %p32
        %p163 = pneg %p56
        %p164 = pneg %p53
        %p165 = pneg %p77
        %p166 = pneg %p74
        %p167 = pneg %p103
        %p168 = pneg %p100
        %s169 = sand.u32 %s90, 1
        %s170 = sand.u32 %s90, 1
        %s171 = smul.addr %s170, 512
        %s172 = scalar_lea.vmem [#allocation2], %s171
        %s173 = smul.u32 128, %s14
        %s174 = ssub.s32 150, %s173
        %p175 = scmp.lt.s32.totalorder %s174, 128
        %s176 = scalar_select %p175, %s174, 128
        %s177 = smul.u32 128, %s176
        %p178 = scmp.lt.s32.totalorder %s173, 149
        %s179 = scalar_select %p178, %s173, 149
        %s180 = smul.addr %s179, 8
        %s181 = scalar_lea.vmem %s0, %s180
        %s182 = smul.u32 128, %s14
        %s183 = ssub.s32 150, %s182
        %p184 = scmp.lt.s32.totalorder %s183, 128
        %s185 = scalar_select %p184, %s183, 128
        %s186 = smul.u32 128, %s185
        %s187 = smul.u32 128, %s14
        %s188 = ssub.s32 150, %s187
        %p189 = scmp.lt.s32.totalorder %s188, 128
        %s190 = scalar_select %p189, %s188, 128
        %s191 = smul.u32 64, %s190
        %v193 = vld [vmem:[%s181] sm:$0xff]
        %v194 = vld [vmem:[%s181 + $0x8] sm:$0xff]
        %v195 = vld [vmem:[%s181 + $0x10] sm:$0xff]
        %v196 = vld [vmem:[%s181 + $0x18] sm:$0xff]
        %v197 = vld [vmem:[%s181 + $0x20] sm:$0xff]
        %v198 = vld [vmem:[%s181 + $0x28] sm:$0xff]
        %v199 = vld [vmem:[%s181 + $0x30] sm:$0xff]
        %v200 = vld [vmem:[%s181 + $0x38] sm:$0xff]
        %v201 = vld [vmem:[%s181 + $0x40] sm:$0xff]
        %v202 = vld [vmem:[%s181 + $0x48] sm:$0xff]
        %v203 = vld [vmem:[%s181 + $0x50] sm:$0xff]
        %v204 = vld [vmem:[%s181 + $0x58] sm:$0xff]
        %v205 = vld [vmem:[%s181 + $0x60] sm:$0xff]
        %v206 = vld [vmem:[%s181 + $0x68] sm:$0xff]
        %v207 = vld [vmem:[%s181 + $0x70] sm:$0xff]
        %v208 = vld [vmem:[%s181 + $0x78] sm:$0xff]
        %v209 = vld [vmem:[%s181 + $0x80] sm:$0xff]
        %v210 = vld [vmem:[%s181 + $0x88] sm:$0xff]
        %v211 = vld [vmem:[%s181 + $0x90] sm:$0xff]
        %v212 = vld [vmem:[%s181 + $0x98] sm:$0xff]
        %v213 = vld [vmem:[%s181 + $0xa0] sm:$0xff]
        %v214 = vld [vmem:[%s181 + $0xa8] sm:$0xff]
        %v215 = vld [vmem:[%s181 + $0xb0] sm:$0xff]
        %v216 = vld [vmem:[%s181 + $0xb8] sm:$0xff]
        %v217 = vld [vmem:[%s181 + $0xc0] sm:$0xff]
        %v218 = vld [vmem:[%s181 + $0xc8] sm:$0xff]
        %v219 = vld [vmem:[%s181 + $0xd0] sm:$0xff]
        %v220 = vld [vmem:[%s181 + $0xd8] sm:$0xff]
        %v221 = vld [vmem:[%s181 + $0xe0] sm:$0xff]
        %v222 = vld [vmem:[%s181 + $0xe8] sm:$0xff]
        %v223 = vld [vmem:[%s181 + $0xf0] sm:$0xff]
        %v224 = vld [vmem:[%s181 + $0xf8] sm:$0xff]
        %v225 = vld [vmem:[%s181 + $0x100] sm:$0xff]
        %v226 = vld [vmem:[%s181 + $0x108] sm:$0xff]
        %v227 = vld [vmem:[%s181 + $0x110] sm:$0xff]
        %v228 = vld [vmem:[%s181 + $0x118] sm:$0xff]
        %v229 = vld [vmem:[%s181 + $0x120] sm:$0xff]
        %v230 = vld [vmem:[%s181 + $0x128] sm:$0xff]
        %v231 = vld [vmem:[%s181 + $0x130] sm:$0xff]
        %v232 = vld [vmem:[%s181 + $0x138] sm:$0xff]
        %v233 = vld [vmem:[%s181 + $0x140] sm:$0xff]
        %v234 = vld [vmem:[%s181 + $0x148] sm:$0xff]
        %v235 = vld [vmem:[%s181 + $0x150] sm:$0xff]
        %v236 = vld [vmem:[%s181 + $0x158] sm:$0xff]
        %v237 = vld [vmem:[%s181 + $0x160] sm:$0xff]
        %v238 = vld [vmem:[%s181 + $0x168] sm:$0xff]
        %v239 = vld [vmem:[%s181 + $0x170] sm:$0xff]
        %v240 = vld [vmem:[%s181 + $0x178] sm:$0xff]
        %v241 = vld [vmem:[%s181 + $0x180] sm:$0xff]
        %v242 = vld [vmem:[%s181 + $0x188] sm:$0xff]
        %v243 = vld [vmem:[%s181 + $0x190] sm:$0xff]
        %v244 = vld [vmem:[%s181 + $0x198] sm:$0xff]
        %v245 = vld [vmem:[%s181 + $0x1a0] sm:$0xff]
        %v246 = vld [vmem:[%s181 + $0x1a8] sm:$0xff]
        %v247 = vld [vmem:[%s181 + $0x1b0] sm:$0xff]
        %v248 = vld [vmem:[%s181 + $0x1b8] sm:$0xff]
        %v249 = vld [vmem:[%s181 + $0x1c0] sm:$0xff]
        %v250 = vld [vmem:[%s181 + $0x1c8] sm:$0xff]
        %v251 = vld [vmem:[%s181 + $0x1d0] sm:$0xff]
        %v252 = vld [vmem:[%s181 + $0x1d8] sm:$0xff]
        %v253 = vld [vmem:[%s181 + $0x1e0] sm:$0xff]
        %v254 = vld [vmem:[%s181 + $0x1e8] sm:$0xff]
        %v255 = vld [vmem:[%s181 + $0x1f0] sm:$0xff]
        %v256 = vld [vmem:[%s181 + $0x1f8] sm:$0xff]
        %v257 = vld [vmem:[%s181 + $0x200] sm:$0xff]
        %v258 = vld [vmem:[%s181 + $0x208] sm:$0xff]
        %v259 = vld [vmem:[%s181 + $0x210] sm:$0xff]
        %v260 = vld [vmem:[%s181 + $0x218] sm:$0xff]
        %v261 = vld [vmem:[%s181 + $0x220] sm:$0xff]
        %v262 = vld [vmem:[%s181 + $0x228] sm:$0xff]
        %v263 = vld [vmem:[%s181 + $0x230] sm:$0xff]
        %v264 = vld [vmem:[%s181 + $0x238] sm:$0xff]
        %v265 = vld [vmem:[%s181 + $0x240] sm:$0xff]
        %v266 = vld [vmem:[%s181 + $0x248] sm:$0xff]
        %v267 = vld [vmem:[%s181 + $0x250] sm:$0xff]
        %v268 = vld [vmem:[%s181 + $0x258] sm:$0xff]
        %v269 = vld [vmem:[%s181 + $0x260] sm:$0xff]
        %v270 = vld [vmem:[%s181 + $0x268] sm:$0xff]
        %v271 = vld [vmem:[%s181 + $0x270] sm:$0xff]
        %v272 = vld [vmem:[%s181 + $0x278] sm:$0xff]
        %v273 = vld [vmem:[%s181 + $0x280] sm:$0xff]
        %v274 = vld [vmem:[%s181 + $0x288] sm:$0xff]
        %v275 = vld [vmem:[%s181 + $0x290] sm:$0xff]
        %v276 = vld [vmem:[%s181 + $0x298] sm:$0xff]
        %v277 = vld [vmem:[%s181 + $0x2a0] sm:$0xff]
        %v278 = vld [vmem:[%s181 + $0x2a8] sm:$0xff]
        %v279 = vld [vmem:[%s181 + $0x2b0] sm:$0xff]
        %v280 = vld [vmem:[%s181 + $0x2b8] sm:$0xff]
        %v281 = vld [vmem:[%s181 + $0x2c0] sm:$0xff]
        %v282 = vld [vmem:[%s181 + $0x2c8] sm:$0xff]
        %v283 = vld [vmem:[%s181 + $0x2d0] sm:$0xff]
        %v284 = vld [vmem:[%s181 + $0x2d8] sm:$0xff]
        %v285 = vld [vmem:[%s181 + $0x2e0] sm:$0xff]
        %v286 = vld [vmem:[%s181 + $0x2e8] sm:$0xff]
        %v287 = vld [vmem:[%s181 + $0x2f0] sm:$0xff]
        %v288 = vld [vmem:[%s181 + $0x2f8] sm:$0xff]
        %v289 = vld [vmem:[%s181 + $0x300] sm:$0xff]
        %v290 = vld [vmem:[%s181 + $0x308] sm:$0xff]
        %v291 = vld [vmem:[%s181 + $0x310] sm:$0xff]
        %v292 = vld [vmem:[%s181 + $0x318] sm:$0xff]
        %v293 = vld [vmem:[%s181 + $0x320] sm:$0xff]
        %v294 = vld [vmem:[%s181 + $0x328] sm:$0xff]
        %v295 = vld [vmem:[%s181 + $0x330] sm:$0xff]
        %v296 = vld [vmem:[%s181 + $0x338] sm:$0xff]
        %v297 = vld [vmem:[%s181 + $0x340] sm:$0xff]
        %v298 = vld [vmem:[%s181 + $0x348] sm:$0xff]
        %v299 = vld [vmem:[%s181 + $0x350] sm:$0xff]
        %v300 = vld [vmem:[%s181 + $0x358] sm:$0xff]
        %v301 = vld [vmem:[%s181 + $0x360] sm:$0xff]
        %v302 = vld [vmem:[%s181 + $0x368] sm:$0xff]
        %v303 = vld [vmem:[%s181 + $0x370] sm:$0xff]
        %v304 = vld [vmem:[%s181 + $0x378] sm:$0xff]
        %v305 = vld [vmem:[%s181 + $0x380] sm:$0xff]
        %v306 = vld [vmem:[%s181 + $0x388] sm:$0xff]
        %v307 = vld [vmem:[%s181 + $0x390] sm:$0xff]
        %v308 = vld [vmem:[%s181 + $0x398] sm:$0xff]
        %v309 = vld [vmem:[%s181 + $0x3a0] sm:$0xff]
        %v310 = vld [vmem:[%s181 + $0x3a8] sm:$0xff]
        %v311 = vld [vmem:[%s181 + $0x3b0] sm:$0xff]
        %v312 = vld [vmem:[%s181 + $0x3b8] sm:$0xff]
        %v313 = vld [vmem:[%s181 + $0x3c0] sm:$0xff]
        %v314 = vld [vmem:[%s181 + $0x3c8] sm:$0xff]
        %v315 = vld [vmem:[%s181 + $0x3d0] sm:$0xff]
        %v316 = vld [vmem:[%s181 + $0x3d8] sm:$0xff]
        %v317 = vld [vmem:[%s181 + $0x3e0] sm:$0xff]
        %v318 = vld [vmem:[%s181 + $0x3e8] sm:$0xff]
        %v319 = vld [vmem:[%s181 + $0x3f0] sm:$0xff]
        %v320 = vld [vmem:[%s181 + $0x3f8] sm:$0xff]
        %v321 = vpack.c.bf16 %v194, %v193
        %v322 = vpack.c.bf16 %v196, %v195
        %v323 = vpack.c.bf16 %v198, %v197
        %v324 = vpack.c.bf16 %v200, %v199
        %v325 = vpack.c.bf16 %v202, %v201
        %v326 = vpack.c.bf16 %v204, %v203
        %v327 = vpack.c.bf16 %v206, %v205
        %v328 = vpack.c.bf16 %v208, %v207
        %v329 = vpack.c.bf16 %v210, %v209
        %v330 = vpack.c.bf16 %v212, %v211
        %v331 = vpack.c.bf16 %v214, %v213
        %v332 = vpack.c.bf16 %v216, %v215
        %v333 = vpack.c.bf16 %v218, %v217
        %v334 = vpack.c.bf16 %v220, %v219
        %v335 = vpack.c.bf16 %v222, %v221
        %v336 = vpack.c.bf16 %v224, %v223
        %v337 = vpack.c.bf16 %v226, %v225
        %v338 = vpack.c.bf16 %v228, %v227
        %v339 = vpack.c.bf16 %v230, %v229
        %v340 = vpack.c.bf16 %v232, %v231
        %v341 = vpack.c.bf16 %v234, %v233
        %v342 = vpack.c.bf16 %v236, %v235
        %v343 = vpack.c.bf16 %v238, %v237
        %v344 = vpack.c.bf16 %v240, %v239
        %v345 = vpack.c.bf16 %v242, %v241
        %v346 = vpack.c.bf16 %v244, %v243
        %v347 = vpack.c.bf16 %v246, %v245
        %v348 = vpack.c.bf16 %v248, %v247
        %v349 = vpack.c.bf16 %v250, %v249
        %v350 = vpack.c.bf16 %v252, %v251
        %v351 = vpack.c.bf16 %v254, %v253
        %v352 = vpack.c.bf16 %v256, %v255
        %v353 = vpack.c.bf16 %v258, %v257
        %v354 = vpack.c.bf16 %v260, %v259
        %v355 = vpack.c.bf16 %v262, %v261
        %v356 = vpack.c.bf16 %v264, %v263
        %v357 = vpack.c.bf16 %v266, %v265
        %v358 = vpack.c.bf16 %v268, %v267
        %v359 = vpack.c.bf16 %v270, %v269
        %v360 = vpack.c.bf16 %v272, %v271
        %v361 = vpack.c.bf16 %v274, %v273
        %v362 = vpack.c.bf16 %v276, %v275
        %v363 = vpack.c.bf16 %v278, %v277
        %v364 = vpack.c.bf16 %v280, %v279
        %v365 = vpack.c.bf16 %v282, %v281
        %v366 = vpack.c.bf16 %v284, %v283
        %v367 = vpack.c.bf16 %v286, %v285
        %v368 = vpack.c.bf16 %v288, %v287
        %v369 = vpack.c.bf16 %v290, %v289
        %v370 = vpack.c.bf16 %v292, %v291
        %v371 = vpack.c.bf16 %v294, %v293
        %v372 = vpack.c.bf16 %v296, %v295
        %v373 = vpack.c.bf16 %v298, %v297
        %v374 = vpack.c.bf16 %v300, %v299
        %v375 = vpack.c.bf16 %v302, %v301
        %v376 = vpack.c.bf16 %v304, %v303
        %v377 = vpack.c.bf16 %v306, %v305
        %v378 = vpack.c.bf16 %v308, %v307
        %v379 = vpack.c.bf16 %v310, %v309
        %v380 = vpack.c.bf16 %v312, %v311
        %v381 = vpack.c.bf16 %v314, %v313
        %v382 = vpack.c.bf16 %v316, %v315
        %v383 = vpack.c.bf16 %v318, %v317
        %v384 = vpack.c.bf16 %v320, %v319
        %v385 = vld [vmem:[%s1] sm:$0xf]
        %v386 = vld [vmem:[%s1 + $0x4] sm:$0xf]
        %v387 = vld [vmem:[%s1 + $0x8] sm:$0xf]
        %v388 = vld [vmem:[%s1 + $0xc] sm:$0xf]
        %v389 = vld [vmem:[%s2] sm:$0x1]
        %v391 = vlaneseq
        %v392 = vshrl.u32 %v391, 7
        %v393 = vsub.s32 0, %v392
        %v394 = vrot.slane %v389, %v393
        %v400 = vunpack.c.l.b16 %v385
        %v401 = vunpack.c.l.b16 %v386
        %v402 = vunpack.c.l.b16 %v387
        %v403 = vunpack.c.l.b16 %v388
        %v404 = vpack.c.b16 %v401, %v400
        %v405 = vpack.c.b16 %v403, %v402
        %vm408 = vcmask 261120
        %v410 = vsel %vm408, %v321, 0
        %v413 = vsel %vm408, %v322, 0
        %v416 = vsel %vm408, %v323, 0
        %v419 = vsel %vm408, %v324, 0
        %v422 = vsel %vm408, %v325, 0
        %v425 = vsel %vm408, %v326, 0
        %v428 = vsel %vm408, %v327, 0
        %v431 = vsel %vm408, %v328, 0
        %v434 = vsel %vm408, %v329, 0
        %v437 = vsel %vm408, %v330, 0
        %v440 = vsel %vm408, %v331, 0
        %v443 = vsel %vm408, %v332, 0
        %v446 = vsel %vm408, %v333, 0
        %v449 = vsel %vm408, %v334, 0
        %v452 = vsel %vm408, %v335, 0
        %v455 = vsel %vm408, %v336, 0
        %v458 = vsel %vm408, %v337, 0
        %v461 = vsel %vm408, %v338, 0
        %v464 = vsel %vm408, %v339, 0
        %v467 = vsel %vm408, %v340, 0
        %v470 = vsel %vm408, %v341, 0
        %v473 = vsel %vm408, %v342, 0
        %v476 = vsel %vm408, %v343, 0
        %v479 = vsel %vm408, %v344, 0
        %v482 = vsel %vm408, %v345, 0
        %v485 = vsel %vm408, %v346, 0
        %v488 = vsel %vm408, %v347, 0
        %v491 = vsel %vm408, %v348, 0
        %v494 = vsel %vm408, %v349, 0
        %v497 = vsel %vm408, %v350, 0
        %v500 = vsel %vm408, %v351, 0
        %v503 = vsel %vm408, %v352, 0
        %v506 = vsel %vm408, %v353, 0
        %v509 = vsel %vm408, %v354, 0
        %v512 = vsel %vm408, %v355, 0
        %v515 = vsel %vm408, %v356, 0
        %v518 = vsel %vm408, %v357, 0
        %v521 = vsel %vm408, %v358, 0
        %v524 = vsel %vm408, %v359, 0
        %v527 = vsel %vm408, %v360, 0
        %v530 = vsel %vm408, %v361, 0
        %v533 = vsel %vm408, %v362, 0
        %v536 = vsel %vm408, %v363, 0
        %v539 = vsel %vm408, %v364, 0
        %v542 = vsel %vm408, %v365, 0
        %v545 = vsel %vm408, %v366, 0
        %v548 = vsel %vm408, %v367, 0
        %v551 = vsel %vm408, %v368, 0
        %v554 = vsel %vm408, %v369, 0
        %v557 = vsel %vm408, %v370, 0
        %v560 = vsel %vm408, %v371, 0
        %v563 = vsel %vm408, %v372, 0
        %v566 = vsel %vm408, %v373, 0
        %v569 = vsel %vm408, %v374, 0
        %v572 = vsel %vm408, %v375, 0
        %v575 = vsel %vm408, %v376, 0
        %v578 = vsel %vm408, %v377, 0
        %v581 = vsel %vm408, %v378, 0
        %v584 = vsel %vm408, %v379, 0
        %v587 = vsel %vm408, %v380, 0
        %v590 = vsel %vm408, %v381, 0
        %v593 = vsel %vm408, %v382, 0
        %v596 = vsel %vm408, %v383, 0
        %v599 = vsel %vm408, %v384, 0
        %601 = vmatprep.subr.bf16.mxu0 0
        %602 = vmatpush1.bf16.msra.mxu0 %v404
        %603 = vmatprep.subr.bf16.mxu0 0
        %604 = vmatpush1.bf16.msra.mxu0 %v405
        %605 = vmatprep.subr.bf16.mxu0 0
        %606 = vmatpush1.bf16.msra.mxu0 0
        %607 = vmatprep.subr.bf16.mxu0 0
        %608 = vmatpush1.bf16.msra.mxu0 0
        %609 = vmatprep.subr.bf16.mxu0 0
        %610 = vmatpush1.bf16.msra.mxu0 0
        %611 = vmatprep.subr.bf16.mxu0 0
        %612 = vmatpush1.bf16.msra.mxu0 0
        %613 = vmatprep.subr.bf16.mxu0 0
        %614 = vmatpush1.bf16.msra.mxu0 0
        %615 = vmatprep.subr.bf16.mxu0 0
        %616 = vmatpush1.bf16.msra.mxu0 0
        %617 = vmatprep.subr.bf16.mxu0 0
        %618 = vmatpush1.bf16.msra.mxu0 0
        %619 = vmatprep.subr.bf16.mxu0 0
        %620 = vmatpush1.bf16.msra.mxu0 0
        %621 = vmatprep.subr.bf16.mxu0 0
        %622 = vmatpush1.bf16.msra.mxu0 0
        %623 = vmatprep.subr.bf16.mxu0 0
        %624 = vmatpush1.bf16.msra.mxu0 0
        %625 = vmatprep.subr.bf16.mxu0 0
        %626 = vmatpush1.bf16.msra.mxu0 0
        %627 = vmatprep.subr.bf16.mxu0 0
        %628 = vmatpush1.bf16.msra.mxu0 0
        %629 = vmatprep.subr.bf16.mxu0 0
        %630 = vmatpush1.bf16.msra.mxu0 0
        %631 = vmatprep.subr.bf16.mxu0 0
        %632 = vmatpush1.bf16.msra.mxu0 0
        %633 = vmatprep.mubr.bf16.mxu0 0
        %634 = vmatmul.mubr.bf16.gmra.mrb[0].mxu0 %v410
        %v635 = vpop.f32.mrb[0].mxu0
        %v636 = vadd.f32 %v394, %v635
        %v637 = vpop.f32.mrb[0].mxu0
        %v638 = vpop.f32.mrb[0].mxu0
        %v639 = vadd.f32 %v394, %v638
        %v640 = vpop.f32.mrb[0].mxu0
        %641 = vmatprep.mubr.bf16.mxu0 0
        %642 = vmatmul.mubr.bf16.gmra.mrb[0].mxu0 %v413
        %v643 = vpop.f32.mrb[0].mxu0
        %v644 = vadd.f32 %v394, %v643
        %v645 = vpop.f32.mrb[0].mxu0
        %v646 = vpop.f32.mrb[0].mxu0
        %v647 = vadd.f32 %v394, %v646
        %v648 = vpop.f32.mrb[0].mxu0
        %649 = vmatprep.mubr.bf16.mxu0 0
        %650 = vmatmul.mubr.bf16.gmra.mrb[0].mxu0 %v416
        %v651 = vpop.f32.mrb[0].mxu0
        %v652 = vadd.f32 %v394, %v651
        %v653 = vpop.f32.mrb[0].mxu0
        %v654 = vpop.f32.mrb[0].mxu0
        %v655 = vadd.f32 %v394, %v654
        %v656 = vpop.f32.mrb[0].mxu0
        %657 = vmatprep.mubr.bf16.mxu0 0
        %658 = vmatmul.mubr.bf16.gmra.mrb[0].mxu0 %v419
        %v659 = vpop.f32.mrb[0].mxu0
        %v660 = vadd.f32 %v394, %v659
        %v661 = vpop.f32.mrb[0].mxu0
        %v662 = vpop.f32.mrb[0].mxu0
        %v663 = vadd.f32 %v394, %v662
        %v664 = vpop.f32.mrb[0].mxu0
        %665 = vmatprep.mubr.bf16.mxu0 0
        %666 = vmatmul.mubr.bf16.gmra.mrb[0].mxu0 %v422
        %v667 = vpop.f32.mrb[0].mxu0
        %v668 = vadd.f32 %v394, %v667
        %v669 = vpop.f32.mrb[0].mxu0
        %v670 = vpop.f32.mrb[0].mxu0
        %v671 = vadd.f32 %v394, %v670
        %v672 = vpop.f32.mrb[0].mxu0
        %673 = vmatprep.mubr.bf16.mxu0 0
        %674 = vmatmul.mubr.bf16.gmra.mrb[0].mxu0 %v425
        %v675 = vpop.f32.mrb[0].mxu0
        %v676 = vadd.f32 %v394, %v675
        %v677 = vpop.f32.mrb[0].mxu0
        %v678 = vpop.f32.mrb[0].mxu0
        %v679 = vadd.f32 %v394, %v678
        %v680 = vpop.f32.mrb[0].mxu0
        %681 = vmatprep.mubr.bf16.mxu0 0
        %682 = vmatmul.mubr.bf16.gmra.mrb[0].mxu0 %v428
        %v683 = vpop.f32.mrb[0].mxu0
        %v684 = vadd.f32 %v394, %v683
        %v685 = vpop.f32.mrb[0].mxu0
        %v686 = vpop.f32.mrb[0].mxu0
        %v687 = vadd.f32 %v394, %v686
        %v688 = vpop.f32.mrb[0].mxu0
        %689 = vmatprep.mubr.bf16.mxu0 0
        %690 = vmatmul.mubr.bf16.gmra.mrb[0].mxu0 %v431
        %v691 = vpop.f32.mrb[0].mxu0
        %v692 = vadd.f32 %v394, %v691
        %v693 = vpop.f32.mrb[0].mxu0
        %v694 = vpop.f32.mrb[0].mxu0
        %v695 = vadd.f32 %v394, %v694
        %v696 = vpop.f32.mrb[0].mxu0
        %697 = vmatprep.mubr.bf16.mxu0 0
        %698 = vmatmul.mubr.bf16.gmra.mrb[0].mxu0 %v434
        %v699 = vpop.f32.mrb[0].mxu0
        %v700 = vadd.f32 %v394, %v699
        %v701 = vpop.f32.mrb[0].mxu0
        %v702 = vpop.f32.mrb[0].mxu0
        %v703 = vadd.f32 %v394, %v702
        %v704 = vpop.f32.mrb[0].mxu0
        %705 = vmatprep.mubr.bf16.mxu0 0
        %706 = vmatmul.mubr.bf16.gmra.mrb[0].mxu0 %v437
        %v707 = vpop.f32.mrb[0].mxu0
        %v708 = vadd.f32 %v394, %v707
        %v709 = vpop.f32.mrb[0].mxu0
        %v710 = vpop.f32.mrb[0].mxu0
        %v711 = vadd.f32 %v394, %v710
        %v712 = vpop.f32.mrb[0].mxu0
        %713 = vmatprep.mubr.bf16.mxu0 0
        %714 = vmatmul.mubr.bf16.gmra.mrb[0].mxu0 %v440
        %v715 = vpop.f32.mrb[0].mxu0
        %v716 = vadd.f32 %v394, %v715
        %v717 = vpop.f32.mrb[0].mxu0
        %v718 = vpop.f32.mrb[0].mxu0
        %v719 = vadd.f32 %v394, %v718
        %v720 = vpop.f32.mrb[0].mxu0
        %721 = vmatprep.mubr.bf16.mxu0 0
        %722 = vmatmul.mubr.bf16.gmra.mrb[0].mxu0 %v443
        %v723 = vpop.f32.mrb[0].mxu0
        %v724 = vadd.f32 %v394, %v723
        %v725 = vpop.f32.mrb[0].mxu0
        %v726 = vpop.f32.mrb[0].mxu0
        %v727 = vadd.f32 %v394, %v726
        %v728 = vpop.f32.mrb[0].mxu0
        %729 = vmatprep.mubr.bf16.mxu0 0
        %730 = vmatmul.mubr.bf16.gmra.mrb[0].mxu0 %v446
        %v731 = vpop.f32.mrb[0].mxu0
        %v732 = vadd.f32 %v394, %v731
        %v733 = vpop.f32.mrb[0].mxu0
        %v734 = vpop.f32.mrb[0].mxu0
        %v735 = vadd.f32 %v394, %v734
        %v736 = vpop.f32.mrb[0].mxu0
        %737 = vmatprep.mubr.bf16.mxu0 0
        %738 = vmatmul.mubr.bf16.gmra.mrb[0].mxu0 %v449
        %v739 = vpop.f32.mrb[0].mxu0
        %v740 = vadd.f32 %v394, %v739
        %v741 = vpop.f32.mrb[0].mxu0
        %v742 = vpop.f32.mrb[0].mxu0
        %v743 = vadd.f32 %v394, %v742
        %v744 = vpop.f32.mrb[0].mxu0
        %745 = vmatprep.mubr.bf16.mxu0 0
        %746 = vmatmul.mubr.bf16.gmra.mrb[0].mxu0 %v452
        %v747 = vpop.f32.mrb[0].mxu0
        %v748 = vadd.f32 %v394, %v747
        %v749 = vpop.f32.mrb[0].mxu0
        %v750 = vpop.f32.mrb[0].mxu0
        %v751 = vadd.f32 %v394, %v750
        %v752 = vpop.f32.mrb[0].mxu0
        %753 = vmatprep.mubr.bf16.mxu0 0
        %754 = vmatmul.mubr.bf16.gmra.mrb[0].mxu0 %v455
        %v755 = vpop.f32.mrb[0].mxu0
        %v756 = vadd.f32 %v394, %v755
        %v757 = vpop.f32.mrb[0].mxu0
        %v758 = vpop.f32.mrb[0].mxu0
        %v759 = vadd.f32 %v394, %v758
        %v760 = vpop.f32.mrb[0].mxu0
        %761 = vmatprep.mubr.bf16.mxu0 0
        %762 = vmatmul.mubr.bf16.gmra.mrb[0].mxu0 %v458
        %v763 = vpop.f32.mrb[0].mxu0
        %v764 = vadd.f32 %v394, %v763
        %v765 = vpop.f32.mrb[0].mxu0
        %v766 = vpop.f32.mrb[0].mxu0
        %v767 = vadd.f32 %v394, %v766
        %v768 = vpop.f32.mrb[0].mxu0
        %769 = vmatprep.mubr.bf16.mxu0 0
        %770 = vmatmul.mubr.bf16.gmra.mrb[0].mxu0 %v461
        %v771 = vpop.f32.mrb[0].mxu0
        %v772 = vadd.f32 %v394, %v771
        %v773 = vpop.f32.mrb[0].mxu0
        %v774 = vpop.f32.mrb[0].mxu0
        %v775 = vadd.f32 %v394, %v774
        %v776 = vpop.f32.mrb[0].mxu0
        %777 = vmatprep.mubr.bf16.mxu0 0
        %778 = vmatmul.mubr.bf16.gmra.mrb[0].mxu0 %v464
        %v779 = vpop.f32.mrb[0].mxu0
        %v780 = vadd.f32 %v394, %v779
        %v781 = vpop.f32.mrb[0].mxu0
        %v782 = vpop.f32.mrb[0].mxu0
        %v783 = vadd.f32 %v394, %v782
        %v784 = vpop.f32.mrb[0].mxu0
        %785 = vmatprep.mubr.bf16.mxu0 0
        %786 = vmatmul.mubr.bf16.gmra.mrb[0].mxu0 %v467
        %v787 = vpop.f32.mrb[0].mxu0
        %v788 = vadd.f32 %v394, %v787
        %v789 = vpop.f32.mrb[0].mxu0
        %v790 = vpop.f32.mrb[0].mxu0
        %v791 = vadd.f32 %v394, %v790
        %v792 = vpop.f32.mrb[0].mxu0
        %793 = vmatprep.mubr.bf16.mxu0 0
        %794 = vmatmul.mubr.bf16.gmra.mrb[0].mxu0 %v470
        %v795 = vpop.f32.mrb[0].mxu0
        %v796 = vadd.f32 %v394, %v795
        %v797 = vpop.f32.mrb[0].mxu0
        %v798 = vpop.f32.mrb[0].mxu0
        %v799 = vadd.f32 %v394, %v798
        %v800 = vpop.f32.mrb[0].mxu0
        %801 = vmatprep.mubr.bf16.mxu0 0
        %802 = vmatmul.mubr.bf16.gmra.mrb[0].mxu0 %v473
        %v803 = vpop.f32.mrb[0].mxu0
        %v804 = vadd.f32 %v394, %v803
        %v805 = vpop.f32.mrb[0].mxu0
        %v806 = vpop.f32.mrb[0].mxu0
        %v807 = vadd.f32 %v394, %v806
        %v808 = vpop.f32.mrb[0].mxu0
        %809 = vmatprep.mubr.bf16.mxu0 0
        %810 = vmatmul.mubr.bf16.gmra.mrb[0].mxu0 %v476
        %v811 = vpop.f32.mrb[0].mxu0
        %v812 = vadd.f32 %v394, %v811
        %v813 = vpop.f32.mrb[0].mxu0
        %v814 = vpop.f32.mrb[0].mxu0
        %v815 = vadd.f32 %v394, %v814
        %v816 = vpop.f32.mrb[0].mxu0
        %817 = vmatprep.mubr.bf16.mxu0 0
        %818 = vmatmul.mubr.bf16.gmra.mrb[0].mxu0 %v479
        %v819 = vpop.f32.mrb[0].mxu0
        %v820 = vadd.f32 %v394, %v819
        %v821 = vpop.f32.mrb[0].mxu0
        %v822 = vpop.f32.mrb[0].mxu0
        %v823 = vadd.f32 %v394, %v822
        %v824 = vpop.f32.mrb[0].mxu0
        %825 = vmatprep.mubr.bf16.mxu0 0
        %826 = vmatmul.mubr.bf16.gmra.mrb[0].mxu0 %v482
        %v827 = vpop.f32.mrb[0].mxu0
        %v828 = vadd.f32 %v394, %v827
        %v829 = vpop.f32.mrb[0].mxu0
        %v830 = vpop.f32.mrb[0].mxu0
        %v831 = vadd.f32 %v394, %v830
        %v832 = vpop.f32.mrb[0].mxu0
        %833 = vmatprep.mubr.bf16.mxu0 0
        %834 = vmatmul.mubr.bf16.gmra.mrb[0].mxu0 %v485
        %v835 = vpop.f32.mrb[0].mxu0
        %v836 = vadd.f32 %v394, %v835
        %v837 = vpop.f32.mrb[0].mxu0
        %v838 = vpop.f32.mrb[0].mxu0
        %v839 = vadd.f32 %v394, %v838
        %v840 = vpop.f32.mrb[0].mxu0
        %841 = vmatprep.mubr.bf16.mxu0 0
        %842 = vmatmul.mubr.bf16.gmra.mrb[0].mxu0 %v488
        %v843 = vpop.f32.mrb[0].mxu0
        %v844 = vadd.f32 %v394, %v843
        %v845 = vpop.f32.mrb[0].mxu0
        %v846 = vpop.f32.mrb[0].mxu0
        %v847 = vadd.f32 %v394, %v846
        %v848 = vpop.f32.mrb[0].mxu0
        %849 = vmatprep.mubr.bf16.mxu0 0
        %850 = vmatmul.mubr.bf16.gmra.mrb[0].mxu0 %v491
        %v851 = vpop.f32.mrb[0].mxu0
        %v852 = vadd.f32 %v394, %v851
        %v853 = vpop.f32.mrb[0].mxu0
        %v854 = vpop.f32.mrb[0].mxu0
        %v855 = vadd.f32 %v394, %v854
        %v856 = vpop.f32.mrb[0].mxu0
        %857 = vmatprep.mubr.bf16.mxu0 0
        %858 = vmatmul.mubr.bf16.gmra.mrb[0].mxu0 %v494
        %v859 = vpop.f32.mrb[0].mxu0
        %v860 = vadd.f32 %v394, %v859
        %v861 = vpop.f32.mrb[0].mxu0
        %v862 = vpop.f32.mrb[0].mxu0
        %v863 = vadd.f32 %v394, %v862
        %v864 = vpop.f32.mrb[0].mxu0
        %865 = vmatprep.mubr.bf16.mxu0 0
        %866 = vmatmul.mubr.bf16.gmra.mrb[0].mxu0 %v497
        %v867 = vpop.f32.mrb[0].mxu0
        %v868 = vadd.f32 %v394, %v867
        %v869 = vpop.f32.mrb[0].mxu0
        %v870 = vpop.f32.mrb[0].mxu0
        %v871 = vadd.f32 %v394, %v870
        %v872 = vpop.f32.mrb[0].mxu0
        %873 = vmatprep.mubr.bf16.mxu0 0
        %874 = vmatmul.mubr.bf16.gmra.mrb[0].mxu0 %v500
        %v875 = vpop.f32.mrb[0].mxu0
        %v876 = vadd.f32 %v394, %v875
        %v877 = vpop.f32.mrb[0].mxu0
        %v878 = vpop.f32.mrb[0].mxu0
        %v879 = vadd.f32 %v394, %v878
        %v880 = vpop.f32.mrb[0].mxu0
        %881 = vmatprep.mubr.bf16.mxu0 0
        %882 = vmatmul.mubr.bf16.gmra.mrb[0].mxu0 %v503
        %v883 = vpop.f32.mrb[0].mxu0
        %v884 = vadd.f32 %v394, %v883
        %v885 = vpop.f32.mrb[0].mxu0
        %v886 = vpop.f32.mrb[0].mxu0
        %v887 = vadd.f32 %v394, %v886
        %v888 = vpop.f32.mrb[0].mxu0
        %889 = vmatprep.mubr.bf16.mxu0 0
        %890 = vmatmul.mubr.bf16.gmra.mrb[0].mxu0 %v506
        %v891 = vpop.f32.mrb[0].mxu0
        %v892 = vadd.f32 %v394, %v891
        %v893 = vpop.f32.mrb[0].mxu0
        %v894 = vpop.f32.mrb[0].mxu0
        %v895 = vadd.f32 %v394, %v894
        %v896 = vpop.f32.mrb[0].mxu0
        %897 = vmatprep.mubr.bf16.mxu0 0
        %898 = vmatmul.mubr.bf16.gmra.mrb[0].mxu0 %v509
        %v899 = vpop.f32.mrb[0].mxu0
        %v900 = vadd.f32 %v394, %v899
        %v901 = vpop.f32.mrb[0].mxu0
        %v902 = vpop.f32.mrb[0].mxu0
        %v903 = vadd.f32 %v394, %v902
        %v904 = vpop.f32.mrb[0].mxu0
        %905 = vmatprep.mubr.bf16.mxu0 0
        %906 = vmatmul.mubr.bf16.gmra.mrb[0].mxu0 %v512
        %v907 = vpop.f32.mrb[0].mxu0
        %v908 = vadd.f32 %v394, %v907
        %v909 = vpop.f32.mrb[0].mxu0
        %v910 = vpop.f32.mrb[0].mxu0
        %v911 = vadd.f32 %v394, %v910
        %v912 = vpop.f32.mrb[0].mxu0
        %913 = vmatprep.mubr.bf16.mxu0 0
        %914 = vmatmul.mubr.bf16.gmra.mrb[0].mxu0 %v515
        %v915 = vpop.f32.mrb[0].mxu0
        %v916 = vadd.f32 %v394, %v915
        %v917 = vpop.f32.mrb[0].mxu0
        %v918 = vpop.f32.mrb[0].mxu0
        %v919 = vadd.f32 %v394, %v918
        %v920 = vpop.f32.mrb[0].mxu0
        %921 = vmatprep.mubr.bf16.mxu0 0
        %922 = vmatmul.mubr.bf16.gmra.mrb[0].mxu0 %v518
        %v923 = vpop.f32.mrb[0].mxu0
        %v924 = vadd.f32 %v394, %v923
        %v925 = vpop.f32.mrb[0].mxu0
        %v926 = vpop.f32.mrb[0].mxu0
        %v927 = vadd.f32 %v394, %v926
        %v928 = vpop.f32.mrb[0].mxu0
        %929 = vmatprep.mubr.bf16.mxu0 0
        %930 = vmatmul.mubr.bf16.gmra.mrb[0].mxu0 %v521
        %v931 = vpop.f32.mrb[0].mxu0
        %v932 = vadd.f32 %v394, %v931
        %v933 = vpop.f32.mrb[0].mxu0
        %v934 = vpop.f32.mrb[0].mxu0
        %v935 = vadd.f32 %v394, %v934
        %v936 = vpop.f32.mrb[0].mxu0
        %937 = vmatprep.mubr.bf16.mxu0 0
        %938 = vmatmul.mubr.bf16.gmra.mrb[0].mxu0 %v524
        %v939 = vpop.f32.mrb[0].mxu0
        %v940 = vadd.f32 %v394, %v939
        %v941 = vpop.f32.mrb[0].mxu0
        %v942 = vpop.f32.mrb[0].mxu0
        %v943 = vadd.f32 %v394, %v942
        %v944 = vpop.f32.mrb[0].mxu0
        %945 = vmatprep.mubr.bf16.mxu0 0
        %946 = vmatmul.mubr.bf16.gmra.mrb[0].mxu0 %v527
        %v947 = vpop.f32.mrb[0].mxu0
        %v948 = vadd.f32 %v394, %v947
        %v949 = vpop.f32.mrb[0].mxu0
        %v950 = vpop.f32.mrb[0].mxu0
        %v951 = vadd.f32 %v394, %v950
        %v952 = vpop.f32.mrb[0].mxu0
        %953 = vmatprep.mubr.bf16.mxu0 0
        %954 = vmatmul.mubr.bf16.gmra.mrb[0].mxu0 %v530
        %v955 = vpop.f32.mrb[0].mxu0
        %v956 = vadd.f32 %v394, %v955
        %v957 = vpop.f32.mrb[0].mxu0
        %v958 = vpop.f32.mrb[0].mxu0
        %v959 = vadd.f32 %v394, %v958
        %v960 = vpop.f32.mrb[0].mxu0
        %961 = vmatprep.mubr.bf16.mxu0 0
        %962 = vmatmul.mubr.bf16.gmra.mrb[0].mxu0 %v533
        %v963 = vpop.f32.mrb[0].mxu0
        %v964 = vadd.f32 %v394, %v963
        %v965 = vpop.f32.mrb[0].mxu0
        %v966 = vpop.f32.mrb[0].mxu0
        %v967 = vadd.f32 %v394, %v966
        %v968 = vpop.f32.mrb[0].mxu0
        %969 = vmatprep.mubr.bf16.mxu0 0
        %970 = vmatmul.mubr.bf16.gmra.mrb[0].mxu0 %v536
        %v971 = vpop.f32.mrb[0].mxu0
        %v972 = vadd.f32 %v394, %v971
        %v973 = vpop.f32.mrb[0].mxu0
        %v974 = vpop.f32.mrb[0].mxu0
        %v975 = vadd.f32 %v394, %v974
        %v976 = vpop.f32.mrb[0].mxu0
        %977 = vmatprep.mubr.bf16.mxu0 0
        %978 = vmatmul.mubr.bf16.gmra.mrb[0].mxu0 %v539
        %v979 = vpop.f32.mrb[0].mxu0
        %v980 = vadd.f32 %v394, %v979
        %v981 = vpop.f32.mrb[0].mxu0
        %v982 = vpop.f32.mrb[0].mxu0
        %v983 = vadd.f32 %v394, %v982
        %v984 = vpop.f32.mrb[0].mxu0
        %985 = vmatprep.mubr.bf16.mxu0 0
        %986 = vmatmul.mubr.bf16.gmra.mrb[0].mxu0 %v542
        %v987 = vpop.f32.mrb[0].mxu0
        %v988 = vadd.f32 %v394, %v987
        %v989 = vpop.f32.mrb[0].mxu0
        %v990 = vpop.f32.mrb[0].mxu0
        %v991 = vadd.f32 %v394, %v990
        %v992 = vpop.f32.mrb[0].mxu0
        %993 = vmatprep.mubr.bf16.mxu0 0
        %994 = vmatmul.mubr.bf16.gmra.mrb[0].mxu0 %v545
        %v995 = vpop.f32.mrb[0].mxu0
        %v996 = vadd.f32 %v394, %v995
        %v997 = vpop.f32.mrb[0].mxu0
        %v998 = vpop.f32.mrb[0].mxu0
        %v999 = vadd.f32 %v394, %v998
        %v1000 = vpop.f32.mrb[0].mxu0
        %1001 = vmatprep.mubr.bf16.mxu0 0
        %1002 = vmatmul.mubr.bf16.gmra.mrb[0].mxu0 %v548
        %v1003 = vpop.f32.mrb[0].mxu0
        %v1004 = vadd.f32 %v394, %v1003
        %v1005 = vpop.f32.mrb[0].mxu0
        %v1006 = vpop.f32.mrb[0].mxu0
        %v1007 = vadd.f32 %v394, %v1006
        %v1008 = vpop.f32.mrb[0].mxu0
        %1009 = vmatprep.mubr.bf16.mxu0 0
        %1010 = vmatmul.mubr.bf16.gmra.mrb[0].mxu0 %v551
        %v1011 = vpop.f32.mrb[0].mxu0
        %v1012 = vadd.f32 %v394, %v1011
        %v1013 = vpop.f32.mrb[0].mxu0
        %v1014 = vpop.f32.mrb[0].mxu0
        %v1015 = vadd.f32 %v394, %v1014
        %v1016 = vpop.f32.mrb[0].mxu0
        %1017 = vmatprep.mubr.bf16.mxu0 0
        %1018 = vmatmul.mubr.bf16.gmra.mrb[0].mxu0 %v554
        %v1019 = vpop.f32.mrb[0].mxu0
        %v1020 = vadd.f32 %v394, %v1019
        %v1021 = vpop.f32.mrb[0].mxu0
        %v1022 = vpop.f32.mrb[0].mxu0
        %v1023 = vadd.f32 %v394, %v1022
        %v1024 = vpop.f32.mrb[0].mxu0
        %1025 = vmatprep.mubr.bf16.mxu0 0
        %1026 = vmatmul.mubr.bf16.gmra.mrb[0].mxu0 %v557
        %v1027 = vpop.f32.mrb[0].mxu0
        %v1028 = vadd.f32 %v394, %v1027
        %v1029 = vpop.f32.mrb[0].mxu0
        %v1030 = vpop.f32.mrb[0].mxu0
        %v1031 = vadd.f32 %v394, %v1030
        %v1032 = vpop.f32.mrb[0].mxu0
        %1033 = vmatprep.mubr.bf16.mxu0 0
        %1034 = vmatmul.mubr.bf16.gmra.mrb[0].mxu0 %v560
        %v1035 = vpop.f32.mrb[0].mxu0
        %v1036 = vadd.f32 %v394, %v1035
        %v1037 = vpop.f32.mrb[0].mxu0
        %v1038 = vpop.f32.mrb[0].mxu0
        %v1039 = vadd.f32 %v394, %v1038
        %v1040 = vpop.f32.mrb[0].mxu0
        %1041 = vmatprep.mubr.bf16.mxu0 0
        %1042 = vmatmul.mubr.bf16.gmra.mrb[0].mxu0 %v563
        %v1043 = vpop.f32.mrb[0].mxu0
        %v1044 = vadd.f32 %v394, %v1043
        %v1045 = vpop.f32.mrb[0].mxu0
        %v1046 = vpop.f32.mrb[0].mxu0
        %v1047 = vadd.f32 %v394, %v1046
        %v1048 = vpop.f32.mrb[0].mxu0
        %1049 = vmatprep.mubr.bf16.mxu0 0
        %1050 = vmatmul.mubr.bf16.gmra.mrb[0].mxu0 %v566
        %v1051 = vpop.f32.mrb[0].mxu0
        %v1052 = vadd.f32 %v394, %v1051
        %v1053 = vpop.f32.mrb[0].mxu0
        %v1054 = vpop.f32.mrb[0].mxu0
        %v1055 = vadd.f32 %v394, %v1054
        %v1056 = vpop.f32.mrb[0].mxu0
        %1057 = vmatprep.mubr.bf16.mxu0 0
        %1058 = vmatmul.mubr.bf16.gmra.mrb[0].mxu0 %v569
        %v1059 = vpop.f32.mrb[0].mxu0
        %v1060 = vadd.f32 %v394, %v1059
        %v1061 = vpop.f32.mrb[0].mxu0
        %v1062 = vpop.f32.mrb[0].mxu0
        %v1063 = vadd.f32 %v394, %v1062
        %v1064 = vpop.f32.mrb[0].mxu0
        %1065 = vmatprep.mubr.bf16.mxu0 0
        %1066 = vmatmul.mubr.bf16.gmra.mrb[0].mxu0 %v572
        %v1067 = vpop.f32.mrb[0].mxu0
        %v1068 = vadd.f32 %v394, %v1067
        %v1069 = vpop.f32.mrb[0].mxu0
        %v1070 = vpop.f32.mrb[0].mxu0
        %v1071 = vadd.f32 %v394, %v1070
        %v1072 = vpop.f32.mrb[0].mxu0
        %1073 = vmatprep.mubr.bf16.mxu0 0
        %1074 = vmatmul.mubr.bf16.gmra.mrb[0].mxu0 %v575
        %v1075 = vpop.f32.mrb[0].mxu0
        %v1076 = vadd.f32 %v394, %v1075
        %v1077 = vpop.f32.mrb[0].mxu0
        %v1078 = vpop.f32.mrb[0].mxu0
        %v1079 = vadd.f32 %v394, %v1078
        %v1080 = vpop.f32.mrb[0].mxu0
        %1081 = vmatprep.mubr.bf16.mxu0 0
        %1082 = vmatmul.mubr.bf16.gmra.mrb[0].mxu0 %v578
        %v1083 = vpop.f32.mrb[0].mxu0
        %v1084 = vadd.f32 %v394, %v1083
        %v1085 = vpop.f32.mrb[0].mxu0
        %v1086 = vpop.f32.mrb[0].mxu0
        %v1087 = vadd.f32 %v394, %v1086
        %v1088 = vpop.f32.mrb[0].mxu0
        %1089 = vmatprep.mubr.bf16.mxu0 0
        %1090 = vmatmul.mubr.bf16.gmra.mrb[0].mxu0 %v581
        %v1091 = vpop.f32.mrb[0].mxu0
        %v1092 = vadd.f32 %v394, %v1091
        %v1093 = vpop.f32.mrb[0].mxu0
        %v1094 = vpop.f32.mrb[0].mxu0
        %v1095 = vadd.f32 %v394, %v1094
        %v1096 = vpop.f32.mrb[0].mxu0
        %1097 = vmatprep.mubr.bf16.mxu0 0
        %1098 = vmatmul.mubr.bf16.gmra.mrb[0].mxu0 %v584
        %v1099 = vpop.f32.mrb[0].mxu0
        %v1100 = vadd.f32 %v394, %v1099
        %v1101 = vpop.f32.mrb[0].mxu0
        %v1102 = vpop.f32.mrb[0].mxu0
        %v1103 = vadd.f32 %v394, %v1102
        %v1104 = vpop.f32.mrb[0].mxu0
        %1105 = vmatprep.mubr.bf16.mxu0 0
        %1106 = vmatmul.mubr.bf16.gmra.mrb[0].mxu0 %v587
        %v1107 = vpop.f32.mrb[0].mxu0
        %v1108 = vadd.f32 %v394, %v1107
        %v1109 = vpop.f32.mrb[0].mxu0
        %v1110 = vpop.f32.mrb[0].mxu0
        %v1111 = vadd.f32 %v394, %v1110
        %v1112 = vpop.f32.mrb[0].mxu0
        %1113 = vmatprep.mubr.bf16.mxu0 0
        %1114 = vmatmul.mubr.bf16.gmra.mrb[0].mxu0 %v590
        %v1115 = vpop.f32.mrb[0].mxu0
        %v1116 = vadd.f32 %v394, %v1115
        %v1117 = vpop.f32.mrb[0].mxu0
        %v1118 = vpop.f32.mrb[0].mxu0
        %v1119 = vadd.f32 %v394, %v1118
        %v1120 = vpop.f32.mrb[0].mxu0
        %1121 = vmatprep.mubr.bf16.mxu0 0
        %1122 = vmatmul.mubr.bf16.gmra.mrb[0].mxu0 %v593
        %v1123 = vpop.f32.mrb[0].mxu0
        %v1124 = vadd.f32 %v394, %v1123
        %v1125 = vpop.f32.mrb[0].mxu0
        %v1126 = vpop.f32.mrb[0].mxu0
        %v1127 = vadd.f32 %v394, %v1126
        %v1128 = vpop.f32.mrb[0].mxu0
        %1129 = vmatprep.mubr.bf16.mxu0 0
        %1130 = vmatmul.mubr.bf16.gmra.mrb[0].mxu0 %v596
        %v1131 = vpop.f32.mrb[0].mxu0
        %v1132 = vadd.f32 %v394, %v1131
        %v1133 = vpop.f32.mrb[0].mxu0
        %v1134 = vpop.f32.mrb[0].mxu0
        %v1135 = vadd.f32 %v394, %v1134
        %v1136 = vpop.f32.mrb[0].mxu0
        %1137 = vmatprep.mubr.bf16.mxu0 0
        %1138 = vmatmul.mubr.bf16.gmra.mrb[0].mxu0 %v599
        %v1139 = vpop.f32.mrb[0].mxu0
        %v1140 = vadd.f32 %v394, %v1139
        %v1141 = vpop.f32.mrb[0].mxu0
        %v1142 = vpop.f32.mrb[0].mxu0
        %v1143 = vadd.f32 %v394, %v1142
        %v1144 = vpop.f32.mrb[0].mxu0
        %1145 = vdwg.mxu0
        %v1146 = vmax.f32 %v636, 0.0
        %v1147 = vmax.f32 %v639, 0.0
        %v1148 = vmax.f32 %v644, 0.0
        %v1149 = vmax.f32 %v647, 0.0
        %v1150 = vmax.f32 %v652, 0.0
        %v1151 = vmax.f32 %v655, 0.0
        %v1152 = vmax.f32 %v660, 0.0
        %v1153 = vmax.f32 %v663, 0.0
        %v1154 = vmax.f32 %v668, 0.0
        %v1155 = vmax.f32 %v671, 0.0
        %v1156 = vmax.f32 %v676, 0.0
        %v1157 = vmax.f32 %v679, 0.0
        %v1158 = vmax.f32 %v684, 0.0
        %v1159 = vmax.f32 %v687, 0.0
        %v1160 = vmax.f32 %v692, 0.0
        %v1161 = vmax.f32 %v695, 0.0
        %v1162 = vmax.f32 %v700, 0.0
        %v1163 = vmax.f32 %v703, 0.0
        %v1164 = vmax.f32 %v708, 0.0
        %v1165 = vmax.f32 %v711, 0.0
        %v1166 = vmax.f32 %v716, 0.0
        %v1167 = vmax.f32 %v719, 0.0
        %v1168 = vmax.f32 %v724, 0.0
        %v1169 = vmax.f32 %v727, 0.0
        %v1170 = vmax.f32 %v732, 0.0
        %v1171 = vmax.f32 %v735, 0.0
        %v1172 = vmax.f32 %v740, 0.0
        %v1173 = vmax.f32 %v743, 0.0
        %v1174 = vmax.f32 %v748, 0.0
        %v1175 = vmax.f32 %v751, 0.0
        %v1176 = vmax.f32 %v756, 0.0
        %v1177 = vmax.f32 %v759, 0.0
        %v1178 = vmax.f32 %v764, 0.0
        %v1179 = vmax.f32 %v767, 0.0
        %v1180 = vmax.f32 %v772, 0.0
        %v1181 = vmax.f32 %v775, 0.0
        %v1182 = vmax.f32 %v780, 0.0
        %v1183 = vmax.f32 %v783, 0.0
        %v1184 = vmax.f32 %v788, 0.0
        %v1185 = vmax.f32 %v791, 0.0
        %v1186 = vmax.f32 %v796, 0.0
        %v1187 = vmax.f32 %v799, 0.0
        %v1188 = vmax.f32 %v804, 0.0
        %v1189 = vmax.f32 %v807, 0.0
        %v1190 = vmax.f32 %v812, 0.0
        %v1191 = vmax.f32 %v815, 0.0
        %v1192 = vmax.f32 %v820, 0.0
        %v1193 = vmax.f32 %v823, 0.0
        %v1194 = vmax.f32 %v828, 0.0
        %v1195 = vmax.f32 %v831, 0.0
        %v1196 = vmax.f32 %v836, 0.0
        %v1197 = vmax.f32 %v839, 0.0
        %v1198 = vmax.f32 %v844, 0.0
        %v1199 = vmax.f32 %v847, 0.0
        %v1200 = vmax.f32 %v852, 0.0
        %v1201 = vmax.f32 %v855, 0.0
        %v1202 = vmax.f32 %v860, 0.0
        %v1203 = vmax.f32 %v863, 0.0
        %v1204 = vmax.f32 %v868, 0.0
        %v1205 = vmax.f32 %v871, 0.0
        %v1206 = vmax.f32 %v876, 0.0
        %v1207 = vmax.f32 %v879, 0.0
        %v1208 = vmax.f32 %v884, 0.0
        %v1209 = vmax.f32 %v887, 0.0
        %v1210 = vmax.f32 %v892, 0.0
        %v1211 = vmax.f32 %v895, 0.0
        %v1212 = vmax.f32 %v900, 0.0
        %v1213 = vmax.f32 %v903, 0.0
        %v1214 = vmax.f32 %v908, 0.0
        %v1215 = vmax.f32 %v911, 0.0
        %v1216 = vmax.f32 %v916, 0.0
        %v1217 = vmax.f32 %v919, 0.0
        %v1218 = vmax.f32 %v924, 0.0
        %v1219 = vmax.f32 %v927, 0.0
        %v1220 = vmax.f32 %v932, 0.0
        %v1221 = vmax.f32 %v935, 0.0
        %v1222 = vmax.f32 %v940, 0.0
        %v1223 = vmax.f32 %v943, 0.0
        %v1224 = vmax.f32 %v948, 0.0
        %v1225 = vmax.f32 %v951, 0.0
        %v1226 = vmax.f32 %v956, 0.0
        %v1227 = vmax.f32 %v959, 0.0
        %v1228 = vmax.f32 %v964, 0.0
        %v1229 = vmax.f32 %v967, 0.0
        %v1230 = vmax.f32 %v972, 0.0
        %v1231 = vmax.f32 %v975, 0.0
        %v1232 = vmax.f32 %v980, 0.0
        %v1233 = vmax.f32 %v983, 0.0
        %v1234 = vmax.f32 %v988, 0.0
        %v1235 = vmax.f32 %v991, 0.0
        %v1236 = vmax.f32 %v996, 0.0
        %v1237 = vmax.f32 %v999, 0.0
        %v1238 = vmax.f32 %v1004, 0.0
        %v1239 = vmax.f32 %v1007, 0.0
        %v1240 = vmax.f32 %v1012, 0.0
        %v1241 = vmax.f32 %v1015, 0.0
        %v1242 = vmax.f32 %v1020, 0.0
        %v1243 = vmax.f32 %v1023, 0.0
        %v1244 = vmax.f32 %v1028, 0.0
        %v1245 = vmax.f32 %v1031, 0.0
        %v1246 = vmax.f32 %v1036, 0.0
        %v1247 = vmax.f32 %v1039, 0.0
        %v1248 = vmax.f32 %v1044, 0.0
        %v1249 = vmax.f32 %v1047, 0.0
        %v1250 = vmax.f32 %v1052, 0.0
        %v1251 = vmax.f32 %v1055, 0.0
        %v1252 = vmax.f32 %v1060, 0.0
        %v1253 = vmax.f32 %v1063, 0.0
        %v1254 = vmax.f32 %v1068, 0.0
        %v1255 = vmax.f32 %v1071, 0.0
        %v1256 = vmax.f32 %v1076, 0.0
        %v1257 = vmax.f32 %v1079, 0.0
        %v1258 = vmax.f32 %v1084, 0.0
        %v1259 = vmax.f32 %v1087, 0.0
        %v1260 = vmax.f32 %v1092, 0.0
        %v1261 = vmax.f32 %v1095, 0.0
        %v1262 = vmax.f32 %v1100, 0.0
        %v1263 = vmax.f32 %v1103, 0.0
        %v1264 = vmax.f32 %v1108, 0.0
        %v1265 = vmax.f32 %v1111, 0.0
        %v1266 = vmax.f32 %v1116, 0.0
        %v1267 = vmax.f32 %v1119, 0.0
        %v1268 = vmax.f32 %v1124, 0.0
        %v1269 = vmax.f32 %v1127, 0.0
        %v1270 = vmax.f32 %v1132, 0.0
        %v1271 = vmax.f32 %v1135, 0.0
        %v1272 = vmax.f32 %v1140, 0.0
        %v1273 = vmax.f32 %v1143, 0.0
        %v1274 = vmul.f32 %v1146, %v1146
        %v1275 = vmul.f32 %v1147, %v1147
        %v1276 = vmul.f32 %v1148, %v1148
        %v1277 = vmul.f32 %v1149, %v1149
        %v1278 = vmul.f32 %v1150, %v1150
        %v1279 = vmul.f32 %v1151, %v1151
        %v1280 = vmul.f32 %v1152, %v1152
        %v1281 = vmul.f32 %v1153, %v1153
        %v1282 = vmul.f32 %v1154, %v1154
        %v1283 = vmul.f32 %v1155, %v1155
        %v1284 = vmul.f32 %v1156, %v1156
        %v1285 = vmul.f32 %v1157, %v1157
        %v1286 = vmul.f32 %v1158, %v1158
        %v1287 = vmul.f32 %v1159, %v1159
        %v1288 = vmul.f32 %v1160, %v1160
        %v1289 = vmul.f32 %v1161, %v1161
        %v1290 = vmul.f32 %v1162, %v1162
        %v1291 = vmul.f32 %v1163, %v1163
        %v1292 = vmul.f32 %v1164, %v1164
        %v1293 = vmul.f32 %v1165, %v1165
        %v1294 = vmul.f32 %v1166, %v1166
        %v1295 = vmul.f32 %v1167, %v1167
        %v1296 = vmul.f32 %v1168, %v1168
        %v1297 = vmul.f32 %v1169, %v1169
        %v1298 = vmul.f32 %v1170, %v1170
        %v1299 = vmul.f32 %v1171, %v1171
        %v1300 = vmul.f32 %v1172, %v1172
        %v1301 = vmul.f32 %v1173, %v1173
        %v1302 = vmul.f32 %v1174, %v1174
        %v1303 = vmul.f32 %v1175, %v1175
        %v1304 = vmul.f32 %v1176, %v1176
        %v1305 = vmul.f32 %v1177, %v1177
        %v1306 = vmul.f32 %v1178, %v1178
        %v1307 = vmul.f32 %v1179, %v1179
        %v1308 = vmul.f32 %v1180, %v1180
        %v1309 = vmul.f32 %v1181, %v1181
        %v1310 = vmul.f32 %v1182, %v1182
        %v1311 = vmul.f32 %v1183, %v1183
        %v1312 = vmul.f32 %v1184, %v1184
        %v1313 = vmul.f32 %v1185, %v1185
        %v1314 = vmul.f32 %v1186, %v1186
        %v1315 = vmul.f32 %v1187, %v1187
        %v1316 = vmul.f32 %v1188, %v1188
        %v1317 = vmul.f32 %v1189, %v1189
        %v1318 = vmul.f32 %v1190, %v1190
        %v1319 = vmul.f32 %v1191, %v1191
        %v1320 = vmul.f32 %v1192, %v1192
        %v1321 = vmul.f32 %v1193, %v1193
        %v1322 = vmul.f32 %v1194, %v1194
        %v1323 = vmul.f32 %v1195, %v1195
        %v1324 = vmul.f32 %v1196, %v1196
        %v1325 = vmul.f32 %v1197, %v1197
        %v1326 = vmul.f32 %v1198, %v1198
        %v1327 = vmul.f32 %v1199, %v1199
        %v1328 = vmul.f32 %v1200, %v1200
        %v1329 = vmul.f32 %v1201, %v1201
        %v1330 = vmul.f32 %v1202, %v1202
        %v1331 = vmul.f32 %v1203, %v1203
        %v1332 = vmul.f32 %v1204, %v1204
        %v1333 = vmul.f32 %v1205, %v1205
        %v1334 = vmul.f32 %v1206, %v1206
        %v1335 = vmul.f32 %v1207, %v1207
        %v1336 = vmul.f32 %v1208, %v1208
        %v1337 = vmul.f32 %v1209, %v1209
        %v1338 = vmul.f32 %v1210, %v1210
        %v1339 = vmul.f32 %v1211, %v1211
        %v1340 = vmul.f32 %v1212, %v1212
        %v1341 = vmul.f32 %v1213, %v1213
        %v1342 = vmul.f32 %v1214, %v1214
        %v1343 = vmul.f32 %v1215, %v1215
        %v1344 = vmul.f32 %v1216, %v1216
        %v1345 = vmul.f32 %v1217, %v1217
        %v1346 = vmul.f32 %v1218, %v1218
        %v1347 = vmul.f32 %v1219, %v1219
        %v1348 = vmul.f32 %v1220, %v1220
        %v1349 = vmul.f32 %v1221, %v1221
        %v1350 = vmul.f32 %v1222, %v1222
        %v1351 = vmul.f32 %v1223, %v1223
        %v1352 = vmul.f32 %v1224, %v1224
        %v1353 = vmul.f32 %v1225, %v1225
        %v1354 = vmul.f32 %v1226, %v1226
        %v1355 = vmul.f32 %v1227, %v1227
        %v1356 = vmul.f32 %v1228, %v1228
        %v1357 = vmul.f32 %v1229, %v1229
        %v1358 = vmul.f32 %v1230, %v1230
        %v1359 = vmul.f32 %v1231, %v1231
        %v1360 = vmul.f32 %v1232, %v1232
        %v1361 = vmul.f32 %v1233, %v1233
        %v1362 = vmul.f32 %v1234, %v1234
        %v1363 = vmul.f32 %v1235, %v1235
        %v1364 = vmul.f32 %v1236, %v1236
        %v1365 = vmul.f32 %v1237, %v1237
        %v1366 = vmul.f32 %v1238, %v1238
        %v1367 = vmul.f32 %v1239, %v1239
        %v1368 = vmul.f32 %v1240, %v1240
        %v1369 = vmul.f32 %v1241, %v1241
        %v1370 = vmul.f32 %v1242, %v1242
        %v1371 = vmul.f32 %v1243, %v1243
        %v1372 = vmul.f32 %v1244, %v1244
        %v1373 = vmul.f32 %v1245, %v1245
        %v1374 = vmul.f32 %v1246, %v1246
        %v1375 = vmul.f32 %v1247, %v1247
        %v1376 = vmul.f32 %v1248, %v1248
        %v1377 = vmul.f32 %v1249, %v1249
        %v1378 = vmul.f32 %v1250, %v1250
        %v1379 = vmul.f32 %v1251, %v1251
        %v1380 = vmul.f32 %v1252, %v1252
        %v1381 = vmul.f32 %v1253, %v1253
        %v1382 = vmul.f32 %v1254, %v1254
        %v1383 = vmul.f32 %v1255, %v1255
        %v1384 = vmul.f32 %v1256, %v1256
        %v1385 = vmul.f32 %v1257, %v1257
        %v1386 = vmul.f32 %v1258, %v1258
        %v1387 = vmul.f32 %v1259, %v1259
        %v1388 = vmul.f32 %v1260, %v1260
        %v1389 = vmul.f32 %v1261, %v1261
        %v1390 = vmul.f32 %v1262, %v1262
        %v1391 = vmul.f32 %v1263, %v1263
        %v1392 = vmul.f32 %v1264, %v1264
        %v1393 = vmul.f32 %v1265, %v1265
        %v1394 = vmul.f32 %v1266, %v1266
        %v1395 = vmul.f32 %v1267, %v1267
        %v1396 = vmul.f32 %v1268, %v1268
        %v1397 = vmul.f32 %v1269, %v1269
        %v1398 = vmul.f32 %v1270, %v1270
        %v1399 = vmul.f32 %v1271, %v1271
        %v1400 = vmul.f32 %v1272, %v1272
        %v1401 = vmul.f32 %v1273, %v1273
        %v1402 = vsel %vm408, %v1274, 0.0
        %1403 = vadd.xlane.f32.xlu0 %v1402
        %v1404 = vpop.xlane.xlu0 %1403
        %v1405 = vsel %vm408, %v1275, 0.0
        %1406 = vadd.xlane.f32.xlu0 %v1405
        %v1407 = vpop.xlane.xlu0 %1406
        %v1408 = vsel %vm408, %v1276, 0.0
        %1409 = vadd.xlane.f32.xlu0 %v1408
        %v1410 = vpop.xlane.xlu0 %1409
        %v1411 = vsel %vm408, %v1277, 0.0
        %1412 = vadd.xlane.f32.xlu0 %v1411
        %v1413 = vpop.xlane.xlu0 %1412
        %v1414 = vsel %vm408, %v1278, 0.0
        %1415 = vadd.xlane.f32.xlu0 %v1414
        %v1416 = vpop.xlane.xlu0 %1415
        %v1417 = vsel %vm408, %v1279, 0.0
        %1418 = vadd.xlane.f32.xlu0 %v1417
        %v1419 = vpop.xlane.xlu0 %1418
        %v1420 = vsel %vm408, %v1280, 0.0
        %1421 = vadd.xlane.f32.xlu0 %v1420
        %v1422 = vpop.xlane.xlu0 %1421
        %v1423 = vsel %vm408, %v1281, 0.0
        %1424 = vadd.xlane.f32.xlu0 %v1423
        %v1425 = vpop.xlane.xlu0 %1424
        %v1426 = vsel %vm408, %v1282, 0.0
        %1427 = vadd.xlane.f32.xlu0 %v1426
        %v1428 = vpop.xlane.xlu0 %1427
        %v1429 = vsel %vm408, %v1283, 0.0
        %1430 = vadd.xlane.f32.xlu0 %v1429
        %v1431 = vpop.xlane.xlu0 %1430
        %v1432 = vsel %vm408, %v1284, 0.0
        %1433 = vadd.xlane.f32.xlu0 %v1432
        %v1434 = vpop.xlane.xlu0 %1433
        %v1435 = vsel %vm408, %v1285, 0.0
        %1436 = vadd.xlane.f32.xlu0 %v1435
        %v1437 = vpop.xlane.xlu0 %1436
        %v1438 = vsel %vm408, %v1286, 0.0
        %1439 = vadd.xlane.f32.xlu0 %v1438
        %v1440 = vpop.xlane.xlu0 %1439
        %v1441 = vsel %vm408, %v1287, 0.0
        %1442 = vadd.xlane.f32.xlu0 %v1441
        %v1443 = vpop.xlane.xlu0 %1442
        %v1444 = vsel %vm408, %v1288, 0.0
        %1445 = vadd.xlane.f32.xlu0 %v1444
        %v1446 = vpop.xlane.xlu0 %1445
        %v1447 = vsel %vm408, %v1289, 0.0
        %1448 = vadd.xlane.f32.xlu0 %v1447
        %v1449 = vpop.xlane.xlu0 %1448
        %v1450 = vsel %vm408, %v1290, 0.0
        %1451 = vadd.xlane.f32.xlu0 %v1450
        %v1452 = vpop.xlane.xlu0 %1451
        %v1453 = vsel %vm408, %v1291, 0.0
        %1454 = vadd.xlane.f32.xlu0 %v1453
        %v1455 = vpop.xlane.xlu0 %1454
        %v1456 = vsel %vm408, %v1292, 0.0
        %1457 = vadd.xlane.f32.xlu0 %v1456
        %v1458 = vpop.xlane.xlu0 %1457
        %v1459 = vsel %vm408, %v1293, 0.0
        %1460 = vadd.xlane.f32.xlu0 %v1459
        %v1461 = vpop.xlane.xlu0 %1460
        %v1462 = vsel %vm408, %v1294, 0.0
        %1463 = vadd.xlane.f32.xlu0 %v1462
        %v1464 = vpop.xlane.xlu0 %1463
        %v1465 = vsel %vm408, %v1295, 0.0
        %1466 = vadd.xlane.f32.xlu0 %v1465
        %v1467 = vpop.xlane.xlu0 %1466
        %v1468 = vsel %vm408, %v1296, 0.0
        %1469 = vadd.xlane.f32.xlu0 %v1468
        %v1470 = vpop.xlane.xlu0 %1469
        %v1471 = vsel %vm408, %v1297, 0.0
        %1472 = vadd.xlane.f32.xlu0 %v1471
        %v1473 = vpop.xlane.xlu0 %1472
        %v1474 = vsel %vm408, %v1298, 0.0
        %1475 = vadd.xlane.f32.xlu0 %v1474
        %v1476 = vpop.xlane.xlu0 %1475
        %v1477 = vsel %vm408, %v1299, 0.0
        %1478 = vadd.xlane.f32.xlu0 %v1477
        %v1479 = vpop.xlane.xlu0 %1478
        %v1480 = vsel %vm408, %v1300, 0.0
        %1481 = vadd.xlane.f32.xlu0 %v1480
        %v1482 = vpop.xlane.xlu0 %1481
        %v1483 = vsel %vm408, %v1301, 0.0
        %1484 = vadd.xlane.f32.xlu0 %v1483
        %v1485 = vpop.xlane.xlu0 %1484
        %v1486 = vsel %vm408, %v1302, 0.0
        %1487 = vadd.xlane.f32.xlu0 %v1486
        %v1488 = vpop.xlane.xlu0 %1487
        %v1489 = vsel %vm408, %v1303, 0.0
        %1490 = vadd.xlane.f32.xlu0 %v1489
        %v1491 = vpop.xlane.xlu0 %1490
        %v1492 = vsel %vm408, %v1304, 0.0
        %1493 = vadd.xlane.f32.xlu0 %v1492
        %v1494 = vpop.xlane.xlu0 %1493
        %v1495 = vsel %vm408, %v1305, 0.0
        %1496 = vadd.xlane.f32.xlu0 %v1495
        %v1497 = vpop.xlane.xlu0 %1496
        %v1498 = vsel %vm408, %v1306, 0.0
        %1499 = vadd.xlane.f32.xlu0 %v1498
        %v1500 = vpop.xlane.xlu0 %1499
        %v1501 = vsel %vm408, %v1307, 0.0
        %1502 = vadd.xlane.f32.xlu0 %v1501
        %v1503 = vpop.xlane.xlu0 %1502
        %v1504 = vsel %vm408, %v1308, 0.0
        %1505 = vadd.xlane.f32.xlu0 %v1504
        %v1506 = vpop.xlane.xlu0 %1505
        %v1507 = vsel %vm408, %v1309, 0.0
        %1508 = vadd.xlane.f32.xlu0 %v1507
        %v1509 = vpop.xlane.xlu0 %1508
        %v1510 = vsel %vm408, %v1310, 0.0
        %1511 = vadd.xlane.f32.xlu0 %v1510
        %v1512 = vpop.xlane.xlu0 %1511
        %v1513 = vsel %vm408, %v1311, 0.0
        %1514 = vadd.xlane.f32.xlu0 %v1513
        %v1515 = vpop.xlane.xlu0 %1514
        %v1516 = vsel %vm408, %v1312, 0.0
        %1517 = vadd.xlane.f32.xlu0 %v1516
        %v1518 = vpop.xlane.xlu0 %1517
        %v1519 = vsel %vm408, %v1313, 0.0
        %1520 = vadd.xlane.f32.xlu0 %v1519
        %v1521 = vpop.xlane.xlu0 %1520
        %v1522 = vsel %vm408, %v1314, 0.0
        %1523 = vadd.xlane.f32.xlu0 %v1522
        %v1524 = vpop.xlane.xlu0 %1523
        %v1525 = vsel %vm408, %v1315, 0.0
        %1526 = vadd.xlane.f32.xlu0 %v1525
        %v1527 = vpop.xlane.xlu0 %1526
        %v1528 = vsel %vm408, %v1316, 0.0
        %1529 = vadd.xlane.f32.xlu0 %v1528
        %v1530 = vpop.xlane.xlu0 %1529
        %v1531 = vsel %vm408, %v1317, 0.0
        %1532 = vadd.xlane.f32.xlu0 %v1531
        %v1533 = vpop.xlane.xlu0 %1532
        %v1534 = vsel %vm408, %v1318, 0.0
        %1535 = vadd.xlane.f32.xlu0 %v1534
        %v1536 = vpop.xlane.xlu0 %1535
        %v1537 = vsel %vm408, %v1319, 0.0
        %1538 = vadd.xlane.f32.xlu0 %v1537
        %v1539 = vpop.xlane.xlu0 %1538
        %v1540 = vsel %vm408, %v1320, 0.0
        %1541 = vadd.xlane.f32.xlu0 %v1540
        %v1542 = vpop.xlane.xlu0 %1541
        %v1543 = vsel %vm408, %v1321, 0.0
        %1544 = vadd.xlane.f32.xlu0 %v1543
        %v1545 = vpop.xlane.xlu0 %1544
        %v1546 = vsel %vm408, %v1322, 0.0
        %1547 = vadd.xlane.f32.xlu0 %v1546
        %v1548 = vpop.xlane.xlu0 %1547
        %v1549 = vsel %vm408, %v1323, 0.0
        %1550 = vadd.xlane.f32.xlu0 %v1549
        %v1551 = vpop.xlane.xlu0 %1550
        %v1552 = vsel %vm408, %v1324, 0.0
        %1553 = vadd.xlane.f32.xlu0 %v1552
        %v1554 = vpop.xlane.xlu0 %1553
        %v1555 = vsel %vm408, %v1325, 0.0
        %1556 = vadd.xlane.f32.xlu0 %v1555
        %v1557 = vpop.xlane.xlu0 %1556
        %v1558 = vsel %vm408, %v1326, 0.0
        %1559 = vadd.xlane.f32.xlu0 %v1558
        %v1560 = vpop.xlane.xlu0 %1559
        %v1561 = vsel %vm408, %v1327, 0.0
        %1562 = vadd.xlane.f32.xlu0 %v1561
        %v1563 = vpop.xlane.xlu0 %1562
        %v1564 = vsel %vm408, %v1328, 0.0
        %1565 = vadd.xlane.f32.xlu0 %v1564
        %v1566 = vpop.xlane.xlu0 %1565
        %v1567 = vsel %vm408, %v1329, 0.0
        %1568 = vadd.xlane.f32.xlu0 %v1567
        %v1569 = vpop.xlane.xlu0 %1568
        %v1570 = vsel %vm408, %v1330, 0.0
        %1571 = vadd.xlane.f32.xlu0 %v1570
        %v1572 = vpop.xlane.xlu0 %1571
        %v1573 = vsel %vm408, %v1331, 0.0
        %1574 = vadd.xlane.f32.xlu0 %v1573
        %v1575 = vpop.xlane.xlu0 %1574
        %v1576 = vsel %vm408, %v1332, 0.0
        %1577 = vadd.xlane.f32.xlu0 %v1576
        %v1578 = vpop.xlane.xlu0 %1577
        %v1579 = vsel %vm408, %v1333, 0.0
        %1580 = vadd.xlane.f32.xlu0 %v1579
        %v1581 = vpop.xlane.xlu0 %1580
        %v1582 = vsel %vm408, %v1334, 0.0
        %1583 = vadd.xlane.f32.xlu0 %v1582
        %v1584 = vpop.xlane.xlu0 %1583
        %v1585 = vsel %vm408, %v1335, 0.0
        %1586 = vadd.xlane.f32.xlu0 %v1585
        %v1587 = vpop.xlane.xlu0 %1586
        %v1588 = vsel %vm408, %v1336, 0.0
        %1589 = vadd.xlane.f32.xlu0 %v1588
        %v1590 = vpop.xlane.xlu0 %1589
        %v1591 = vsel %vm408, %v1337, 0.0
        %1592 = vadd.xlane.f32.xlu0 %v1591
        %v1593 = vpop.xlane.xlu0 %1592
        %v1594 = vsel %vm408, %v1338, 0.0
        %1595 = vadd.xlane.f32.xlu0 %v1594
        %v1596 = vpop.xlane.xlu0 %1595
        %v1597 = vsel %vm408, %v1339, 0.0
        %1598 = vadd.xlane.f32.xlu0 %v1597
        %v1599 = vpop.xlane.xlu0 %1598
        %v1600 = vsel %vm408, %v1340, 0.0
        %1601 = vadd.xlane.f32.xlu0 %v1600
        %v1602 = vpop.xlane.xlu0 %1601
        %v1603 = vsel %vm408, %v1341, 0.0
        %1604 = vadd.xlane.f32.xlu0 %v1603
        %v1605 = vpop.xlane.xlu0 %1604
        %v1606 = vsel %vm408, %v1342, 0.0
        %1607 = vadd.xlane.f32.xlu0 %v1606
        %v1608 = vpop.xlane.xlu0 %1607
        %v1609 = vsel %vm408, %v1343, 0.0
        %1610 = vadd.xlane.f32.xlu0 %v1609
        %v1611 = vpop.xlane.xlu0 %1610
        %v1612 = vsel %vm408, %v1344, 0.0
        %1613 = vadd.xlane.f32.xlu0 %v1612
        %v1614 = vpop.xlane.xlu0 %1613
        %v1615 = vsel %vm408, %v1345, 0.0
        %1616 = vadd.xlane.f32.xlu0 %v1615
        %v1617 = vpop.xlane.xlu0 %1616
        %v1618 = vsel %vm408, %v1346, 0.0
        %1619 = vadd.xlane.f32.xlu0 %v1618
        %v1620 = vpop.xlane.xlu0 %1619
        %v1621 = vsel %vm408, %v1347, 0.0
        %1622 = vadd.xlane.f32.xlu0 %v1621
        %v1623 = vpop.xlane.xlu0 %1622
        %v1624 = vsel %vm408, %v1348, 0.0
        %1625 = vadd.xlane.f32.xlu0 %v1624
        %v1626 = vpop.xlane.xlu0 %1625
        %v1627 = vsel %vm408, %v1349, 0.0
        %1628 = vadd.xlane.f32.xlu0 %v1627
        %v1629 = vpop.xlane.xlu0 %1628
        %v1630 = vsel %vm408, %v1350, 0.0
        %1631 = vadd.xlane.f32.xlu0 %v1630
        %v1632 = vpop.xlane.xlu0 %1631
        %v1633 = vsel %vm408, %v1351, 0.0
        %1634 = vadd.xlane.f32.xlu0 %v1633
        %v1635 = vpop.xlane.xlu0 %1634
        %v1636 = vsel %vm408, %v1352, 0.0
        %1637 = vadd.xlane.f32.xlu0 %v1636
        %v1638 = vpop.xlane.xlu0 %1637
        %v1639 = vsel %vm408, %v1353, 0.0
        %1640 = vadd.xlane.f32.xlu0 %v1639
        %v1641 = vpop.xlane.xlu0 %1640
        %v1642 = vsel %vm408, %v1354, 0.0
        %1643 = vadd.xlane.f32.xlu0 %v1642
        %v1644 = vpop.xlane.xlu0 %1643
        %v1645 = vsel %vm408, %v1355, 0.0
        %1646 = vadd.xlane.f32.xlu0 %v1645
        %v1647 = vpop.xlane.xlu0 %1646
        %v1648 = vsel %vm408, %v1356, 0.0
        %1649 = vadd.xlane.f32.xlu0 %v1648
        %v1650 = vpop.xlane.xlu0 %1649
        %v1651 = vsel %vm408, %v1357, 0.0
        %1652 = vadd.xlane.f32.xlu0 %v1651
        %v1653 = vpop.xlane.xlu0 %1652
        %v1654 = vsel %vm408, %v1358, 0.0
        %1655 = vadd.xlane.f32.xlu0 %v1654
        %v1656 = vpop.xlane.xlu0 %1655
        %v1657 = vsel %vm408, %v1359, 0.0
        %1658 = vadd.xlane.f32.xlu0 %v1657
        %v1659 = vpop.xlane.xlu0 %1658
        %v1660 = vsel %vm408, %v1360, 0.0
        %1661 = vadd.xlane.f32.xlu0 %v1660
        %v1662 = vpop.xlane.xlu0 %1661
        %v1663 = vsel %vm408, %v1361, 0.0
        %1664 = vadd.xlane.f32.xlu0 %v1663
        %v1665 = vpop.xlane.xlu0 %1664
        %v1666 = vsel %vm408, %v1362, 0.0
        %1667 = vadd.xlane.f32.xlu0 %v1666
        %v1668 = vpop.xlane.xlu0 %1667
        %v1669 = vsel %vm408, %v1363, 0.0
        %1670 = vadd.xlane.f32.xlu0 %v1669
        %v1671 = vpop.xlane.xlu0 %1670
        %v1672 = vsel %vm408, %v1364, 0.0
        %1673 = vadd.xlane.f32.xlu0 %v1672
        %v1674 = vpop.xlane.xlu0 %1673
        %v1675 = vsel %vm408, %v1365, 0.0
        %1676 = vadd.xlane.f32.xlu0 %v1675
        %v1677 = vpop.xlane.xlu0 %1676
        %v1678 = vsel %vm408, %v1366, 0.0
        %1679 = vadd.xlane.f32.xlu0 %v1678
        %v1680 = vpop.xlane.xlu0 %1679
        %v1681 = vsel %vm408, %v1367, 0.0
        %1682 = vadd.xlane.f32.xlu0 %v1681
        %v1683 = vpop.xlane.xlu0 %1682
        %v1684 = vsel %vm408, %v1368, 0.0
        %1685 = vadd.xlane.f32.xlu0 %v1684
        %v1686 = vpop.xlane.xlu0 %1685
        %v1687 = vsel %vm408, %v1369, 0.0
        %1688 = vadd.xlane.f32.xlu0 %v1687
        %v1689 = vpop.xlane.xlu0 %1688
        %v1690 = vsel %vm408, %v1370, 0.0
        %1691 = vadd.xlane.f32.xlu0 %v1690
        %v1692 = vpop.xlane.xlu0 %1691
        %v1693 = vsel %vm408, %v1371, 0.0
        %1694 = vadd.xlane.f32.xlu0 %v1693
        %v1695 = vpop.xlane.xlu0 %1694
        %v1696 = vsel %vm408, %v1372, 0.0
        %1697 = vadd.xlane.f32.xlu0 %v1696
        %v1698 = vpop.xlane.xlu0 %1697
        %v1699 = vsel %vm408, %v1373, 0.0
        %1700 = vadd.xlane.f32.xlu0 %v1699
        %v1701 = vpop.xlane.xlu0 %1700
        %v1702 = vsel %vm408, %v1374, 0.0
        %1703 = vadd.xlane.f32.xlu0 %v1702
        %v1704 = vpop.xlane.xlu0 %1703
        %v1705 = vsel %vm408, %v1375, 0.0
        %1706 = vadd.xlane.f32.xlu0 %v1705
        %v1707 = vpop.xlane.xlu0 %1706
        %v1708 = vsel %vm408, %v1376, 0.0
        %1709 = vadd.xlane.f32.xlu0 %v1708
        %v1710 = vpop.xlane.xlu0 %1709
        %v1711 = vsel %vm408, %v1377, 0.0
        %1712 = vadd.xlane.f32.xlu0 %v1711
        %v1713 = vpop.xlane.xlu0 %1712
        %v1714 = vsel %vm408, %v1378, 0.0
        %1715 = vadd.xlane.f32.xlu0 %v1714
        %v1716 = vpop.xlane.xlu0 %1715
        %v1717 = vsel %vm408, %v1379, 0.0
        %1718 = vadd.xlane.f32.xlu0 %v1717
        %v1719 = vpop.xlane.xlu0 %1718
        %v1720 = vsel %vm408, %v1380, 0.0
        %1721 = vadd.xlane.f32.xlu0 %v1720
        %v1722 = vpop.xlane.xlu0 %1721
        %v1723 = vsel %vm408, %v1381, 0.0
        %1724 = vadd.xlane.f32.xlu0 %v1723
        %v1725 = vpop.xlane.xlu0 %1724
        %v1726 = vsel %vm408, %v1382, 0.0
        %1727 = vadd.xlane.f32.xlu0 %v1726
        %v1728 = vpop.xlane.xlu0 %1727
        %v1729 = vsel %vm408, %v1383, 0.0
        %1730 = vadd.xlane.f32.xlu0 %v1729
        %v1731 = vpop.xlane.xlu0 %1730
        %v1732 = vsel %vm408, %v1384, 0.0
        %1733 = vadd.xlane.f32.xlu0 %v1732
        %v1734 = vpop.xlane.xlu0 %1733
        %v1735 = vsel %vm408, %v1385, 0.0
        %1736 = vadd.xlane.f32.xlu0 %v1735
        %v1737 = vpop.xlane.xlu0 %1736
        %v1738 = vsel %vm408, %v1386, 0.0
        %1739 = vadd.xlane.f32.xlu0 %v1738
        %v1740 = vpop.xlane.xlu0 %1739
        %v1741 = vsel %vm408, %v1387, 0.0
        %1742 = vadd.xlane.f32.xlu0 %v1741
        %v1743 = vpop.xlane.xlu0 %1742
        %v1744 = vsel %vm408, %v1388, 0.0
        %1745 = vadd.xlane.f32.xlu0 %v1744
        %v1746 = vpop.xlane.xlu0 %1745
        %v1747 = vsel %vm408, %v1389, 0.0
        %1748 = vadd.xlane.f32.xlu0 %v1747
        %v1749 = vpop.xlane.xlu0 %1748
        %v1750 = vsel %vm408, %v1390, 0.0
        %1751 = vadd.xlane.f32.xlu0 %v1750
        %v1752 = vpop.xlane.xlu0 %1751
        %v1753 = vsel %vm408, %v1391, 0.0
        %1754 = vadd.xlane.f32.xlu0 %v1753
        %v1755 = vpop.xlane.xlu0 %1754
        %v1756 = vsel %vm408, %v1392, 0.0
        %1757 = vadd.xlane.f32.xlu0 %v1756
        %v1758 = vpop.xlane.xlu0 %1757
        %v1759 = vsel %vm408, %v1393, 0.0
        %1760 = vadd.xlane.f32.xlu0 %v1759
        %v1761 = vpop.xlane.xlu0 %1760
        %v1762 = vsel %vm408, %v1394, 0.0
        %1763 = vadd.xlane.f32.xlu0 %v1762
        %v1764 = vpop.xlane.xlu0 %1763
        %v1765 = vsel %vm408, %v1395, 0.0
        %1766 = vadd.xlane.f32.xlu0 %v1765
        %v1767 = vpop.xlane.xlu0 %1766
        %v1768 = vsel %vm408, %v1396, 0.0
        %1769 = vadd.xlane.f32.xlu0 %v1768
        %v1770 = vpop.xlane.xlu0 %1769
        %v1771 = vsel %vm408, %v1397, 0.0
        %1772 = vadd.xlane.f32.xlu0 %v1771
        %v1773 = vpop.xlane.xlu0 %1772
        %v1774 = vsel %vm408, %v1398, 0.0
        %1775 = vadd.xlane.f32.xlu0 %v1774
        %v1776 = vpop.xlane.xlu0 %1775
        %v1777 = vsel %vm408, %v1399, 0.0
        %1778 = vadd.xlane.f32.xlu0 %v1777
        %v1779 = vpop.xlane.xlu0 %1778
        %v1780 = vsel %vm408, %v1400, 0.0
        %1781 = vadd.xlane.f32.xlu0 %v1780
        %v1782 = vpop.xlane.xlu0 %1781
        %v1783 = vsel %vm408, %v1401, 0.0
        %1784 = vadd.xlane.f32.xlu0 %v1783
        %v1785 = vpop.xlane.xlu0 %1784
        %v1786 = vmax.f32 %v1404, 1e-20
        %v1787 = vmax.f32 %v1407, 1e-20
        %v1788 = vmax.f32 %v1410, 1e-20
        %v1789 = vmax.f32 %v1413, 1e-20
        %v1790 = vmax.f32 %v1416, 1e-20
        %v1791 = vmax.f32 %v1419, 1e-20
        %v1792 = vmax.f32 %v1422, 1e-20
        %v1793 = vmax.f32 %v1425, 1e-20
        %v1794 = vmax.f32 %v1428, 1e-20
        %v1795 = vmax.f32 %v1431, 1e-20
        %v1796 = vmax.f32 %v1434, 1e-20
        %v1797 = vmax.f32 %v1437, 1e-20
        %v1798 = vmax.f32 %v1440, 1e-20
        %v1799 = vmax.f32 %v1443, 1e-20
        %v1800 = vmax.f32 %v1446, 1e-20
        %v1801 = vmax.f32 %v1449, 1e-20
        %v1802 = vmax.f32 %v1452, 1e-20
        %v1803 = vmax.f32 %v1455, 1e-20
        %v1804 = vmax.f32 %v1458, 1e-20
        %v1805 = vmax.f32 %v1461, 1e-20
        %v1806 = vmax.f32 %v1464, 1e-20
        %v1807 = vmax.f32 %v1467, 1e-20
        %v1808 = vmax.f32 %v1470, 1e-20
        %v1809 = vmax.f32 %v1473, 1e-20
        %v1810 = vmax.f32 %v1476, 1e-20
        %v1811 = vmax.f32 %v1479, 1e-20
        %v1812 = vmax.f32 %v1482, 1e-20
        %v1813 = vmax.f32 %v1485, 1e-20
        %v1814 = vmax.f32 %v1488, 1e-20
        %v1815 = vmax.f32 %v1491, 1e-20
        %v1816 = vmax.f32 %v1494, 1e-20
        %v1817 = vmax.f32 %v1497, 1e-20
        %v1818 = vmax.f32 %v1500, 1e-20
        %v1819 = vmax.f32 %v1503, 1e-20
        %v1820 = vmax.f32 %v1506, 1e-20
        %v1821 = vmax.f32 %v1509, 1e-20
        %v1822 = vmax.f32 %v1512, 1e-20
        %v1823 = vmax.f32 %v1515, 1e-20
        %v1824 = vmax.f32 %v1518, 1e-20
        %v1825 = vmax.f32 %v1521, 1e-20
        %v1826 = vmax.f32 %v1524, 1e-20
        %v1827 = vmax.f32 %v1527, 1e-20
        %v1828 = vmax.f32 %v1530, 1e-20
        %v1829 = vmax.f32 %v1533, 1e-20
        %v1830 = vmax.f32 %v1536, 1e-20
        %v1831 = vmax.f32 %v1539, 1e-20
        %v1832 = vmax.f32 %v1542, 1e-20
        %v1833 = vmax.f32 %v1545, 1e-20
        %v1834 = vmax.f32 %v1548, 1e-20
        %v1835 = vmax.f32 %v1551, 1e-20
        %v1836 = vmax.f32 %v1554, 1e-20
        %v1837 = vmax.f32 %v1557, 1e-20
        %v1838 = vmax.f32 %v1560, 1e-20
        %v1839 = vmax.f32 %v1563, 1e-20
        %v1840 = vmax.f32 %v1566, 1e-20
        %v1841 = vmax.f32 %v1569, 1e-20
        %v1842 = vmax.f32 %v1572, 1e-20
        %v1843 = vmax.f32 %v1575, 1e-20
        %v1844 = vmax.f32 %v1578, 1e-20
        %v1845 = vmax.f32 %v1581, 1e-20
        %v1846 = vmax.f32 %v1584, 1e-20
        %v1847 = vmax.f32 %v1587, 1e-20
        %v1848 = vmax.f32 %v1590, 1e-20
        %v1849 = vmax.f32 %v1593, 1e-20
        %v1850 = vmax.f32 %v1596, 1e-20
        %v1851 = vmax.f32 %v1599, 1e-20
        %v1852 = vmax.f32 %v1602, 1e-20
        %v1853 = vmax.f32 %v1605, 1e-20
        %v1854 = vmax.f32 %v1608, 1e-20
        %v1855 = vmax.f32 %v1611, 1e-20
        %v1856 = vmax.f32 %v1614, 1e-20
        %v1857 = vmax.f32 %v1617, 1e-20
        %v1858 = vmax.f32 %v1620, 1e-20
        %v1859 = vmax.f32 %v1623, 1e-20
        %v1860 = vmax.f32 %v1626, 1e-20
        %v1861 = vmax.f32 %v1629, 1e-20
        %v1862 = vmax.f32 %v1632, 1e-20
        %v1863 = vmax.f32 %v1635, 1e-20
        %v1864 = vmax.f32 %v1638, 1e-20
        %v1865 = vmax.f32 %v1641, 1e-20
        %v1866 = vmax.f32 %v1644, 1e-20
        %v1867 = vmax.f32 %v1647, 1e-20
        %v1868 = vmax.f32 %v1650, 1e-20
        %v1869 = vmax.f32 %v1653, 1e-20
        %v1870 = vmax.f32 %v1656, 1e-20
        %v1871 = vmax.f32 %v1659, 1e-20
        %v1872 = vmax.f32 %v1662, 1e-20
        %v1873 = vmax.f32 %v1665, 1e-20
        %v1874 = vmax.f32 %v1668, 1e-20
        %v1875 = vmax.f32 %v1671, 1e-20
        %v1876 = vmax.f32 %v1674, 1e-20
        %v1877 = vmax.f32 %v1677, 1e-20
        %v1878 = vmax.f32 %v1680, 1e-20
        %v1879 = vmax.f32 %v1683, 1e-20
        %v1880 = vmax.f32 %v1686, 1e-20
        %v1881 = vmax.f32 %v1689, 1e-20
        %v1882 = vmax.f32 %v1692, 1e-20
        %v1883 = vmax.f32 %v1695, 1e-20
        %v1884 = vmax.f32 %v1698, 1e-20
        %v1885 = vmax.f32 %v1701, 1e-20
        %v1886 = vmax.f32 %v1704, 1e-20
        %v1887 = vmax.f32 %v1707, 1e-20
        %v1888 = vmax.f32 %v1710, 1e-20
        %v1889 = vmax.f32 %v1713, 1e-20
        %v1890 = vmax.f32 %v1716, 1e-20
        %v1891 = vmax.f32 %v1719, 1e-20
        %v1892 = vmax.f32 %v1722, 1e-20
        %v1893 = vmax.f32 %v1725, 1e-20
        %v1894 = vmax.f32 %v1728, 1e-20
        %v1895 = vmax.f32 %v1731, 1e-20
        %v1896 = vmax.f32 %v1734, 1e-20
        %v1897 = vmax.f32 %v1737, 1e-20
        %v1898 = vmax.f32 %v1740, 1e-20
        %v1899 = vmax.f32 %v1743, 1e-20
        %v1900 = vmax.f32 %v1746, 1e-20
        %v1901 = vmax.f32 %v1749, 1e-20
        %v1902 = vmax.f32 %v1752, 1e-20
        %v1903 = vmax.f32 %v1755, 1e-20
        %v1904 = vmax.f32 %v1758, 1e-20
        %v1905 = vmax.f32 %v1761, 1e-20
        %v1906 = vmax.f32 %v1764, 1e-20
        %v1907 = vmax.f32 %v1767, 1e-20
        %v1908 = vmax.f32 %v1770, 1e-20
        %v1909 = vmax.f32 %v1773, 1e-20
        %v1910 = vmax.f32 %v1776, 1e-20
        %v1911 = vmax.f32 %v1779, 1e-20
        %v1912 = vmax.f32 %v1782, 1e-20
        %v1913 = vmax.f32 %v1785, 1e-20
        %v1914 = vrsqrt.pop %v1786
        %v1915 = vrsqrt.pop %v1787
        %v1916 = vrsqrt.pop %v1788
        %v1917 = vrsqrt.pop %v1789
        %v1918 = vrsqrt.pop %v1790
        %v1919 = vrsqrt.pop %v1791
        %v1920 = vrsqrt.pop %v1792
        %v1921 = vrsqrt.pop %v1793
        %v1922 = vrsqrt.pop %v1794
        %v1923 = vrsqrt.pop %v1795
        %v1924 = vrsqrt.pop %v1796
        %v1925 = vrsqrt.pop %v1797
        %v1926 = vrsqrt.pop %v1798
        %v1927 = vrsqrt.pop %v1799
        %v1928 = vrsqrt.pop %v1800
        %v1929 = vrsqrt.pop %v1801
        %v1930 = vrsqrt.pop %v1802
        %v1931 = vrsqrt.pop %v1803
        %v1932 = vrsqrt.pop %v1804
        %v1933 = vrsqrt.pop %v1805
        %v1934 = vrsqrt.pop %v1806
        %v1935 = vrsqrt.pop %v1807
        %v1936 = vrsqrt.pop %v1808
        %v1937 = vrsqrt.pop %v1809
        %v1938 = vrsqrt.pop %v1810
        %v1939 = vrsqrt.pop %v1811
        %v1940 = vrsqrt.pop %v1812
        %v1941 = vrsqrt.pop %v1813
        %v1942 = vrsqrt.pop %v1814
        %v1943 = vrsqrt.pop %v1815
        %v1944 = vrsqrt.pop %v1816
        %v1945 = vrsqrt.pop %v1817
        %v1946 = vrsqrt.pop %v1818
        %v1947 = vrsqrt.pop %v1819
        %v1948 = vrsqrt.pop %v1820
        %v1949 = vrsqrt.pop %v1821
        %v1950 = vrsqrt.pop %v1822
        %v1951 = vrsqrt.pop %v1823
        %v1952 = vrsqrt.pop %v1824
        %v1953 = vrsqrt.pop %v1825
        %v1954 = vrsqrt.pop %v1826
        %v1955 = vrsqrt.pop %v1827
        %v1956 = vrsqrt.pop %v1828
        %v1957 = vrsqrt.pop %v1829
        %v1958 = vrsqrt.pop %v1830
        %v1959 = vrsqrt.pop %v1831
        %v1960 = vrsqrt.pop %v1832
        %v1961 = vrsqrt.pop %v1833
        %v1962 = vrsqrt.pop %v1834
        %v1963 = vrsqrt.pop %v1835
        %v1964 = vrsqrt.pop %v1836
        %v1965 = vrsqrt.pop %v1837
        %v1966 = vrsqrt.pop %v1838
        %v1967 = vrsqrt.pop %v1839
        %v1968 = vrsqrt.pop %v1840
        %v1969 = vrsqrt.pop %v1841
        %v1970 = vrsqrt.pop %v1842
        %v1971 = vrsqrt.pop %v1843
        %v1972 = vrsqrt.pop %v1844
        %v1973 = vrsqrt.pop %v1845
        %v1974 = vrsqrt.pop %v1846
        %v1975 = vrsqrt.pop %v1847
        %v1976 = vrsqrt.pop %v1848
        %v1977 = vrsqrt.pop %v1849
        %v1978 = vrsqrt.pop %v1850
        %v1979 = vrsqrt.pop %v1851
        %v1980 = vrsqrt.pop %v1852
        %v1981 = vrsqrt.pop %v1853
        %v1982 = vrsqrt.pop %v1854
        %v1983 = vrsqrt.pop %v1855
        %v1984 = vrsqrt.pop %v1856
        %v1985 = vrsqrt.pop %v1857
        %v1986 = vrsqrt.pop %v1858
        %v1987 = vrsqrt.pop %v1859
        %v1988 = vrsqrt.pop %v1860
        %v1989 = vrsqrt.pop %v1861
        %v1990 = vrsqrt.pop %v1862
        %v1991 = vrsqrt.pop %v1863
        %v1992 = vrsqrt.pop %v1864
        %v1993 = vrsqrt.pop %v1865
        %v1994 = vrsqrt.pop %v1866
        %v1995 = vrsqrt.pop %v1867
        %v1996 = vrsqrt.pop %v1868
        %v1997 = vrsqrt.pop %v1869
        %v1998 = vrsqrt.pop %v1870
        %v1999 = vrsqrt.pop %v1871
        %v2000 = vrsqrt.pop %v1872
        %v2001 = vrsqrt.pop %v1873
        %v2002 = vrsqrt.pop %v1874
        %v2003 = vrsqrt.pop %v1875
        %v2004 = vrsqrt.pop %v1876
        %v2005 = vrsqrt.pop %v1877
        %v2006 = vrsqrt.pop %v1878
        %v2007 = vrsqrt.pop %v1879
        %v2008 = vrsqrt.pop %v1880
        %v2009 = vrsqrt.pop %v1881
        %v2010 = vrsqrt.pop %v1882
        %v2011 = vrsqrt.pop %v1883
        %v2012 = vrsqrt.pop %v1884
        %v2013 = vrsqrt.pop %v1885
        %v2014 = vrsqrt.pop %v1886
        %v2015 = vrsqrt.pop %v1887
        %v2016 = vrsqrt.pop %v1888
        %v2017 = vrsqrt.pop %v1889
        %v2018 = vrsqrt.pop %v1890
        %v2019 = vrsqrt.pop %v1891
        %v2020 = vrsqrt.pop %v1892
        %v2021 = vrsqrt.pop %v1893
        %v2022 = vrsqrt.pop %v1894
        %v2023 = vrsqrt.pop %v1895
        %v2024 = vrsqrt.pop %v1896
        %v2025 = vrsqrt.pop %v1897
        %v2026 = vrsqrt.pop %v1898
        %v2027 = vrsqrt.pop %v1899
        %v2028 = vrsqrt.pop %v1900
        %v2029 = vrsqrt.pop %v1901
        %v2030 = vrsqrt.pop %v1902
        %v2031 = vrsqrt.pop %v1903
        %v2032 = vrsqrt.pop %v1904
        %v2033 = vrsqrt.pop %v1905
        %v2034 = vrsqrt.pop %v1906
        %v2035 = vrsqrt.pop %v1907
        %v2036 = vrsqrt.pop %v1908
        %v2037 = vrsqrt.pop %v1909
        %v2038 = vrsqrt.pop %v1910
        %v2039 = vrsqrt.pop %v1911
        %v2040 = vrsqrt.pop %v1912
        %v2041 = vrsqrt.pop %v1913
        %v2042 = vmul.f32 %v1146, %v1914
        %v2043 = vmul.f32 %v1147, %v1915
        %v2044 = vmul.f32 %v1148, %v1916
        %v2045 = vmul.f32 %v1149, %v1917
        %v2046 = vmul.f32 %v1150, %v1918
        %v2047 = vmul.f32 %v1151, %v1919
        %v2048 = vmul.f32 %v1152, %v1920
        %v2049 = vmul.f32 %v1153, %v1921
        %v2050 = vmul.f32 %v1154, %v1922
        %v2051 = vmul.f32 %v1155, %v1923
        %v2052 = vmul.f32 %v1156, %v1924
        %v2053 = vmul.f32 %v1157, %v1925
        %v2054 = vmul.f32 %v1158, %v1926
        %v2055 = vmul.f32 %v1159, %v1927
        %v2056 = vmul.f32 %v1160, %v1928
        %v2057 = vmul.f32 %v1161, %v1929
        %v2058 = vmul.f32 %v1162, %v1930
        %v2059 = vmul.f32 %v1163, %v1931
        %v2060 = vmul.f32 %v1164, %v1932
        %v2061 = vmul.f32 %v1165, %v1933
        %v2062 = vmul.f32 %v1166, %v1934
        %v2063 = vmul.f32 %v1167, %v1935
        %v2064 = vmul.f32 %v1168, %v1936
        %v2065 = vmul.f32 %v1169, %v1937
        %v2066 = vmul.f32 %v1170, %v1938
        %v2067 = vmul.f32 %v1171, %v1939
        %v2068 = vmul.f32 %v1172, %v1940
        %v2069 = vmul.f32 %v1173, %v1941
        %v2070 = vmul.f32 %v1174, %v1942
        %v2071 = vmul.f32 %v1175, %v1943
        %v2072 = vmul.f32 %v1176, %v1944
        %v2073 = vmul.f32 %v1177, %v1945
        %v2074 = vmul.f32 %v1178, %v1946
        %v2075 = vmul.f32 %v1179, %v1947
        %v2076 = vmul.f32 %v1180, %v1948
        %v2077 = vmul.f32 %v1181, %v1949
        %v2078 = vmul.f32 %v1182, %v1950
        %v2079 = vmul.f32 %v1183, %v1951
        %v2080 = vmul.f32 %v1184, %v1952
        %v2081 = vmul.f32 %v1185, %v1953
        %v2082 = vmul.f32 %v1186, %v1954
        %v2083 = vmul.f32 %v1187, %v1955
        %v2084 = vmul.f32 %v1188, %v1956
        %v2085 = vmul.f32 %v1189, %v1957
        %v2086 = vmul.f32 %v1190, %v1958
        %v2087 = vmul.f32 %v1191, %v1959
        %v2088 = vmul.f32 %v1192, %v1960
        %v2089 = vmul.f32 %v1193, %v1961
        %v2090 = vmul.f32 %v1194, %v1962
        %v2091 = vmul.f32 %v1195, %v1963
        %v2092 = vmul.f32 %v1196, %v1964
        %v2093 = vmul.f32 %v1197, %v1965
        %v2094 = vmul.f32 %v1198, %v1966
        %v2095 = vmul.f32 %v1199, %v1967
        %v2096 = vmul.f32 %v1200, %v1968
        %v2097 = vmul.f32 %v1201, %v1969
        %v2098 = vmul.f32 %v1202, %v1970
        %v2099 = vmul.f32 %v1203, %v1971
        %v2100 = vmul.f32 %v1204, %v1972
        %v2101 = vmul.f32 %v1205, %v1973
        %v2102 = vmul.f32 %v1206, %v1974
        %v2103 = vmul.f32 %v1207, %v1975
        %v2104 = vmul.f32 %v1208, %v1976
        %v2105 = vmul.f32 %v1209, %v1977
        %v2106 = vmul.f32 %v1210, %v1978
        %v2107 = vmul.f32 %v1211, %v1979
        %v2108 = vmul.f32 %v1212, %v1980
        %v2109 = vmul.f32 %v1213, %v1981
        %v2110 = vmul.f32 %v1214, %v1982
        %v2111 = vmul.f32 %v1215, %v1983
        %v2112 = vmul.f32 %v1216, %v1984
        %v2113 = vmul.f32 %v1217, %v1985
        %v2114 = vmul.f32 %v1218, %v1986
        %v2115 = vmul.f32 %v1219, %v1987
        %v2116 = vmul.f32 %v1220, %v1988
        %v2117 = vmul.f32 %v1221, %v1989
        %v2118 = vmul.f32 %v1222, %v1990
        %v2119 = vmul.f32 %v1223, %v1991
        %v2120 = vmul.f32 %v1224, %v1992
        %v2121 = vmul.f32 %v1225, %v1993
        %v2122 = vmul.f32 %v1226, %v1994
        %v2123 = vmul.f32 %v1227, %v1995
        %v2124 = vmul.f32 %v1228, %v1996
        %v2125 = vmul.f32 %v1229, %v1997
        %v2126 = vmul.f32 %v1230, %v1998
        %v2127 = vmul.f32 %v1231, %v1999
        %v2128 = vmul.f32 %v1232, %v2000
        %v2129 = vmul.f32 %v1233, %v2001
        %v2130 = vmul.f32 %v1234, %v2002
        %v2131 = vmul.f32 %v1235, %v2003
        %v2132 = vmul.f32 %v1236, %v2004
        %v2133 = vmul.f32 %v1237, %v2005
        %v2134 = vmul.f32 %v1238, %v2006
        %v2135 = vmul.f32 %v1239, %v2007
        %v2136 = vmul.f32 %v1240, %v2008
        %v2137 = vmul.f32 %v1241, %v2009
        %v2138 = vmul.f32 %v1242, %v2010
        %v2139 = vmul.f32 %v1243, %v2011
        %v2140 = vmul.f32 %v1244, %v2012
        %v2141 = vmul.f32 %v1245, %v2013
        %v2142 = vmul.f32 %v1246, %v2014
        %v2143 = vmul.f32 %v1247, %v2015
        %v2144 = vmul.f32 %v1248, %v2016
        %v2145 = vmul.f32 %v1249, %v2017
        %v2146 = vmul.f32 %v1250, %v2018
        %v2147 = vmul.f32 %v1251, %v2019
        %v2148 = vmul.f32 %v1252, %v2020
        %v2149 = vmul.f32 %v1253, %v2021
        %v2150 = vmul.f32 %v1254, %v2022
        %v2151 = vmul.f32 %v1255, %v2023
        %v2152 = vmul.f32 %v1256, %v2024
        %v2153 = vmul.f32 %v1257, %v2025
        %v2154 = vmul.f32 %v1258, %v2026
        %v2155 = vmul.f32 %v1259, %v2027
        %v2156 = vmul.f32 %v1260, %v2028
        %v2157 = vmul.f32 %v1261, %v2029
        %v2158 = vmul.f32 %v1262, %v2030
        %v2159 = vmul.f32 %v1263, %v2031
        %v2160 = vmul.f32 %v1264, %v2032
        %v2161 = vmul.f32 %v1265, %v2033
        %v2162 = vmul.f32 %v1266, %v2034
        %v2163 = vmul.f32 %v1267, %v2035
        %v2164 = vmul.f32 %v1268, %v2036
        %v2165 = vmul.f32 %v1269, %v2037
        %v2166 = vmul.f32 %v1270, %v2038
        %v2167 = vmul.f32 %v1271, %v2039
        %v2168 = vmul.f32 %v1272, %v2040
        %v2169 = vmul.f32 %v1273, %v2041
        %v2170 = vpack.c.bf16 %v2043, %v2042
        %v2171 = vpack.c.bf16 %v2045, %v2044
        %v2172 = vpack.c.bf16 %v2047, %v2046
        %v2173 = vpack.c.bf16 %v2049, %v2048
        %v2174 = vpack.c.bf16 %v2051, %v2050
        %v2175 = vpack.c.bf16 %v2053, %v2052
        %v2176 = vpack.c.bf16 %v2055, %v2054
        %v2177 = vpack.c.bf16 %v2057, %v2056
        %v2178 = vpack.c.bf16 %v2059, %v2058
        %v2179 = vpack.c.bf16 %v2061, %v2060
        %v2180 = vpack.c.bf16 %v2063, %v2062
        %v2181 = vpack.c.bf16 %v2065, %v2064
        %v2182 = vpack.c.bf16 %v2067, %v2066
        %v2183 = vpack.c.bf16 %v2069, %v2068
        %v2184 = vpack.c.bf16 %v2071, %v2070
        %v2185 = vpack.c.bf16 %v2073, %v2072
        %v2186 = vpack.c.bf16 %v2075, %v2074
        %v2187 = vpack.c.bf16 %v2077, %v2076
        %v2188 = vpack.c.bf16 %v2079, %v2078
        %v2189 = vpack.c.bf16 %v2081, %v2080
        %v2190 = vpack.c.bf16 %v2083, %v2082
        %v2191 = vpack.c.bf16 %v2085, %v2084
        %v2192 = vpack.c.bf16 %v2087, %v2086
        %v2193 = vpack.c.bf16 %v2089, %v2088
        %v2194 = vpack.c.bf16 %v2091, %v2090
        %v2195 = vpack.c.bf16 %v2093, %v2092
        %v2196 = vpack.c.bf16 %v2095, %v2094
        %v2197 = vpack.c.bf16 %v2097, %v2096
        %v2198 = vpack.c.bf16 %v2099, %v2098
        %v2199 = vpack.c.bf16 %v2101, %v2100
        %v2200 = vpack.c.bf16 %v2103, %v2102
        %v2201 = vpack.c.bf16 %v2105, %v2104
        %v2202 = vpack.c.bf16 %v2107, %v2106
        %v2203 = vpack.c.bf16 %v2109, %v2108
        %v2204 = vpack.c.bf16 %v2111, %v2110
        %v2205 = vpack.c.bf16 %v2113, %v2112
        %v2206 = vpack.c.bf16 %v2115, %v2114
        %v2207 = vpack.c.bf16 %v2117, %v2116
        %v2208 = vpack.c.bf16 %v2119, %v2118
        %v2209 = vpack.c.bf16 %v2121, %v2120
        %v2210 = vpack.c.bf16 %v2123, %v2122
        %v2211 = vpack.c.bf16 %v2125, %v2124
        %v2212 = vpack.c.bf16 %v2127, %v2126
        %v2213 = vpack.c.bf16 %v2129, %v2128
        %v2214 = vpack.c.bf16 %v2131, %v2130
        %v2215 = vpack.c.bf16 %v2133, %v2132
        %v2216 = vpack.c.bf16 %v2135, %v2134
        %v2217 = vpack.c.bf16 %v2137, %v2136
        %v2218 = vpack.c.bf16 %v2139, %v2138
        %v2219 = vpack.c.bf16 %v2141, %v2140
        %v2220 = vpack.c.bf16 %v2143, %v2142
        %v2221 = vpack.c.bf16 %v2145, %v2144
        %v2222 = vpack.c.bf16 %v2147, %v2146
        %v2223 = vpack.c.bf16 %v2149, %v2148
        %v2224 = vpack.c.bf16 %v2151, %v2150
        %v2225 = vpack.c.bf16 %v2153, %v2152
        %v2226 = vpack.c.bf16 %v2155, %v2154
        %v2227 = vpack.c.bf16 %v2157, %v2156
        %v2228 = vpack.c.bf16 %v2159, %v2158
        %v2229 = vpack.c.bf16 %v2161, %v2160
        %v2230 = vpack.c.bf16 %v2163, %v2162
        %v2231 = vpack.c.bf16 %v2165, %v2164
        %v2232 = vpack.c.bf16 %v2167, %v2166
        %v2233 = vpack.c.bf16 %v2169, %v2168
        %v2298 = vunpack.c.l.b16 %v2170
        %v2299 = vunpack.c.h.b16 %v2170
        %v2300 = vunpack.c.l.b16 %v2171
        %v2301 = vunpack.c.h.b16 %v2171
        %v2302 = vunpack.c.l.b16 %v2172
        %v2303 = vunpack.c.h.b16 %v2172
        %v2304 = vunpack.c.l.b16 %v2173
        %v2305 = vunpack.c.h.b16 %v2173
        %v2306 = vunpack.c.l.b16 %v2174
        %v2307 = vunpack.c.h.b16 %v2174
        %v2308 = vunpack.c.l.b16 %v2175
        %v2309 = vunpack.c.h.b16 %v2175
        %v2310 = vunpack.c.l.b16 %v2176
        %v2311 = vunpack.c.h.b16 %v2176
        %v2312 = vunpack.c.l.b16 %v2177
        %v2313 = vunpack.c.h.b16 %v2177
        %v2314 = vunpack.c.l.b16 %v2178
        %v2315 = vunpack.c.h.b16 %v2178
        %v2316 = vunpack.c.l.b16 %v2179
        %v2317 = vunpack.c.h.b16 %v2179
        %v2318 = vunpack.c.l.b16 %v2180
        %v2319 = vunpack.c.h.b16 %v2180
        %v2320 = vunpack.c.l.b16 %v2181
        %v2321 = vunpack.c.h.b16 %v2181
        %v2322 = vunpack.c.l.b16 %v2182
        %v2323 = vunpack.c.h.b16 %v2182
        %v2324 = vunpack.c.l.b16 %v2183
        %v2325 = vunpack.c.h.b16 %v2183
        %v2326 = vunpack.c.l.b16 %v2184
        %v2327 = vunpack.c.h.b16 %v2184
        %v2328 = vunpack.c.l.b16 %v2185
        %v2329 = vunpack.c.h.b16 %v2185
        %v2330 = vunpack.c.l.b16 %v2186
        %v2331 = vunpack.c.h.b16 %v2186
        %v2332 = vunpack.c.l.b16 %v2187
        %v2333 = vunpack.c.h.b16 %v2187
        %v2334 = vunpack.c.l.b16 %v2188
        %v2335 = vunpack.c.h.b16 %v2188
        %v2336 = vunpack.c.l.b16 %v2189
        %v2337 = vunpack.c.h.b16 %v2189
        %v2338 = vunpack.c.l.b16 %v2190
        %v2339 = vunpack.c.h.b16 %v2190
        %v2340 = vunpack.c.l.b16 %v2191
        %v2341 = vunpack.c.h.b16 %v2191
        %v2342 = vunpack.c.l.b16 %v2192
        %v2343 = vunpack.c.h.b16 %v2192
        %v2344 = vunpack.c.l.b16 %v2193
        %v2345 = vunpack.c.h.b16 %v2193
        %v2346 = vunpack.c.l.b16 %v2194
        %v2347 = vunpack.c.h.b16 %v2194
        %v2348 = vunpack.c.l.b16 %v2195
        %v2349 = vunpack.c.h.b16 %v2195
        %v2350 = vunpack.c.l.b16 %v2196
        %v2351 = vunpack.c.h.b16 %v2196
        %v2352 = vunpack.c.l.b16 %v2197
        %v2353 = vunpack.c.h.b16 %v2197
        %v2354 = vunpack.c.l.b16 %v2198
        %v2355 = vunpack.c.h.b16 %v2198
        %v2356 = vunpack.c.l.b16 %v2199
        %v2357 = vunpack.c.h.b16 %v2199
        %v2358 = vunpack.c.l.b16 %v2200
        %v2359 = vunpack.c.h.b16 %v2200
        %v2360 = vunpack.c.l.b16 %v2201
        %v2361 = vunpack.c.h.b16 %v2201
        %v2362 = vunpack.c.l.b16 %v2202
        %v2363 = vunpack.c.h.b16 %v2202
        %v2364 = vunpack.c.l.b16 %v2203
        %v2365 = vunpack.c.h.b16 %v2203
        %v2366 = vunpack.c.l.b16 %v2204
        %v2367 = vunpack.c.h.b16 %v2204
        %v2368 = vunpack.c.l.b16 %v2205
        %v2369 = vunpack.c.h.b16 %v2205
        %v2370 = vunpack.c.l.b16 %v2206
        %v2371 = vunpack.c.h.b16 %v2206
        %v2372 = vunpack.c.l.b16 %v2207
        %v2373 = vunpack.c.h.b16 %v2207
        %v2374 = vunpack.c.l.b16 %v2208
        %v2375 = vunpack.c.h.b16 %v2208
        %v2376 = vunpack.c.l.b16 %v2209
        %v2377 = vunpack.c.h.b16 %v2209
        %v2378 = vunpack.c.l.b16 %v2210
        %v2379 = vunpack.c.h.b16 %v2210
        %v2380 = vunpack.c.l.b16 %v2211
        %v2381 = vunpack.c.h.b16 %v2211
        %v2382 = vunpack.c.l.b16 %v2212
        %v2383 = vunpack.c.h.b16 %v2212
        %v2384 = vunpack.c.l.b16 %v2213
        %v2385 = vunpack.c.h.b16 %v2213
        %v2386 = vunpack.c.l.b16 %v2214
        %v2387 = vunpack.c.h.b16 %v2214
        %v2388 = vunpack.c.l.b16 %v2215
        %v2389 = vunpack.c.h.b16 %v2215
        %v2390 = vunpack.c.l.b16 %v2216
        %v2391 = vunpack.c.h.b16 %v2216
        %v2392 = vunpack.c.l.b16 %v2217
        %v2393 = vunpack.c.h.b16 %v2217
        %v2394 = vunpack.c.l.b16 %v2218
        %v2395 = vunpack.c.h.b16 %v2218
        %v2396 = vunpack.c.l.b16 %v2219
        %v2397 = vunpack.c.h.b16 %v2219
        %v2398 = vunpack.c.l.b16 %v2220
        %v2399 = vunpack.c.h.b16 %v2220
        %v2400 = vunpack.c.l.b16 %v2221
        %v2401 = vunpack.c.h.b16 %v2221
        %v2402 = vunpack.c.l.b16 %v2222
        %v2403 = vunpack.c.h.b16 %v2222
        %v2404 = vunpack.c.l.b16 %v2223
        %v2405 = vunpack.c.h.b16 %v2223
        %v2406 = vunpack.c.l.b16 %v2224
        %v2407 = vunpack.c.h.b16 %v2224
        %v2408 = vunpack.c.l.b16 %v2225
        %v2409 = vunpack.c.h.b16 %v2225
        %v2410 = vunpack.c.l.b16 %v2226
        %v2411 = vunpack.c.h.b16 %v2226
        %v2412 = vunpack.c.l.b16 %v2227
        %v2413 = vunpack.c.h.b16 %v2227
        %v2414 = vunpack.c.l.b16 %v2228
        %v2415 = vunpack.c.h.b16 %v2228
        %v2416 = vunpack.c.l.b16 %v2229
        %v2417 = vunpack.c.h.b16 %v2229
        %v2418 = vunpack.c.l.b16 %v2230
        %v2419 = vunpack.c.h.b16 %v2230
        %v2420 = vunpack.c.l.b16 %v2231
        %v2421 = vunpack.c.h.b16 %v2231
        %v2422 = vunpack.c.l.b16 %v2232
        %v2423 = vunpack.c.h.b16 %v2232
        %v2424 = vunpack.c.l.b16 %v2233
        %v2425 = vunpack.c.h.b16 %v2233
        %v2426 = vpack.c.b16 %v2298, %v2298
        %v2427 = vpack.c.b16 %v2299, %v2299
        %v2428 = vpack.c.b16 %v2300, %v2300
        %v2429 = vpack.c.b16 %v2301, %v2301
        %v2430 = vpack.c.b16 %v2302, %v2302
        %v2431 = vpack.c.b16 %v2303, %v2303
        %v2432 = vpack.c.b16 %v2304, %v2304
        %v2433 = vpack.c.b16 %v2305, %v2305
        %v2434 = vpack.c.b16 %v2306, %v2306
        %v2435 = vpack.c.b16 %v2307, %v2307
        %v2436 = vpack.c.b16 %v2308, %v2308
        %v2437 = vpack.c.b16 %v2309, %v2309
        %v2438 = vpack.c.b16 %v2310, %v2310
        %v2439 = vpack.c.b16 %v2311, %v2311
        %v2440 = vpack.c.b16 %v2312, %v2312
        %v2441 = vpack.c.b16 %v2313, %v2313
        %v2442 = vpack.c.b16 %v2314, %v2314
        %v2443 = vpack.c.b16 %v2315, %v2315
        %v2444 = vpack.c.b16 %v2316, %v2316
        %v2445 = vpack.c.b16 %v2317, %v2317
        %v2446 = vpack.c.b16 %v2318, %v2318
        %v2447 = vpack.c.b16 %v2319, %v2319
        %v2448 = vpack.c.b16 %v2320, %v2320
        %v2449 = vpack.c.b16 %v2321, %v2321
        %v2450 = vpack.c.b16 %v2322, %v2322
        %v2451 = vpack.c.b16 %v2323, %v2323
        %v2452 = vpack.c.b16 %v2324, %v2324
        %v2453 = vpack.c.b16 %v2325, %v2325
        %v2454 = vpack.c.b16 %v2326, %v2326
        %v2455 = vpack.c.b16 %v2327, %v2327
        %v2456 = vpack.c.b16 %v2328, %v2328
        %v2457 = vpack.c.b16 %v2329, %v2329
        %v2458 = vpack.c.b16 %v2330, %v2330
        %v2459 = vpack.c.b16 %v2331, %v2331
        %v2460 = vpack.c.b16 %v2332, %v2332
        %v2461 = vpack.c.b16 %v2333, %v2333
        %v2462 = vpack.c.b16 %v2334, %v2334
        %v2463 = vpack.c.b16 %v2335, %v2335
        %v2464 = vpack.c.b16 %v2336, %v2336
        %v2465 = vpack.c.b16 %v2337, %v2337
        %v2466 = vpack.c.b16 %v2338, %v2338
        %v2467 = vpack.c.b16 %v2339, %v2339
        %v2468 = vpack.c.b16 %v2340, %v2340
        %v2469 = vpack.c.b16 %v2341, %v2341
        %v2470 = vpack.c.b16 %v2342, %v2342
        %v2471 = vpack.c.b16 %v2343, %v2343
        %v2472 = vpack.c.b16 %v2344, %v2344
        %v2473 = vpack.c.b16 %v2345, %v2345
        %v2474 = vpack.c.b16 %v2346, %v2346
        %v2475 = vpack.c.b16 %v2347, %v2347
        %v2476 = vpack.c.b16 %v2348, %v2348
        %v2477 = vpack.c.b16 %v2349, %v2349
        %v2478 = vpack.c.b16 %v2350, %v2350
        %v2479 = vpack.c.b16 %v2351, %v2351
        %v2480 = vpack.c.b16 %v2352, %v2352
        %v2481 = vpack.c.b16 %v2353, %v2353
        %v2482 = vpack.c.b16 %v2354, %v2354
        %v2483 = vpack.c.b16 %v2355, %v2355
        %v2484 = vpack.c.b16 %v2356, %v2356
        %v2485 = vpack.c.b16 %v2357, %v2357
        %v2486 = vpack.c.b16 %v2358, %v2358
        %v2487 = vpack.c.b16 %v2359, %v2359
        %v2488 = vpack.c.b16 %v2360, %v2360
        %v2489 = vpack.c.b16 %v2361, %v2361
        %v2490 = vpack.c.b16 %v2362, %v2362
        %v2491 = vpack.c.b16 %v2363, %v2363
        %v2492 = vpack.c.b16 %v2364, %v2364
        %v2493 = vpack.c.b16 %v2365, %v2365
        %v2494 = vpack.c.b16 %v2366, %v2366
        %v2495 = vpack.c.b16 %v2367, %v2367
        %v2496 = vpack.c.b16 %v2368, %v2368
        %v2497 = vpack.c.b16 %v2369, %v2369
        %v2498 = vpack.c.b16 %v2370, %v2370
        %v2499 = vpack.c.b16 %v2371, %v2371
        %v2500 = vpack.c.b16 %v2372, %v2372
        %v2501 = vpack.c.b16 %v2373, %v2373
        %v2502 = vpack.c.b16 %v2374, %v2374
        %v2503 = vpack.c.b16 %v2375, %v2375
        %v2504 = vpack.c.b16 %v2376, %v2376
        %v2505 = vpack.c.b16 %v2377, %v2377
        %v2506 = vpack.c.b16 %v2378, %v2378
        %v2507 = vpack.c.b16 %v2379, %v2379
        %v2508 = vpack.c.b16 %v2380, %v2380
        %v2509 = vpack.c.b16 %v2381, %v2381
        %v2510 = vpack.c.b16 %v2382, %v2382
        %v2511 = vpack.c.b16 %v2383, %v2383
        %v2512 = vpack.c.b16 %v2384, %v2384
        %v2513 = vpack.c.b16 %v2385, %v2385
        %v2514 = vpack.c.b16 %v2386, %v2386
        %v2515 = vpack.c.b16 %v2387, %v2387
        %v2516 = vpack.c.b16 %v2388, %v2388
        %v2517 = vpack.c.b16 %v2389, %v2389
        %v2518 = vpack.c.b16 %v2390, %v2390
        %v2519 = vpack.c.b16 %v2391, %v2391
        %v2520 = vpack.c.b16 %v2392, %v2392
        %v2521 = vpack.c.b16 %v2393, %v2393
        %v2522 = vpack.c.b16 %v2394, %v2394
        %v2523 = vpack.c.b16 %v2395, %v2395
        %v2524 = vpack.c.b16 %v2396, %v2396
        %v2525 = vpack.c.b16 %v2397, %v2397
        %v2526 = vpack.c.b16 %v2398, %v2398
        %v2527 = vpack.c.b16 %v2399, %v2399
        %v2528 = vpack.c.b16 %v2400, %v2400
        %v2529 = vpack.c.b16 %v2401, %v2401
        %v2530 = vpack.c.b16 %v2402, %v2402
        %v2531 = vpack.c.b16 %v2403, %v2403
        %v2532 = vpack.c.b16 %v2404, %v2404
        %v2533 = vpack.c.b16 %v2405, %v2405
        %v2534 = vpack.c.b16 %v2406, %v2406
        %v2535 = vpack.c.b16 %v2407, %v2407
        %v2536 = vpack.c.b16 %v2408, %v2408
        %v2537 = vpack.c.b16 %v2409, %v2409
        %v2538 = vpack.c.b16 %v2410, %v2410
        %v2539 = vpack.c.b16 %v2411, %v2411
        %v2540 = vpack.c.b16 %v2412, %v2412
        %v2541 = vpack.c.b16 %v2413, %v2413
        %v2542 = vpack.c.b16 %v2414, %v2414
        %v2543 = vpack.c.b16 %v2415, %v2415
        %v2544 = vpack.c.b16 %v2416, %v2416
        %v2545 = vpack.c.b16 %v2417, %v2417
        %v2546 = vpack.c.b16 %v2418, %v2418
        %v2547 = vpack.c.b16 %v2419, %v2419
        %v2548 = vpack.c.b16 %v2420, %v2420
        %v2549 = vpack.c.b16 %v2421, %v2421
        %v2550 = vpack.c.b16 %v2422, %v2422
        %v2551 = vpack.c.b16 %v2423, %v2423
        %v2552 = vpack.c.b16 %v2424, %v2424
        %v2553 = vpack.c.b16 %v2425, %v2425
        %vm2682 = vcmask 257024
        %2683 = vst.msk [vmem:[%s172] sm:$0xf] %vm2682, %v2426
        %2684 = vst.msk [vmem:[%s172 + $0x4] sm:$0xf] %vm2682, %v2427
        %2685 = vst.msk [vmem:[%s172 + $0x8] sm:$0xf] %vm2682, %v2428
        %2686 = vst.msk [vmem:[%s172 + $0xc] sm:$0xf] %vm2682, %v2429
        %2687 = vst.msk [vmem:[%s172 + $0x10] sm:$0xf] %vm2682, %v2430
        %2688 = vst.msk [vmem:[%s172 + $0x14] sm:$0xf] %vm2682, %v2431
        %2689 = vst.msk [vmem:[%s172 + $0x18] sm:$0xf] %vm2682, %v2432
        %2690 = vst.msk [vmem:[%s172 + $0x1c] sm:$0xf] %vm2682, %v2433
        %2691 = vst.msk [vmem:[%s172 + $0x20] sm:$0xf] %vm2682, %v2434
        %2692 = vst.msk [vmem:[%s172 + $0x24] sm:$0xf] %vm2682, %v2435
        %2693 = vst.msk [vmem:[%s172 + $0x28] sm:$0xf] %vm2682, %v2436
        %2694 = vst.msk [vmem:[%s172 + $0x2c] sm:$0xf] %vm2682, %v2437
        %2695 = vst.msk [vmem:[%s172 + $0x30] sm:$0xf] %vm2682, %v2438
        %2696 = vst.msk [vmem:[%s172 + $0x34] sm:$0xf] %vm2682, %v2439
        %2697 = vst.msk [vmem:[%s172 + $0x38] sm:$0xf] %vm2682, %v2440
        %2698 = vst.msk [vmem:[%s172 + $0x3c] sm:$0xf] %vm2682, %v2441
        %2699 = vst.msk [vmem:[%s172 + $0x40] sm:$0xf] %vm2682, %v2442
        %2700 = vst.msk [vmem:[%s172 + $0x44] sm:$0xf] %vm2682, %v2443
        %2701 = vst.msk [vmem:[%s172 + $0x48] sm:$0xf] %vm2682, %v2444
        %2702 = vst.msk [vmem:[%s172 + $0x4c] sm:$0xf] %vm2682, %v2445
        %2703 = vst.msk [vmem:[%s172 + $0x50] sm:$0xf] %vm2682, %v2446
        %2704 = vst.msk [vmem:[%s172 + $0x54] sm:$0xf] %vm2682, %v2447
        %2705 = vst.msk [vmem:[%s172 + $0x58] sm:$0xf] %vm2682, %v2448
        %2706 = vst.msk [vmem:[%s172 + $0x5c] sm:$0xf] %vm2682, %v2449
        %2707 = vst.msk [vmem:[%s172 + $0x60] sm:$0xf] %vm2682, %v2450
        %2708 = vst.msk [vmem:[%s172 + $0x64] sm:$0xf] %vm2682, %v2451
        %2709 = vst.msk [vmem:[%s172 + $0x68] sm:$0xf] %vm2682, %v2452
        %2710 = vst.msk [vmem:[%s172 + $0x6c] sm:$0xf] %vm2682, %v2453
        %2711 = vst.msk [vmem:[%s172 + $0x70] sm:$0xf] %vm2682, %v2454
        %2712 = vst.msk [vmem:[%s172 + $0x74] sm:$0xf] %vm2682, %v2455
        %2713 = vst.msk [vmem:[%s172 + $0x78] sm:$0xf] %vm2682, %v2456
        %2714 = vst.msk [vmem:[%s172 + $0x7c] sm:$0xf] %vm2682, %v2457
        %2715 = vst.msk [vmem:[%s172 + $0x80] sm:$0xf] %vm2682, %v2458
        %2716 = vst.msk [vmem:[%s172 + $0x84] sm:$0xf] %vm2682, %v2459
        %2717 = vst.msk [vmem:[%s172 + $0x88] sm:$0xf] %vm2682, %v2460
        %2718 = vst.msk [vmem:[%s172 + $0x8c] sm:$0xf] %vm2682, %v2461
        %2719 = vst.msk [vmem:[%s172 + $0x90] sm:$0xf] %vm2682, %v2462
        %2720 = vst.msk [vmem:[%s172 + $0x94] sm:$0xf] %vm2682, %v2463
        %2721 = vst.msk [vmem:[%s172 + $0x98] sm:$0xf] %vm2682, %v2464
        %2722 = vst.msk [vmem:[%s172 + $0x9c] sm:$0xf] %vm2682, %v2465
        %2723 = vst.msk [vmem:[%s172 + $0xa0] sm:$0xf] %vm2682, %v2466
        %2724 = vst.msk [vmem:[%s172 + $0xa4] sm:$0xf] %vm2682, %v2467
        %2725 = vst.msk [vmem:[%s172 + $0xa8] sm:$0xf] %vm2682, %v2468
        %2726 = vst.msk [vmem:[%s172 + $0xac] sm:$0xf] %vm2682, %v2469
        %2727 = vst.msk [vmem:[%s172 + $0xb0] sm:$0xf] %vm2682, %v2470
        %2728 = vst.msk [vmem:[%s172 + $0xb4] sm:$0xf] %vm2682, %v2471
        %2729 = vst.msk [vmem:[%s172 + $0xb8] sm:$0xf] %vm2682, %v2472
        %2730 = vst.msk [vmem:[%s172 + $0xbc] sm:$0xf] %vm2682, %v2473
        %2731 = vst.msk [vmem:[%s172 + $0xc0] sm:$0xf] %vm2682, %v2474
        %2732 = vst.msk [vmem:[%s172 + $0xc4] sm:$0xf] %vm2682, %v2475
        %2733 = vst.msk [vmem:[%s172 + $0xc8] sm:$0xf] %vm2682, %v2476
        %2734 = vst.msk [vmem:[%s172 + $0xcc] sm:$0xf] %vm2682, %v2477
        %2735 = vst.msk [vmem:[%s172 + $0xd0] sm:$0xf] %vm2682, %v2478
        %2736 = vst.msk [vmem:[%s172 + $0xd4] sm:$0xf] %vm2682, %v2479
        %2737 = vst.msk [vmem:[%s172 + $0xd8] sm:$0xf] %vm2682, %v2480
        %2738 = vst.msk [vmem:[%s172 + $0xdc] sm:$0xf] %vm2682, %v2481
        %2739 = vst.msk [vmem:[%s172 + $0xe0] sm:$0xf] %vm2682, %v2482
        %2740 = vst.msk [vmem:[%s172 + $0xe4] sm:$0xf] %vm2682, %v2483
        %2741 = vst.msk [vmem:[%s172 + $0xe8] sm:$0xf] %vm2682, %v2484
        %2742 = vst.msk [vmem:[%s172 + $0xec] sm:$0xf] %vm2682, %v2485
        %2743 = vst.msk [vmem:[%s172 + $0xf0] sm:$0xf] %vm2682, %v2486
        %2744 = vst.msk [vmem:[%s172 + $0xf4] sm:$0xf] %vm2682, %v2487
        %2745 = vst.msk [vmem:[%s172 + $0xf8] sm:$0xf] %vm2682, %v2488
        %2746 = vst.msk [vmem:[%s172 + $0xfc] sm:$0xf] %vm2682, %v2489
        %2747 = vst.msk [vmem:[%s172 + $0x100] sm:$0xf] %vm2682, %v2490
        %2748 = vst.msk [vmem:[%s172 + $0x104] sm:$0xf] %vm2682, %v2491
        %2749 = vst.msk [vmem:[%s172 + $0x108] sm:$0xf] %vm2682, %v2492
        %2750 = vst.msk [vmem:[%s172 + $0x10c] sm:$0xf] %vm2682, %v2493
        %2751 = vst.msk [vmem:[%s172 + $0x110] sm:$0xf] %vm2682, %v2494
        %2752 = vst.msk [vmem:[%s172 + $0x114] sm:$0xf] %vm2682, %v2495
        %2753 = vst.msk [vmem:[%s172 + $0x118] sm:$0xf] %vm2682, %v2496
        %2754 = vst.msk [vmem:[%s172 + $0x11c] sm:$0xf] %vm2682, %v2497
        %2755 = vst.msk [vmem:[%s172 + $0x120] sm:$0xf] %vm2682, %v2498
        %2756 = vst.msk [vmem:[%s172 + $0x124] sm:$0xf] %vm2682, %v2499
        %2757 = vst.msk [vmem:[%s172 + $0x128] sm:$0xf] %vm2682, %v2500
        %2758 = vst.msk [vmem:[%s172 + $0x12c] sm:$0xf] %vm2682, %v2501
        %2759 = vst.msk [vmem:[%s172 + $0x130] sm:$0xf] %vm2682, %v2502
        %2760 = vst.msk [vmem:[%s172 + $0x134] sm:$0xf] %vm2682, %v2503
        %2761 = vst.msk [vmem:[%s172 + $0x138] sm:$0xf] %vm2682, %v2504
        %2762 = vst.msk [vmem:[%s172 + $0x13c] sm:$0xf] %vm2682, %v2505
        %2763 = vst.msk [vmem:[%s172 + $0x140] sm:$0xf] %vm2682, %v2506
        %2764 = vst.msk [vmem:[%s172 + $0x144] sm:$0xf] %vm2682, %v2507
        %2765 = vst.msk [vmem:[%s172 + $0x148] sm:$0xf] %vm2682, %v2508
        %2766 = vst.msk [vmem:[%s172 + $0x14c] sm:$0xf] %vm2682, %v2509
        %2767 = vst.msk [vmem:[%s172 + $0x150] sm:$0xf] %vm2682, %v2510
        %2768 = vst.msk [vmem:[%s172 + $0x154] sm:$0xf] %vm2682, %v2511
        %2769 = vst.msk [vmem:[%s172 + $0x158] sm:$0xf] %vm2682, %v2512
        %2770 = vst.msk [vmem:[%s172 + $0x15c] sm:$0xf] %vm2682, %v2513
        %2771 = vst.msk [vmem:[%s172 + $0x160] sm:$0xf] %vm2682, %v2514
        %2772 = vst.msk [vmem:[%s172 + $0x164] sm:$0xf] %vm2682, %v2515
        %2773 = vst.msk [vmem:[%s172 + $0x168] sm:$0xf] %vm2682, %v2516
        %2774 = vst.msk [vmem:[%s172 + $0x16c] sm:$0xf] %vm2682, %v2517
        %2775 = vst.msk [vmem:[%s172 + $0x170] sm:$0xf] %vm2682, %v2518
        %2776 = vst.msk [vmem:[%s172 + $0x174] sm:$0xf] %vm2682, %v2519
        %2777 = vst.msk [vmem:[%s172 + $0x178] sm:$0xf] %vm2682, %v2520
        %2778 = vst.msk [vmem:[%s172 + $0x17c] sm:$0xf] %vm2682, %v2521
        %2779 = vst.msk [vmem:[%s172 + $0x180] sm:$0xf] %vm2682, %v2522
        %2780 = vst.msk [vmem:[%s172 + $0x184] sm:$0xf] %vm2682, %v2523
        %2781 = vst.msk [vmem:[%s172 + $0x188] sm:$0xf] %vm2682, %v2524
        %2782 = vst.msk [vmem:[%s172 + $0x18c] sm:$0xf] %vm2682, %v2525
        %2783 = vst.msk [vmem:[%s172 + $0x190] sm:$0xf] %vm2682, %v2526
        %2784 = vst.msk [vmem:[%s172 + $0x194] sm:$0xf] %vm2682, %v2527
        %2785 = vst.msk [vmem:[%s172 + $0x198] sm:$0xf] %vm2682, %v2528
        %2786 = vst.msk [vmem:[%s172 + $0x19c] sm:$0xf] %vm2682, %v2529
        %2787 = vst.msk [vmem:[%s172 + $0x1a0] sm:$0xf] %vm2682, %v2530
        %2788 = vst.msk [vmem:[%s172 + $0x1a4] sm:$0xf] %vm2682, %v2531
        %2789 = vst.msk [vmem:[%s172 + $0x1a8] sm:$0xf] %vm2682, %v2532
        %2790 = vst.msk [vmem:[%s172 + $0x1ac] sm:$0xf] %vm2682, %v2533
        %2791 = vst.msk [vmem:[%s172 + $0x1b0] sm:$0xf] %vm2682, %v2534
        %2792 = vst.msk [vmem:[%s172 + $0x1b4] sm:$0xf] %vm2682, %v2535
        %2793 = vst.msk [vmem:[%s172 + $0x1b8] sm:$0xf] %vm2682, %v2536
        %2794 = vst.msk [vmem:[%s172 + $0x1bc] sm:$0xf] %vm2682, %v2537
        %2795 = vst.msk [vmem:[%s172 + $0x1c0] sm:$0xf] %vm2682, %v2538
        %2796 = vst.msk [vmem:[%s172 + $0x1c4] sm:$0xf] %vm2682, %v2539
        %2797 = vst.msk [vmem:[%s172 + $0x1c8] sm:$0xf] %vm2682, %v2540
        %2798 = vst.msk [vmem:[%s172 + $0x1cc] sm:$0xf] %vm2682, %v2541
        %2799 = vst.msk [vmem:[%s172 + $0x1d0] sm:$0xf] %vm2682, %v2542
        %2800 = vst.msk [vmem:[%s172 + $0x1d4] sm:$0xf] %vm2682, %v2543
        %2801 = vst.msk [vmem:[%s172 + $0x1d8] sm:$0xf] %vm2682, %v2544
        %2802 = vst.msk [vmem:[%s172 + $0x1dc] sm:$0xf] %vm2682, %v2545
        %2803 = vst.msk [vmem:[%s172 + $0x1e0] sm:$0xf] %vm2682, %v2546
        %2804 = vst.msk [vmem:[%s172 + $0x1e4] sm:$0xf] %vm2682, %v2547
        %2805 = vst.msk [vmem:[%s172 + $0x1e8] sm:$0xf] %vm2682, %v2548
        %2806 = vst.msk [vmem:[%s172 + $0x1ec] sm:$0xf] %vm2682, %v2549
        %2807 = vst.msk [vmem:[%s172 + $0x1f0] sm:$0xf] %vm2682, %v2550
        %2808 = vst.msk [vmem:[%s172 + $0x1f4] sm:$0xf] %vm2682, %v2551
        %2809 = vst.msk [vmem:[%s172 + $0x1f8] sm:$0xf] %vm2682, %v2552
        %2810 = vst.msk [vmem:[%s172 + $0x1fc] sm:$0xf] %vm2682, %v2553
        %s2811 = sand.u32 %s90, 1
        %s2812 = sand.u32 %s90, 1
        %s2813 = smul.addr %s2812, 512
        %s2814 = scalar_lea.vmem [#allocation2], %s2813
        // Predicated region
        $region33: #{tpu_custom_call.1} parent=31 // pred_check
          %p2815 = pneg %p100
        $region34: #{tpu_custom_call.1} parent=31 // pred_check_branch
          %2817 = sbr.rel (%p2815) target = $region36
        $region35: #{tpu_custom_call.1} parent=31 // pred_region
          %s2818 = smul.u32 128, %s14
          %s2819 = ssub.s32 150, %s2818
          %p2820 = scmp.lt.s32.totalorder %s2819, 128
          %s2821 = scalar_select %p2820, %s2819, 128
          %s2822 = smul.u32 64, %s2821
          %p2823 = scmp.ne.s32.totalorder 0, %s2822
          %s2824 = smul.addr %s2818, 4
          %s2825 = scalar_lea.vmem %s3, %s2824
          // Predicated region
          $region37: #{tpu_custom_call.1} parent=35 // pred_check
            %p2826 = pneg %p2823
          $region38: #{tpu_custom_call.1} parent=35 // pred_check_branch
            %2828 = sbr.rel (%p2826) target = $region40
          $region39: #{tpu_custom_call.1} parent=35 // pred_region
            // Predicated region
            $region41: #{tpu_custom_call.1} parent=39 // pred_check
              _
            $region42: #{tpu_custom_call.1} parent=39 // pred_check_branch
              %2830 = sbr.rel target = $region44
            $region43: #{tpu_custom_call.1} parent=39 // pred_region
              // Predicated region
              $region63: #{tpu_custom_call.1} parent=43 // pred_check
                _
              $region64: #{tpu_custom_call.1} parent=43 // pred_check_branch
                %3005 = sbr.rel (0) target = $region66
              $region65: #{tpu_custom_call.1} parent=43 // pred_region
                %s3007 = sshrl.u32 %s2821, 6
                // While loop
                $region67: #{tpu_custom_call.1} parent=65 // loop_pre_header
                  _
                $region68: #{tpu_custom_call.1} parent=65 // loop_header
                  %s3009 = sphi 0, %s3011
                  %p3010 = scmp.ge.s32.totalorder %s3009, %s3007
                  %s3014 = sphi 0, %s3147
                  %s3015 = sphi %s2814, %s3150
                  %s3016 = sphi %s2825, %s3151
                $region69: #{tpu_custom_call.1} parent=65 // loop_header_branch
                  %3013 = sbr.rel (%p3010) target = $region73
                $region70: #{tpu_custom_call.1} parent=65 // loop_body
                  %v3017 = vld [vmem:[%s3015] sm:$0xf]
                  %3018 = vst [vmem:[%s3016] sm:$0xf] %v3017
                  %v3019 = vld [vmem:[%s3015 + $0x4] sm:$0xf]
                  %3020 = vst [vmem:[%s3016 + $0x4] sm:$0xf] %v3019
                  %v3021 = vld [vmem:[%s3015 + $0x8] sm:$0xf]
                  %3022 = vst [vmem:[%s3016 + $0x8] sm:$0xf] %v3021
                  %v3023 = vld [vmem:[%s3015 + $0xc] sm:$0xf]
                  %3024 = vst [vmem:[%s3016 + $0xc] sm:$0xf] %v3023
                  %v3025 = vld [vmem:[%s3015 + $0x10] sm:$0xf]
                  %3026 = vst [vmem:[%s3016 + $0x10] sm:$0xf] %v3025
                  %v3027 = vld [vmem:[%s3015 + $0x14] sm:$0xf]
                  %3028 = vst [vmem:[%s3016 + $0x14] sm:$0xf] %v3027
                  %v3029 = vld [vmem:[%s3015 + $0x18] sm:$0xf]
                  %3030 = vst [vmem:[%s3016 + $0x18] sm:$0xf] %v3029
                  %v3031 = vld [vmem:[%s3015 + $0x1c] sm:$0xf]
                  %3032 = vst [vmem:[%s3016 + $0x1c] sm:$0xf] %v3031
                  %v3033 = vld [vmem:[%s3015 + $0x20] sm:$0xf]
                  %3034 = vst [vmem:[%s3016 + $0x20] sm:$0xf] %v3033
                  %v3035 = vld [vmem:[%s3015 + $0x24] sm:$0xf]
                  %3036 = vst [vmem:[%s3016 + $0x24] sm:$0xf] %v3035
                  %v3037 = vld [vmem:[%s3015 + $0x28] sm:$0xf]
                  %3038 = vst [vmem:[%s3016 + $0x28] sm:$0xf] %v3037
                  %v3039 = vld [vmem:[%s3015 + $0x2c] sm:$0xf]
                  %3040 = vst [vmem:[%s3016 + $0x2c] sm:$0xf] %v3039
                  %v3041 = vld [vmem:[%s3015 + $0x30] sm:$0xf]
                  %3042 = vst [vmem:[%s3016 + $0x30] sm:$0xf] %v3041
                  %v3043 = vld [vmem:[%s3015 + $0x34] sm:$0xf]
                  %3044 = vst [vmem:[%s3016 + $0x34] sm:$0xf] %v3043
                  %v3045 = vld [vmem:[%s3015 + $0x38] sm:$0xf]
                  %3046 = vst [vmem:[%s3016 + $0x38] sm:$0xf] %v3045
                  %v3047 = vld [vmem:[%s3015 + $0x3c] sm:$0xf]
                  %3048 = vst [vmem:[%s3016 + $0x3c] sm:$0xf] %v3047
                  %v3049 = vld [vmem:[%s3015 + $0x40] sm:$0xf]
                  %3050 = vst [vmem:[%s3016 + $0x40] sm:$0xf] %v3049
                  %v3051 = vld [vmem:[%s3015 + $0x44] sm:$0xf]
                  %3052 = vst [vmem:[%s3016 + $0x44] sm:$0xf] %v3051
                  %v3053 = vld [vmem:[%s3015 + $0x48] sm:$0xf]
                  %3054 = vst [vmem:[%s3016 + $0x48] sm:$0xf] %v3053
                  %v3055 = vld [vmem:[%s3015 + $0x4c] sm:$0xf]
                  %3056 = vst [vmem:[%s3016 + $0x4c] sm:$0xf] %v3055
                  %v3057 = vld [vmem:[%s3015 + $0x50] sm:$0xf]
                  %3058 = vst [vmem:[%s3016 + $0x50] sm:$0xf] %v3057
                  %v3059 = vld [vmem:[%s3015 + $0x54] sm:$0xf]
                  %3060 = vst [vmem:[%s3016 + $0x54] sm:$0xf] %v3059
                  %v3061 = vld [vmem:[%s3015 + $0x58] sm:$0xf]
                  %3062 = vst [vmem:[%s3016 + $0x58] sm:$0xf] %v3061
                  %v3063 = vld [vmem:[%s3015 + $0x5c] sm:$0xf]
                  %3064 = vst [vmem:[%s3016 + $0x5c] sm:$0xf] %v3063
                  %v3065 = vld [vmem:[%s3015 + $0x60] sm:$0xf]
                  %3066 = vst [vmem:[%s3016 + $0x60] sm:$0xf] %v3065
                  %v3067 = vld [vmem:[%s3015 + $0x64] sm:$0xf]
                  %3068 = vst [vmem:[%s3016 + $0x64] sm:$0xf] %v3067
                  %v3069 = vld [vmem:[%s3015 + $0x68] sm:$0xf]
                  %3070 = vst [vmem:[%s3016 + $0x68] sm:$0xf] %v3069
                  %v3071 = vld [vmem:[%s3015 + $0x6c] sm:$0xf]
                  %3072 = vst [vmem:[%s3016 + $0x6c] sm:$0xf] %v3071
                  %v3073 = vld [vmem:[%s3015 + $0x70] sm:$0xf]
                  %3074 = vst [vmem:[%s3016 + $0x70] sm:$0xf] %v3073
                  %v3075 = vld [vmem:[%s3015 + $0x74] sm:$0xf]
                  %3076 = vst [vmem:[%s3016 + $0x74] sm:$0xf] %v3075
                  %v3077 = vld [vmem:[%s3015 + $0x78] sm:$0xf]
                  %3078 = vst [vmem:[%s3016 + $0x78] sm:$0xf] %v3077
                  %v3079 = vld [vmem:[%s3015 + $0x7c] sm:$0xf]
                  %3080 = vst [vmem:[%s3016 + $0x7c] sm:$0xf] %v3079
                  %v3081 = vld [vmem:[%s3015 + $0x80] sm:$0xf]
                  %3082 = vst [vmem:[%s3016 + $0x80] sm:$0xf] %v3081
                  %v3083 = vld [vmem:[%s3015 + $0x84] sm:$0xf]
                  %3084 = vst [vmem:[%s3016 + $0x84] sm:$0xf] %v3083
                  %v3085 = vld [vmem:[%s3015 + $0x88] sm:$0xf]
                  %3086 = vst [vmem:[%s3016 + $0x88] sm:$0xf] %v3085
                  %v3087 = vld [vmem:[%s3015 + $0x8c] sm:$0xf]
                  %3088 = vst [vmem:[%s3016 + $0x8c] sm:$0xf] %v3087
                  %v3089 = vld [vmem:[%s3015 + $0x90] sm:$0xf]
                  %3090 = vst [vmem:[%s3016 + $0x90] sm:$0xf] %v3089
                  %v3091 = vld [vmem:[%s3015 + $0x94] sm:$0xf]
                  %3092 = vst [vmem:[%s3016 + $0x94] sm:$0xf] %v3091
                  %v3093 = vld [vmem:[%s3015 + $0x98] sm:$0xf]
                  %3094 = vst [vmem:[%s3016 + $0x98] sm:$0xf] %v3093
                  %v3095 = vld [vmem:[%s3015 + $0x9c] sm:$0xf]
                  %3096 = vst [vmem:[%s3016 + $0x9c] sm:$0xf] %v3095
                  %v3097 = vld [vmem:[%s3015 + $0xa0] sm:$0xf]
                  %3098 = vst [vmem:[%s3016 + $0xa0] sm:$0xf] %v3097
                  %v3099 = vld [vmem:[%s3015 + $0xa4] sm:$0xf]
                  %3100 = vst [vmem:[%s3016 + $0xa4] sm:$0xf] %v3099
                  %v3101 = vld [vmem:[%s3015 + $0xa8] sm:$0xf]
                  %3102 = vst [vmem:[%s3016 + $0xa8] sm:$0xf] %v3101
                  %v3103 = vld [vmem:[%s3015 + $0xac] sm:$0xf]
                  %3104 = vst [vmem:[%s3016 + $0xac] sm:$0xf] %v3103
                  %v3105 = vld [vmem:[%s3015 + $0xb0] sm:$0xf]
                  %3106 = vst [vmem:[%s3016 + $0xb0] sm:$0xf] %v3105
                  %v3107 = vld [vmem:[%s3015 + $0xb4] sm:$0xf]
                  %3108 = vst [vmem:[%s3016 + $0xb4] sm:$0xf] %v3107
                  %v3109 = vld [vmem:[%s3015 + $0xb8] sm:$0xf]
                  %3110 = vst [vmem:[%s3016 + $0xb8] sm:$0xf] %v3109
                  %v3111 = vld [vmem:[%s3015 + $0xbc] sm:$0xf]
                  %3112 = vst [vmem:[%s3016 + $0xbc] sm:$0xf] %v3111
                  %v3113 = vld [vmem:[%s3015 + $0xc0] sm:$0xf]
                  %3114 = vst [vmem:[%s3016 + $0xc0] sm:$0xf] %v3113
                  %v3115 = vld [vmem:[%s3015 + $0xc4] sm:$0xf]
                  %3116 = vst [vmem:[%s3016 + $0xc4] sm:$0xf] %v3115
                  %v3117 = vld [vmem:[%s3015 + $0xc8] sm:$0xf]
                  %3118 = vst [vmem:[%s3016 + $0xc8] sm:$0xf] %v3117
                  %v3119 = vld [vmem:[%s3015 + $0xcc] sm:$0xf]
                  %3120 = vst [vmem:[%s3016 + $0xcc] sm:$0xf] %v3119
                  %v3121 = vld [vmem:[%s3015 + $0xd0] sm:$0xf]
                  %3122 = vst [vmem:[%s3016 + $0xd0] sm:$0xf] %v3121
                  %v3123 = vld [vmem:[%s3015 + $0xd4] sm:$0xf]
                  %3124 = vst [vmem:[%s3016 + $0xd4] sm:$0xf] %v3123
                  %v3125 = vld [vmem:[%s3015 + $0xd8] sm:$0xf]
                  %3126 = vst [vmem:[%s3016 + $0xd8] sm:$0xf] %v3125
                  %v3127 = vld [vmem:[%s3015 + $0xdc] sm:$0xf]
                  %3128 = vst [vmem:[%s3016 + $0xdc] sm:$0xf] %v3127
                  %v3129 = vld [vmem:[%s3015 + $0xe0] sm:$0xf]
                  %3130 = vst [vmem:[%s3016 + $0xe0] sm:$0xf] %v3129
                  %v3131 = vld [vmem:[%s3015 + $0xe4] sm:$0xf]
                  %3132 = vst [vmem:[%s3016 + $0xe4] sm:$0xf] %v3131
                  %v3133 = vld [vmem:[%s3015 + $0xe8] sm:$0xf]
                  %3134 = vst [vmem:[%s3016 + $0xe8] sm:$0xf] %v3133
                  %v3135 = vld [vmem:[%s3015 + $0xec] sm:$0xf]
                  %3136 = vst [vmem:[%s3016 + $0xec] sm:$0xf] %v3135
                  %v3137 = vld [vmem:[%s3015 + $0xf0] sm:$0xf]
                  %3138 = vst [vmem:[%s3016 + $0xf0] sm:$0xf] %v3137
                  %v3139 = vld [vmem:[%s3015 + $0xf4] sm:$0xf]
                  %3140 = vst [vmem:[%s3016 + $0xf4] sm:$0xf] %v3139
                  %v3141 = vld [vmem:[%s3015 + $0xf8] sm:$0xf]
                  %3142 = vst [vmem:[%s3016 + $0xf8] sm:$0xf] %v3141
                  %v3143 = vld [vmem:[%s3015 + $0xfc] sm:$0xf]
                  %3144 = vst [vmem:[%s3016 + $0xfc] sm:$0xf] %v3143
                  %s3145 = sadd.s32 1, %s3014
                  %p3146 = scmp.ge.s32.totalorder %s3145, %s3007
                  %s3147 = scalar_select %p3146, 0, %s3145
                  %s3148 = smul.u32 %s3147, 256
                  %s3149 = smul.u32 %s3147, 256
                  %s3150 = scalar_lea.vmem %s2814, %s3148 [#allocation2]
                  %s3151 = scalar_lea.vmem %s2825, %s3149
                $region71: #{tpu_custom_call.1} parent=65 // loop_footer
                  %s3011 = sadd.s32 %s3009, 1
                $region72: #{tpu_custom_call.1} parent=65 // loop_footer_branch
                  %3008 = sbr.rel target = $region68
                $region73: #{tpu_custom_call.1} parent=65 // loop_exit
                  _
                %s3152 = sshrl.u32 %s2821, 6
                %s3153 = sand.u32 %s2821, 63
                %s3154 = smul.u32 %s3152, 64
                %s3155 = smul.u32 4, %s3154
                %s3156 = scalar_lea.vmem %s2814, %s3155 [#allocation2]
                %s3157 = smul.u32 4, %s3154
                %s3158 = scalar_lea.vmem %s2825, %s3157
                // While loop
                $region74: #{tpu_custom_call.1} parent=65 // loop_pre_header
                  _
                $region75: #{tpu_custom_call.1} parent=65 // loop_header
                  %s3160 = sphi 0, %s3162
                  %p3161 = scmp.ge.s32.totalorder %s3160, %s3153
                  %s3165 = sphi 0, %s3172
                  %s3166 = sphi %s3156, %s3175
                  %s3167 = sphi %s3158, %s3176
                $region76: #{tpu_custom_call.1} parent=65 // loop_header_branch
                  %3164 = sbr.rel (%p3161) target = $region80
                $region77: #{tpu_custom_call.1} parent=65 // loop_body
                  %v3168 = vld [vmem:[%s3166] sm:$0xf]
                  %3169 = vst [vmem:[%s3167] sm:$0xf] %v3168
                  %s3170 = sadd.s32 1, %s3165
                  %p3171 = scmp.ge.s32.totalorder %s3170, %s3153
                  %s3172 = scalar_select %p3171, 0, %s3170
                  %s3173 = smul.u32 %s3172, 4
                  %s3174 = smul.u32 %s3172, 4
                  %s3175 = scalar_lea.vmem %s3156, %s3173 [#allocation2]
                  %s3176 = scalar_lea.vmem %s3158, %s3174
                $region78: #{tpu_custom_call.1} parent=65 // loop_footer
                  %s3162 = sadd.s32 %s3160, 1
                $region79: #{tpu_custom_call.1} parent=65 // loop_footer_branch
                  %3159 = sbr.rel target = $region75
                $region80: #{tpu_custom_call.1} parent=65 // loop_exit
                  _
              $region66: #{tpu_custom_call.1} parent=43 // pred_fallthru
                _
            $region44: #{tpu_custom_call.1} parent=39 // pred_fallthru
              _
            // Predicated region
            $region45: #{tpu_custom_call.1} parent=39 // pred_check
              _
            $region46: #{tpu_custom_call.1} parent=39 // pred_check_branch
              %2832 = sbr.rel (0) target = $region48
            $region47: #{tpu_custom_call.1} parent=39 // pred_region
              %s2834 = sshrl.u32 %s2821, 6
              // While loop
              $region49: #{tpu_custom_call.1} parent=47 // loop_pre_header
                _
              $region50: #{tpu_custom_call.1} parent=47 // loop_header
                %s2836 = sphi 0, %s2838
                %p2837 = scmp.ge.s32.totalorder %s2836, %s2834
                %s2841 = sphi 0, %s2974
                %s2842 = sphi %s2814, %s2977
                %s2843 = sphi %s2825, %s2978
              $region51: #{tpu_custom_call.1} parent=47 // loop_header_branch
                %2840 = sbr.rel (%p2837) target = $region55
              $region52: #{tpu_custom_call.1} parent=47 // loop_body
                %v2844 = vld [vmem:[%s2842] sm:$0xf]
                %2845 = vst [vmem:[%s2843] sm:$0xf] %v2844
                %v2846 = vld [vmem:[%s2842 + $0x4] sm:$0xf]
                %2847 = vst [vmem:[%s2843 + $0x4] sm:$0xf] %v2846
                %v2848 = vld [vmem:[%s2842 + $0x8] sm:$0xf]
                %2849 = vst [vmem:[%s2843 + $0x8] sm:$0xf] %v2848
                %v2850 = vld [vmem:[%s2842 + $0xc] sm:$0xf]
                %2851 = vst [vmem:[%s2843 + $0xc] sm:$0xf] %v2850
                %v2852 = vld [vmem:[%s2842 + $0x10] sm:$0xf]
                %2853 = vst [vmem:[%s2843 + $0x10] sm:$0xf] %v2852
                %v2854 = vld [vmem:[%s2842 + $0x14] sm:$0xf]
                %2855 = vst [vmem:[%s2843 + $0x14] sm:$0xf] %v2854
                %v2856 = vld [vmem:[%s2842 + $0x18] sm:$0xf]
                %2857 = vst [vmem:[%s2843 + $0x18] sm:$0xf] %v2856
                %v2858 = vld [vmem:[%s2842 + $0x1c] sm:$0xf]
                %2859 = vst [vmem:[%s2843 + $0x1c] sm:$0xf] %v2858
                %v2860 = vld [vmem:[%s2842 + $0x20] sm:$0xf]
                %2861 = vst [vmem:[%s2843 + $0x20] sm:$0xf] %v2860
                %v2862 = vld [vmem:[%s2842 + $0x24] sm:$0xf]
                %2863 = vst [vmem:[%s2843 + $0x24] sm:$0xf] %v2862
                %v2864 = vld [vmem:[%s2842 + $0x28] sm:$0xf]
                %2865 = vst [vmem:[%s2843 + $0x28] sm:$0xf] %v2864
                %v2866 = vld [vmem:[%s2842 + $0x2c] sm:$0xf]
                %2867 = vst [vmem:[%s2843 + $0x2c] sm:$0xf] %v2866
                %v2868 = vld [vmem:[%s2842 + $0x30] sm:$0xf]
                %2869 = vst [vmem:[%s2843 + $0x30] sm:$0xf] %v2868
                %v2870 = vld [vmem:[%s2842 + $0x34] sm:$0xf]
                %2871 = vst [vmem:[%s2843 + $0x34] sm:$0xf] %v2870
                %v2872 = vld [vmem:[%s2842 + $0x38] sm:$0xf]
                %2873 = vst [vmem:[%s2843 + $0x38] sm:$0xf] %v2872
                %v2874 = vld [vmem:[%s2842 + $0x3c] sm:$0xf]
                %2875 = vst [vmem:[%s2843 + $0x3c] sm:$0xf] %v2874
                %v2876 = vld [vmem:[%s2842 + $0x40] sm:$0xf]
                %2877 = vst [vmem:[%s2843 + $0x40] sm:$0xf] %v2876
                %v2878 = vld [vmem:[%s2842 + $0x44] sm:$0xf]
                %2879 = vst [vmem:[%s2843 + $0x44] sm:$0xf] %v2878
                %v2880 = vld [vmem:[%s2842 + $0x48] sm:$0xf]
                %2881 = vst [vmem:[%s2843 + $0x48] sm:$0xf] %v2880
                %v2882 = vld [vmem:[%s2842 + $0x4c] sm:$0xf]
                %2883 = vst [vmem:[%s2843 + $0x4c] sm:$0xf] %v2882
                %v2884 = vld [vmem:[%s2842 + $0x50] sm:$0xf]
                %2885 = vst [vmem:[%s2843 + $0x50] sm:$0xf] %v2884
                %v2886 = vld [vmem:[%s2842 + $0x54] sm:$0xf]
                %2887 = vst [vmem:[%s2843 + $0x54] sm:$0xf] %v2886
                %v2888 = vld [vmem:[%s2842 + $0x58] sm:$0xf]
                %2889 = vst [vmem:[%s2843 + $0x58] sm:$0xf] %v2888
                %v2890 = vld [vmem:[%s2842 + $0x5c] sm:$0xf]
                %2891 = vst [vmem:[%s2843 + $0x5c] sm:$0xf] %v2890
                %v2892 = vld [vmem:[%s2842 + $0x60] sm:$0xf]
                %2893 = vst [vmem:[%s2843 + $0x60] sm:$0xf] %v2892
                %v2894 = vld [vmem:[%s2842 + $0x64] sm:$0xf]
                %2895 = vst [vmem:[%s2843 + $0x64] sm:$0xf] %v2894
                %v2896 = vld [vmem:[%s2842 + $0x68] sm:$0xf]
                %2897 = vst [vmem:[%s2843 + $0x68] sm:$0xf] %v2896
                %v2898 = vld [vmem:[%s2842 + $0x6c] sm:$0xf]
                %2899 = vst [vmem:[%s2843 + $0x6c] sm:$0xf] %v2898
                %v2900 = vld [vmem:[%s2842 + $0x70] sm:$0xf]
                %2901 = vst [vmem:[%s2843 + $0x70] sm:$0xf] %v2900
                %v2902 = vld [vmem:[%s2842 + $0x74] sm:$0xf]
                %2903 = vst [vmem:[%s2843 + $0x74] sm:$0xf] %v2902
                %v2904 = vld [vmem:[%s2842 + $0x78] sm:$0xf]
                %2905 = vst [vmem:[%s2843 + $0x78] sm:$0xf] %v2904
                %v2906 = vld [vmem:[%s2842 + $0x7c] sm:$0xf]
                %2907 = vst [vmem:[%s2843 + $0x7c] sm:$0xf] %v2906
                %v2908 = vld [vmem:[%s2842 + $0x80] sm:$0xf]
                %2909 = vst [vmem:[%s2843 + $0x80] sm:$0xf] %v2908
                %v2910 = vld [vmem:[%s2842 + $0x84] sm:$0xf]
                %2911 = vst [vmem:[%s2843 + $0x84] sm:$0xf] %v2910
                %v2912 = vld [vmem:[%s2842 + $0x88] sm:$0xf]
                %2913 = vst [vmem:[%s2843 + $0x88] sm:$0xf] %v2912
                %v2914 = vld [vmem:[%s2842 + $0x8c] sm:$0xf]
                %2915 = vst [vmem:[%s2843 + $0x8c] sm:$0xf] %v2914
                %v2916 = vld [vmem:[%s2842 + $0x90] sm:$0xf]
                %2917 = vst [vmem:[%s2843 + $0x90] sm:$0xf] %v2916
                %v2918 = vld [vmem:[%s2842 + $0x94] sm:$0xf]
                %2919 = vst [vmem:[%s2843 + $0x94] sm:$0xf] %v2918
                %v2920 = vld [vmem:[%s2842 + $0x98] sm:$0xf]
                %2921 = vst [vmem:[%s2843 + $0x98] sm:$0xf] %v2920
                %v2922 = vld [vmem:[%s2842 + $0x9c] sm:$0xf]
                %2923 = vst [vmem:[%s2843 + $0x9c] sm:$0xf] %v2922
                %v2924 = vld [vmem:[%s2842 + $0xa0] sm:$0xf]
                %2925 = vst [vmem:[%s2843 + $0xa0] sm:$0xf] %v2924
                %v2926 = vld [vmem:[%s2842 + $0xa4] sm:$0xf]
                %2927 = vst [vmem:[%s2843 + $0xa4] sm:$0xf] %v2926
                %v2928 = vld [vmem:[%s2842 + $0xa8] sm:$0xf]
                %2929 = vst [vmem:[%s2843 + $0xa8] sm:$0xf] %v2928
                %v2930 = vld [vmem:[%s2842 + $0xac] sm:$0xf]
                %2931 = vst [vmem:[%s2843 + $0xac] sm:$0xf] %v2930
                %v2932 = vld [vmem:[%s2842 + $0xb0] sm:$0xf]
                %2933 = vst [vmem:[%s2843 + $0xb0] sm:$0xf] %v2932
                %v2934 = vld [vmem:[%s2842 + $0xb4] sm:$0xf]
                %2935 = vst [vmem:[%s2843 + $0xb4] sm:$0xf] %v2934
                %v2936 = vld [vmem:[%s2842 + $0xb8] sm:$0xf]
                %2937 = vst [vmem:[%s2843 + $0xb8] sm:$0xf] %v2936
                %v2938 = vld [vmem:[%s2842 + $0xbc] sm:$0xf]
                %2939 = vst [vmem:[%s2843 + $0xbc] sm:$0xf] %v2938
                %v2940 = vld [vmem:[%s2842 + $0xc0] sm:$0xf]
                %2941 = vst [vmem:[%s2843 + $0xc0] sm:$0xf] %v2940
                %v2942 = vld [vmem:[%s2842 + $0xc4] sm:$0xf]
                %2943 = vst [vmem:[%s2843 + $0xc4] sm:$0xf] %v2942
                %v2944 = vld [vmem:[%s2842 + $0xc8] sm:$0xf]
                %2945 = vst [vmem:[%s2843 + $0xc8] sm:$0xf] %v2944
                %v2946 = vld [vmem:[%s2842 + $0xcc] sm:$0xf]
                %2947 = vst [vmem:[%s2843 + $0xcc] sm:$0xf] %v2946
                %v2948 = vld [vmem:[%s2842 + $0xd0] sm:$0xf]
                %2949 = vst [vmem:[%s2843 + $0xd0] sm:$0xf] %v2948
                %v2950 = vld [vmem:[%s2842 + $0xd4] sm:$0xf]
                %2951 = vst [vmem:[%s2843 + $0xd4] sm:$0xf] %v2950
                %v2952 = vld [vmem:[%s2842 + $0xd8] sm:$0xf]
                %2953 = vst [vmem:[%s2843 + $0xd8] sm:$0xf] %v2952
                %v2954 = vld [vmem:[%s2842 + $0xdc] sm:$0xf]
                %2955 = vst [vmem:[%s2843 + $0xdc] sm:$0xf] %v2954
                %v2956 = vld [vmem:[%s2842 + $0xe0] sm:$0xf]
                %2957 = vst [vmem:[%s2843 + $0xe0] sm:$0xf] %v2956
                %v2958 = vld [vmem:[%s2842 + $0xe4] sm:$0xf]
                %2959 = vst [vmem:[%s2843 + $0xe4] sm:$0xf] %v2958
                %v2960 = vld [vmem:[%s2842 + $0xe8] sm:$0xf]
                %2961 = vst [vmem:[%s2843 + $0xe8] sm:$0xf] %v2960
                %v2962 = vld [vmem:[%s2842 + $0xec] sm:$0xf]
                %2963 = vst [vmem:[%s2843 + $0xec] sm:$0xf] %v2962
                %v2964 = vld [vmem:[%s2842 + $0xf0] sm:$0xf]
                %2965 = vst [vmem:[%s2843 + $0xf0] sm:$0xf] %v2964
                %v2966 = vld [vmem:[%s2842 + $0xf4] sm:$0xf]
                %2967 = vst [vmem:[%s2843 + $0xf4] sm:$0xf] %v2966
                %v2968 = vld [vmem:[%s2842 + $0xf8] sm:$0xf]
                %2969 = vst [vmem:[%s2843 + $0xf8] sm:$0xf] %v2968
                %v2970 = vld [vmem:[%s2842 + $0xfc] sm:$0xf]
                %2971 = vst [vmem:[%s2843 + $0xfc] sm:$0xf] %v2970
                %s2972 = sadd.s32 1, %s2841
                %p2973 = scmp.ge.s32.totalorder %s2972, %s2834
                %s2974 = scalar_select %p2973, 0, %s2972
                %s2975 = smul.u32 %s2974, 256
                %s2976 = smul.u32 %s2974, 256
                %s2977 = scalar_lea.vmem %s2814, %s2975 [#allocation2]
                %s2978 = scalar_lea.vmem %s2825, %s2976
              $region53: #{tpu_custom_call.1} parent=47 // loop_footer
                %s2838 = sadd.s32 %s2836, 1
              $region54: #{tpu_custom_call.1} parent=47 // loop_footer_branch
                %2835 = sbr.rel target = $region50
              $region55: #{tpu_custom_call.1} parent=47 // loop_exit
                _
              %s2979 = sshrl.u32 %s2821, 6
              %s2980 = sand.u32 %s2821, 63
              %s2981 = smul.u32 %s2979, 64
              %s2982 = smul.u32 4, %s2981
              %s2983 = scalar_lea.vmem %s2814, %s2982 [#allocation2]
              %s2984 = smul.u32 4, %s2981
              %s2985 = scalar_lea.vmem %s2825, %s2984
              // While loop
              $region56: #{tpu_custom_call.1} parent=47 // loop_pre_header
                _
              $region57: #{tpu_custom_call.1} parent=47 // loop_header
                %s2987 = sphi 0, %s2989
                %p2988 = scmp.ge.s32.totalorder %s2987, %s2980
                %s2992 = sphi 0, %s2999
                %s2993 = sphi %s2983, %s3002
                %s2994 = sphi %s2985, %s3003
              $region58: #{tpu_custom_call.1} parent=47 // loop_header_branch
                %2991 = sbr.rel (%p2988) target = $region62
              $region59: #{tpu_custom_call.1} parent=47 // loop_body
                %v2995 = vld [vmem:[%s2993] sm:$0xf]
                %2996 = vst [vmem:[%s2994] sm:$0xf] %v2995
                %s2997 = sadd.s32 1, %s2992
                %p2998 = scmp.ge.s32.totalorder %s2997, %s2980
                %s2999 = scalar_select %p2998, 0, %s2997
                %s3000 = smul.u32 %s2999, 4
                %s3001 = smul.u32 %s2999, 4
                %s3002 = scalar_lea.vmem %s2983, %s3000 [#allocation2]
                %s3003 = scalar_lea.vmem %s2985, %s3001
              $region60: #{tpu_custom_call.1} parent=47 // loop_footer
                %s2989 = sadd.s32 %s2987, 1
              $region61: #{tpu_custom_call.1} parent=47 // loop_footer_branch
                %2986 = sbr.rel target = $region57
              $region62: #{tpu_custom_call.1} parent=47 // loop_exit
                _
            $region48: #{tpu_custom_call.1} parent=39 // pred_fallthru
              _
          $region40: #{tpu_custom_call.1} parent=35 // pred_fallthru
            _
          %3177 = vnop
        $region36: #{tpu_custom_call.1} parent=31 // pred_fallthru
          _
      $region32: #{tpu_custom_call.1} parent=5 // pred_fallthru
        _
      %p3178 = scmp.le.s32.totalorder 2, %s9
      // Predicated region
      $region81: #{tpu_custom_call.1} parent=5 // pred_check
        %p3179 = pneg %p3178
      $region82: #{tpu_custom_call.1} parent=5 // pred_check_branch
        %3181 = sbr.rel (%p3179) target = $region84
      $region83: #{tpu_custom_call.1} parent=5 // pred_region
        %s3182 = ssub.s32 %s9, 2
        // Predicated region
        $region85: #{tpu_custom_call.1} parent=83 // pred_check
          %p3183 = pneg %p106
        $region86: #{tpu_custom_call.1} parent=83 // pred_check_branch
          %3185 = sbr.rel (%p3183) target = $region88
        $region87: #{tpu_custom_call.1} parent=83 // pred_region
          %s3186 = sand.u32 %s91, 1
          %s3187 = sand.u32 %s91, 1
          %s3188 = smul.addr %s3187, 512
          %s3189 = scalar_lea.vmem [#allocation2], %s3188
        $region88: #{tpu_custom_call.1} parent=83 // pred_fallthru
          _
      $region84: #{tpu_custom_call.1} parent=5 // pred_fallthru
        _
    $region6: #{tpu_custom_call.1} parent=1 // loop_footer
      %s13 = sadd.s32 1, %s9
    $region7: #{tpu_custom_call.1} parent=1 // loop_footer_branch
      %8 = sbr.rel target = $region3
    $region8: #{tpu_custom_call.1} parent=1 // loop_exit
      _

</llo_original>
